<compile_context>
chip_gen: v7x
topology: tpu7x:2x2x1
jax: 0.10.0
libtpu: 0.0.40
codegen_flags: <defaults>
</compile_context>

<pallas_src>
import functools
import math

import jax
import jax.numpy as jnp
from jax.experimental import pallas as pl
from jax.experimental.pallas import tpu as pltpu


def _hop_mha_kernel(num_heads, d_head, E, G,
                    x_ref, wqkv_ref, bqkv_ref, wout_ref, bout_ref, bias_ref,
                    out_ref, attn_ref):
    """One grid step = G consecutive (batch*time) slices.

    x_ref    : (G*E, D)      f32   flattened tokens for this group
    wqkv_ref : (D, 3*D)      bf16  [Wq^T * scale | Wk^T | Wv^T]
    bqkv_ref : (1, 3*D)      f32   [bq * scale | bk | bv]
    wout_ref : (D, D)        bf16  Wout^T
    bout_ref : (1, D)        f32
    bias_ref : (H, E, E)     f32   gamma_h * hop_mask_h (head 0 is zeros)
    out_ref  : (G*E, D)      f32
    attn_ref : (G, H, E, E)  f32   final (B*T, H, E, E) layout, no transpose
    """
    D = num_heads * d_head

    # Single fused Q/K/V projection; bf16 operands, f32 accumulation.
    x_bf = x_ref[...].astype(jnp.bfloat16)
    qkv = jnp.dot(x_bf, wqkv_ref[...],
                  preferred_element_type=jnp.float32) + bqkv_ref[...]

    wout = wout_ref[...]
    bias = bias_ref[...]
    acc = jnp.zeros((G * E, D), jnp.float32)

    for h in range(num_heads):                                # static unroll
        lo = h * d_head
        qh = qkv[:, lo:lo + d_head].reshape(G, E, d_head).astype(jnp.bfloat16)
        kh = qkv[:, D + lo:D + lo + d_head].reshape(G, E, d_head).astype(jnp.bfloat16)
        vh = qkv[:, 2 * D + lo:2 * D + lo + d_head].reshape(G, E, d_head).astype(jnp.bfloat16)

        # scores = (Q*scale) Kh^T + gamma_h * hop_mask_h   (scale folded into Wq)
        s = jnp.einsum('ged,gfd->gef', qh, kh,
                       preferred_element_type=jnp.float32)
        s = s + bias[h][None, :, :]

        # Numerically stable softmax over keys; divide goes to the EUP.
        m = jnp.max(s, axis=-1, keepdims=True)
        p = jnp.exp(s - m)
        attn = p * pl.reciprocal(jnp.sum(p, axis=-1, keepdims=True), approx=True)

        attn_ref[:, h, :, :] = attn.astype(attn_ref.dtype)

        ctx = jnp.einsum('gef,gfd->ged', attn.astype(jnp.bfloat16), vh,
                         preferred_element_type=jnp.float32)  # (G, E, dh)

        # Fold head-concat + out_proj into per-head accumulation.
        acc = acc + jnp.dot(ctx.reshape(G * E, d_head).astype(jnp.bfloat16),
                            wout[lo:lo + d_head, :],
                            preferred_element_type=jnp.float32)

    out_ref[...] = (acc + bout_ref[...]).astype(out_ref.dtype)


def hop_biased_mha_forward(x, wq_t, bq, wk_t, bk, wv_t, bv, wo_t, bo,
                           hop_gamma, edge_spd, num_heads, group_size=64):
    """x: (B, T, E, D) f32 -> (out (B, T, E, D), attn (B*T, H, E, E))."""
    B, T, E, D = x.shape
    H = num_heads
    d_head = D // H
    S = B * T

    # Group of (b, t) slices per grid step. Keep grid >= 2 so v7x can split the
    # "parallel" axis across both TensorCores; prefer G a multiple of 16 so
    # G*E is a multiple of 256 (MXU aligned); pad S instead of shrinking G.
    G = max(1, min(group_size, S // 2 if S >= 2 else 1))
    if G >= 16:
        G = (G // 16) * 16
    elif G >= 8:
        G = (G // 8) * 8
    S_pad = pl.cdiv(S, G) * G

    x2d = x.reshape(S * E, D)
    if S_pad != S:
        x2d = jnp.pad(x2d, ((0, (S_pad - S) * E), (0, 0)))

    # One-time constant folds: fused Q/K/V weight (scale folded into Q part),
    # bf16 MXU weights, precomputed per-head hop bias.
    scale = 1.0 / math.sqrt(d_head)
    wqkv = jnp.concatenate([wq_t * scale, wk_t, wv_t], axis=1).astype(jnp.bfloat16)
    bqkv = jnp.concatenate([bq * scale, bk, bv], axis=0).reshape(1, 3 * D)
    bqkv = bqkv.astype(jnp.float32)
    wout = wo_t.astype(jnp.bfloat16)
    bout = bo.reshape(1, D).astype(jnp.float32)

    masks = [jnp.zeros((E, E), jnp.float32)]                      # head 0: no bias
    for i in range(1, H):
        masks.append((edge_spd == i).astype(jnp.float32))
    bias = jnp.stack(masks, axis=0) * hop_gamma[:, None, None]    # (H, E, E)

    kern = functools.partial(_hop_mha_kernel, H, d_head, E, G)

    out2d, attn = pl.pallas_call(
        kern,
        out_shape=(jax.ShapeDtypeStruct((S_pad * E, D), jnp.float32),
                   jax.ShapeDtypeStruct((S_pad, H, E, E), jnp.float32)),
        grid_spec=pltpu.PrefetchScalarGridSpec(
            num_scalar_prefetch=0,
            grid=(S_pad // G,),
            in_specs=[
                pl.BlockSpec((G * E, D), lambda s: (s, 0)),       # tokens
                pl.BlockSpec((D, 3 * D), lambda s: (0, 0)),       # fused Wqkv^T
                pl.BlockSpec((1, 3 * D), lambda s: (0, 0)),       # fused bias
                pl.BlockSpec((D, D), lambda s: (0, 0)),           # Wout^T
                pl.BlockSpec((1, D), lambda s: (0, 0)),           # out bias
                pl.BlockSpec((H, E, E), lambda s: (0, 0, 0)),     # hop bias
            ],
            out_specs=(
                pl.BlockSpec((G * E, D), lambda s: (s, 0)),
                pl.BlockSpec((G, H, E, E), lambda s: (s, 0, 0, 0)),
            ),
        ),
        compiler_params=pltpu.CompilerParams(
            dimension_semantics=("parallel",)),
    )(x2d, wqkv, bqkv, wout, bout, bias)

    out = out2d[:S * E].reshape(B, T, E, D)
    attn = attn[:S]                                               # (B*T, H, E, E)
    return out, attn


def _reference(x, wq_t, bq, wk_t, bk, wv_t, bv, wo_t, bo,
               hop_gamma, edge_spd, H):
    """Pure-JAX f32 reference mirroring the PyTorch forward exactly."""
    B, T, E, D = x.shape
    dh = D // H
    xf = x.reshape(B * T, E, D)
    Q = xf @ wq_t + bq
    K = xf @ wk_t + bk
    V = xf @ wv_t + bv

    def split(z):
        return jnp.transpose(z.reshape(B * T, E, H, dh), (0, 2, 1, 3))

    Qh, Kh, Vh = split(Q), split(K), split(V)
    scores = jnp.einsum('bhed,bhfd->bhef', Qh, Kh) / math.sqrt(dh)
    masks = [jnp.zeros((E, E), jnp.float32)]
    for i in range(1, H):
        masks.append((edge_spd == i).astype(jnp.float32))
    bias = jnp.stack(masks, axis=0) * hop_gamma[:, None, None]
    scores = scores + bias[None]
    attn = jax.nn.softmax(scores, axis=-1)
    ctx = jnp.einsum('bhef,bhfd->bhed', attn, Vh)
    ctx = jnp.transpose(ctx, (0, 2, 1, 3)).reshape(B * T, E, D)
    out = (ctx @ wo_t + bo).reshape(B, T, E, D)
    return out, attn


if __name__ == "__main__":
    # Small, module-consistent shapes: B=2, T=8, E=16 nodes, d_model=32, 4 heads.
    B, T, E, D, H = 2, 8, 16, 32, 4

    key = jax.random.PRNGKey(0)
    ks = jax.random.split(key, 11)

    x = jax.random.normal(ks[0], (B, T, E, D), dtype=jnp.float32)

    bound = 1.0 / math.sqrt(D)

    def u(k, shape):
        return jax.random.uniform(k, shape, jnp.float32, -bound, bound)

    # Linear weights stored transposed (apply as x @ W^T + b).
    wq_t, bq = u(ks[1], (D, D)), u(ks[2], (D,))
    wk_t, bk = u(ks[3], (D, D)), u(ks[4], (D,))
    wv_t, bv = u(ks[5], (D, D)), u(ks[6], (D,))
    wo_t, bo = u(ks[7], (D, D)), u(ks[8], (D,))
    hop_gamma = jax.random.uniform(ks[9], (H,), jnp.float32, 0.5, 1.5)
    # Shortest-path-distance matrix (hops in [0, H+1]) like the numpy buffer.
    edge_spd = jax.random.randint(ks[10], (E, E), 0, H + 2).astype(jnp.int32)

    out, attn = hop_biased_mha_forward(
        x, wq_t, bq, wk_t, bk, wv_t, bv, wo_t, bo, hop_gamma, edge_spd, H)
    out = jax.block_until_ready(out)
    attn = jax.block_until_ready(attn)

    ref_out, ref_attn = _reference(
        x, wq_t, bq, wk_t, bk, wv_t, bv, wo_t, bo, hop_gamma, edge_spd, H)

    assert out.shape == (B, T, E, D)
    assert attn.shape == (B * T, H, E, E)
    # bf16 MXU operands + approx reciprocal -> compare at bf16-level tolerance.
    assert jnp.allclose(out, ref_out, atol=3e-2, rtol=3e-2), \
        float(jnp.max(jnp.abs(out - ref_out)))
    assert jnp.allclose(attn, ref_attn, atol=3e-2, rtol=3e-2), \
        float(jnp.max(jnp.abs(attn - ref_attn)))

    print("KERNEL_OK")
</pallas_src>

<mosaic_0001>
module attributes {stable_mosaic.version = 11 : i64} {
  func.func @_hop_mha_kernel(%arg0: i32, %arg1: memref<128x32xf32, #tpu.memory_space<vmem>>, %arg2: memref<32x96xbf16, #tpu.memory_space<vmem>>, %arg3: memref<1x96xf32, #tpu.memory_space<vmem>>, %arg4: memref<32x32xbf16, #tpu.memory_space<vmem>>, %arg5: memref<1x32xf32, #tpu.memory_space<vmem>>, %arg6: memref<4x16x16xf32, #tpu.memory_space<vmem>>, %arg7: memref<128x32xf32, #tpu.memory_space<vmem>>, %arg8: memref<8x4x16x16xf32, #tpu.memory_space<vmem>>) attributes {dimension_semantics = [#tpu.dimension_semantics<parallel>], iteration_bounds = array<i64: 2>, scalar_prefetch = 0 : i64, scratch_operands = 0 : i64, tpu.core_type = #tpu.core_type<tc>, window_params = [{transform_indices = @transform_0, window_bounds = array<i64: 128, 32>}, {pipeline_mode = #tpu.pipeline_mode<synchronous>, transform_indices = @transform_1, window_bounds = array<i64: 32, 96>}, {pipeline_mode = #tpu.pipeline_mode<synchronous>, transform_indices = @transform_2, window_bounds = array<i64: 1, 96>}, {pipeline_mode = #tpu.pipeline_mode<synchronous>, transform_indices = @transform_3, window_bounds = array<i64: 32, 32>}, {pipeline_mode = #tpu.pipeline_mode<synchronous>, transform_indices = @transform_4, window_bounds = array<i64: 1, 32>}, {pipeline_mode = #tpu.pipeline_mode<synchronous>, transform_indices = @transform_5, window_bounds = array<i64: 4, 16, 16>}, {transform_indices = @transform_6, window_bounds = array<i64: 128, 32>}, {transform_indices = @transform_7, window_bounds = array<i64: 8, 4, 16, 16>}]} {
    %c0 = arith.constant 0 : index
    %c0_0 = arith.constant 0 : index
    %0 = vector.load %arg1[%c0, %c0_0] : memref<128x32xf32, #tpu.memory_space<vmem>>, vector<128x32xf32>
    %1 = arith.truncf %0 : vector<128x32xf32> to vector<128x32xbf16>
    %c0_1 = arith.constant 0 : index
    %c0_2 = arith.constant 0 : index
    %2 = vector.load %arg2[%c0_1, %c0_2] : memref<32x96xbf16, #tpu.memory_space<vmem>>, vector<32x96xbf16>
    %cst = arith.constant dense<0.000000e+00> : vector<128x96xf32>
    %3 = tpu.matmul %1, %2, %cst {dimension_numbers = #tpu.dot_dimension_numbers<[1], [0], [0], [1], [0, 0, 1, 1], [], []>} : vector<128x32xbf16>, vector<32x96xbf16>, vector<128x96xf32> -> vector<128x96xf32>
    %c0_3 = arith.constant 0 : index
    %c0_4 = arith.constant 0 : index
    %4 = vector.load %arg3[%c0_3, %c0_4] : memref<1x96xf32, #tpu.memory_space<vmem>>, vector<1x96xf32>
    %5 = vector.broadcast %4 : vector<1x96xf32> to vector<128x96xf32>
    %6 = arith.addf %3, %5 : vector<128x96xf32>
    %c0_5 = arith.constant 0 : index
    %c0_6 = arith.constant 0 : index
    %7 = vector.load %arg4[%c0_5, %c0_6] : memref<32x32xbf16, #tpu.memory_space<vmem>>, vector<32x32xbf16>
    %c0_7 = arith.constant 0 : index
    %c0_8 = arith.constant 0 : index
    %c0_9 = arith.constant 0 : index
    %8 = vector.load %arg6[%c0_7, %c0_8, %c0_9] : memref<4x16x16xf32, #tpu.memory_space<vmem>>, vector<4x16x16xf32>
    %cst_10 = arith.constant 0.000000e+00 : f32
    %9 = vector.broadcast %cst_10 : f32 to vector<128x32xf32>
    %10 = vector.extract_strided_slice %6 {offsets = [0, 0], sizes = [128, 8], strides = [1, 1]} : vector<128x96xf32> to vector<128x8xf32>
    %11 = vector.shape_cast %10 : vector<128x8xf32> to vector<8x16x8xf32>
    %12 = arith.truncf %11 : vector<8x16x8xf32> to vector<8x16x8xbf16>
    %13 = vector.extract_strided_slice %6 {offsets = [0, 32], sizes = [128, 8], strides = [1, 1]} : vector<128x96xf32> to vector<128x8xf32>
    %14 = vector.shape_cast %13 : vector<128x8xf32> to vector<8x16x8xf32>
    %15 = arith.truncf %14 : vector<8x16x8xf32> to vector<8x16x8xbf16>
    %16 = vector.extract_strided_slice %6 {offsets = [0, 64], sizes = [128, 8], strides = [1, 1]} : vector<128x96xf32> to vector<128x8xf32>
    %17 = vector.shape_cast %16 : vector<128x8xf32> to vector<8x16x8xf32>
    %18 = arith.truncf %17 : vector<8x16x8xf32> to vector<8x16x8xbf16>
    "tpu.trace_start"() <{level = 10 : i32, message = "ged,gfd->gef"}> : () -> ()
    %cst_11 = arith.constant dense<0.000000e+00> : vector<8x16x16xf32>
    %19 = tpu.matmul %12, %15, %cst_11 {dimension_numbers = #tpu.dot_dimension_numbers<[2], [2], [1], [1], [0, 0, 0, 1, 1, 1], [0], [0]>} : vector<8x16x8xbf16>, vector<8x16x8xbf16>, vector<8x16x16xf32> -> vector<8x16x16xf32>
    "tpu.trace_stop"() : () -> ()
    %20 = vector.extract_strided_slice %8 {offsets = [0, 0, 0], sizes = [1, 16, 16], strides = [1, 1, 1]} : vector<4x16x16xf32> to vector<1x16x16xf32>
    %21 = vector.shape_cast %20 : vector<1x16x16xf32> to vector<16x16xf32>
    %22 = vector.shape_cast %21 : vector<16x16xf32> to vector<1x16x16xf32>
    %23 = vector.broadcast %22 : vector<1x16x16xf32> to vector<8x16x16xf32>
    %24 = arith.addf %19, %23 : vector<8x16x16xf32>
    %cst_12 = arith.constant dense<0xFF800000> : vector<8x16xf32>
    %25 = vector.multi_reduction <maximumf>, %24, %cst_12 [2] : vector<8x16x16xf32> to vector<8x16xf32>
    %26 = vector.shape_cast %25 : vector<8x16xf32> to vector<8x16x1xf32>
    %27 = vector.broadcast %26 : vector<8x16x1xf32> to vector<8x16x16xf32>
    %28 = arith.subf %24, %27 : vector<8x16x16xf32>
    %29 = math.exp %28 : vector<8x16x16xf32>
    %cst_13 = arith.constant dense<0.000000e+00> : vector<8x16xf32>
    %30 = vector.multi_reduction <add>, %29, %cst_13 [2] : vector<8x16x16xf32> to vector<8x16xf32>
    %31 = vector.shape_cast %30 : vector<8x16xf32> to vector<8x16x1xf32>
    %32 = tpu.reciprocal %31 {approx = true} : vector<8x16x1xf32> -> vector<8x16x1xf32>
    %33 = vector.broadcast %32 : vector<8x16x1xf32> to vector<8x16x16xf32>
    %34 = arith.mulf %29, %33 : vector<8x16x16xf32>
    %c0_14 = arith.constant 0 : index
    %c0_15 = arith.constant 0 : index
    %c0_16 = arith.constant 0 : index
    %c0_17 = arith.constant 0 : index
    %35 = vector.load %arg8[%c0_14, %c0_15, %c0_16, %c0_17] : memref<8x4x16x16xf32, #tpu.memory_space<vmem>>, vector<8x1x16x16xf32>
    %36 = vector.shape_cast %35 : vector<8x1x16x16xf32> to vector<8x16x16xf32>
    %37 = vector.shape_cast %34 : vector<8x16x16xf32> to vector<8x1x16x16xf32>
    tpu.vector_store %arg8[%c0_14, %c0_15, %c0_16, %c0_17], %37 {strides = array<i32>} : memref<8x4x16x16xf32, #tpu.memory_space<vmem>>, vector<8x1x16x16xf32>,
    %38 = arith.truncf %34 : vector<8x16x16xf32> to vector<8x16x16xbf16>
    "tpu.trace_start"() <{level = 10 : i32, message = "gef,gfd->ged"}> : () -> ()
    %cst_18 = arith.constant dense<0.000000e+00> : vector<8x16x8xf32>
    %39 = tpu.matmul %38, %18, %cst_18 {dimension_numbers = #tpu.dot_dimension_numbers<[2], [1], [1], [2], [0, 0, 0, 1, 1, 2], [0], [0]>} : vector<8x16x16xbf16>, vector<8x16x8xbf16>, vector<8x16x8xf32> -> vector<8x16x8xf32>
    "tpu.trace_stop"() : () -> ()
    %40 = vector.shape_cast %39 : vector<8x16x8xf32> to vector<128x8xf32>
    %41 = arith.truncf %40 : vector<128x8xf32> to vector<128x8xbf16>
    %42 = vector.extract_strided_slice %7 {offsets = [0, 0], sizes = [8, 32], strides = [1, 1]} : vector<32x32xbf16> to vector<8x32xbf16>
    %cst_19 = arith.constant dense<0.000000e+00> : vector<128x32xf32>
    %43 = tpu.matmul %41, %42, %cst_19 {dimension_numbers = #tpu.dot_dimension_numbers<[1], [0], [0], [1], [0, 0, 1, 1], [], []>} : vector<128x8xbf16>, vector<8x32xbf16>, vector<128x32xf32> -> vector<128x32xf32>
    %44 = arith.addf %9, %43 : vector<128x32xf32>
    %45 = vector.extract_strided_slice %6 {offsets = [0, 8], sizes = [128, 8], strides = [1, 1]} : vector<128x96xf32> to vector<128x8xf32>
    %46 = vector.shape_cast %45 : vector<128x8xf32> to vector<8x16x8xf32>
    %47 = arith.truncf %46 : vector<8x16x8xf32> to vector<8x16x8xbf16>
    %48 = vector.extract_strided_slice %6 {offsets = [0, 40], sizes = [128, 8], strides = [1, 1]} : vector<128x96xf32> to vector<128x8xf32>
    %49 = vector.shape_cast %48 : vector<128x8xf32> to vector<8x16x8xf32>
    %50 = arith.truncf %49 : vector<8x16x8xf32> to vector<8x16x8xbf16>
    %51 = vector.extract_strided_slice %6 {offsets = [0, 72], sizes = [128, 8], strides = [1, 1]} : vector<128x96xf32> to vector<128x8xf32>
    %52 = vector.shape_cast %51 : vector<128x8xf32> to vector<8x16x8xf32>
    %53 = arith.truncf %52 : vector<8x16x8xf32> to vector<8x16x8xbf16>
    "tpu.trace_start"() <{level = 10 : i32, message = "ged,gfd->gef"}> : () -> ()
    %cst_20 = arith.constant dense<0.000000e+00> : vector<8x16x16xf32>
    %54 = tpu.matmul %47, %50, %cst_20 {dimension_numbers = #tpu.dot_dimension_numbers<[2], [2], [1], [1], [0, 0, 0, 1, 1, 1], [0], [0]>} : vector<8x16x8xbf16>, vector<8x16x8xbf16>, vector<8x16x16xf32> -> vector<8x16x16xf32>
    "tpu.trace_stop"() : () -> ()
    %55 = vector.extract_strided_slice %8 {offsets = [1, 0, 0], sizes = [1, 16, 16], strides = [1, 1, 1]} : vector<4x16x16xf32> to vector<1x16x16xf32>
    %56 = vector.shape_cast %55 : vector<1x16x16xf32> to vector<16x16xf32>
    %57 = vector.shape_cast %56 : vector<16x16xf32> to vector<1x16x16xf32>
    %58 = vector.broadcast %57 : vector<1x16x16xf32> to vector<8x16x16xf32>
    %59 = arith.addf %54, %58 : vector<8x16x16xf32>
    %cst_21 = arith.constant dense<0xFF800000> : vector<8x16xf32>
    %60 = vector.multi_reduction <maximumf>, %59, %cst_21 [2] : vector<8x16x16xf32> to vector<8x16xf32>
    %61 = vector.shape_cast %60 : vector<8x16xf32> to vector<8x16x1xf32>
    %62 = vector.broadcast %61 : vector<8x16x1xf32> to vector<8x16x16xf32>
    %63 = arith.subf %59, %62 : vector<8x16x16xf32>
    %64 = math.exp %63 : vector<8x16x16xf32>
    %cst_22 = arith.constant dense<0.000000e+00> : vector<8x16xf32>
    %65 = vector.multi_reduction <add>, %64, %cst_22 [2] : vector<8x16x16xf32> to vector<8x16xf32>
    %66 = vector.shape_cast %65 : vector<8x16xf32> to vector<8x16x1xf32>
    %67 = tpu.reciprocal %66 {approx = true} : vector<8x16x1xf32> -> vector<8x16x1xf32>
    %68 = vector.broadcast %67 : vector<8x16x1xf32> to vector<8x16x16xf32>
    %69 = arith.mulf %64, %68 : vector<8x16x16xf32>
    %c0_23 = arith.constant 0 : index
    %c1 = arith.constant 1 : index
    %c0_24 = arith.constant 0 : index
    %c0_25 = arith.constant 0 : index
    %70 = vector.load %arg8[%c0_23, %c1, %c0_24, %c0_25] : memref<8x4x16x16xf32, #tpu.memory_space<vmem>>, vector<8x1x16x16xf32>
    %71 = vector.shape_cast %70 : vector<8x1x16x16xf32> to vector<8x16x16xf32>
    %72 = vector.shape_cast %69 : vector<8x16x16xf32> to vector<8x1x16x16xf32>
    tpu.vector_store %arg8[%c0_23, %c1, %c0_24, %c0_25], %72 {strides = array<i32>} : memref<8x4x16x16xf32, #tpu.memory_space<vmem>>, vector<8x1x16x16xf32>,
    %73 = arith.truncf %69 : vector<8x16x16xf32> to vector<8x16x16xbf16>
    "tpu.trace_start"() <{level = 10 : i32, message = "gef,gfd->ged"}> : () -> ()
    %cst_26 = arith.constant dense<0.000000e+00> : vector<8x16x8xf32>
    %74 = tpu.matmul %73, %53, %cst_26 {dimension_numbers = #tpu.dot_dimension_numbers<[2], [1], [1], [2], [0, 0, 0, 1, 1, 2], [0], [0]>} : vector<8x16x16xbf16>, vector<8x16x8xbf16>, vector<8x16x8xf32> -> vector<8x16x8xf32>
    "tpu.trace_stop"() : () -> ()
    %75 = vector.shape_cast %74 : vector<8x16x8xf32> to vector<128x8xf32>
    %76 = arith.truncf %75 : vector<128x8xf32> to vector<128x8xbf16>
    %77 = vector.extract_strided_slice %7 {offsets = [8, 0], sizes = [8, 32], strides = [1, 1]} : vector<32x32xbf16> to vector<8x32xbf16>
    %cst_27 = arith.constant dense<0.000000e+00> : vector<128x32xf32>
    %78 = tpu.matmul %76, %77, %cst_27 {dimension_numbers = #tpu.dot_dimension_numbers<[1], [0], [0], [1], [0, 0, 1, 1], [], []>} : vector<128x8xbf16>, vector<8x32xbf16>, vector<128x32xf32> -> vector<128x32xf32>
    %79 = arith.addf %44, %78 : vector<128x32xf32>
    %80 = vector.extract_strided_slice %6 {offsets = [0, 16], sizes = [128, 8], strides = [1, 1]} : vector<128x96xf32> to vector<128x8xf32>
    %81 = vector.shape_cast %80 : vector<128x8xf32> to vector<8x16x8xf32>
    %82 = arith.truncf %81 : vector<8x16x8xf32> to vector<8x16x8xbf16>
    %83 = vector.extract_strided_slice %6 {offsets = [0, 48], sizes = [128, 8], strides = [1, 1]} : vector<128x96xf32> to vector<128x8xf32>
    %84 = vector.shape_cast %83 : vector<128x8xf32> to vector<8x16x8xf32>
    %85 = arith.truncf %84 : vector<8x16x8xf32> to vector<8x16x8xbf16>
    %86 = vector.extract_strided_slice %6 {offsets = [0, 80], sizes = [128, 8], strides = [1, 1]} : vector<128x96xf32> to vector<128x8xf32>
    %87 = vector.shape_cast %86 : vector<128x8xf32> to vector<8x16x8xf32>
    %88 = arith.truncf %87 : vector<8x16x8xf32> to vector<8x16x8xbf16>
    "tpu.trace_start"() <{level = 10 : i32, message = "ged,gfd->gef"}> : () -> ()
    %cst_28 = arith.constant dense<0.000000e+00> : vector<8x16x16xf32>
    %89 = tpu.matmul %82, %85, %cst_28 {dimension_numbers = #tpu.dot_dimension_numbers<[2], [2], [1], [1], [0, 0, 0, 1, 1, 1], [0], [0]>} : vector<8x16x8xbf16>, vector<8x16x8xbf16>, vector<8x16x16xf32> -> vector<8x16x16xf32>
    "tpu.trace_stop"() : () -> ()
    %90 = vector.extract_strided_slice %8 {offsets = [2, 0, 0], sizes = [1, 16, 16], strides = [1, 1, 1]} : vector<4x16x16xf32> to vector<1x16x16xf32>
    %91 = vector.shape_cast %90 : vector<1x16x16xf32> to vector<16x16xf32>
    %92 = vector.shape_cast %91 : vector<16x16xf32> to vector<1x16x16xf32>
    %93 = vector.broadcast %92 : vector<1x16x16xf32> to vector<8x16x16xf32>
    %94 = arith.addf %89, %93 : vector<8x16x16xf32>
    %cst_29 = arith.constant dense<0xFF800000> : vector<8x16xf32>
    %95 = vector.multi_reduction <maximumf>, %94, %cst_29 [2] : vector<8x16x16xf32> to vector<8x16xf32>
    %96 = vector.shape_cast %95 : vector<8x16xf32> to vector<8x16x1xf32>
    %97 = vector.broadcast %96 : vector<8x16x1xf32> to vector<8x16x16xf32>
    %98 = arith.subf %94, %97 : vector<8x16x16xf32>
    %99 = math.exp %98 : vector<8x16x16xf32>
    %cst_30 = arith.constant dense<0.000000e+00> : vector<8x16xf32>
    %100 = vector.multi_reduction <add>, %99, %cst_30 [2] : vector<8x16x16xf32> to vector<8x16xf32>
    %101 = vector.shape_cast %100 : vector<8x16xf32> to vector<8x16x1xf32>
    %102 = tpu.reciprocal %101 {approx = true} : vector<8x16x1xf32> -> vector<8x16x1xf32>
    %103 = vector.broadcast %102 : vector<8x16x1xf32> to vector<8x16x16xf32>
    %104 = arith.mulf %99, %103 : vector<8x16x16xf32>
    %c0_31 = arith.constant 0 : index
    %c2 = arith.constant 2 : index
    %c0_32 = arith.constant 0 : index
    %c0_33 = arith.constant 0 : index
    %105 = vector.load %arg8[%c0_31, %c2, %c0_32, %c0_33] : memref<8x4x16x16xf32, #tpu.memory_space<vmem>>, vector<8x1x16x16xf32>
    %106 = vector.shape_cast %105 : vector<8x1x16x16xf32> to vector<8x16x16xf32>
    %107 = vector.shape_cast %104 : vector<8x16x16xf32> to vector<8x1x16x16xf32>
    tpu.vector_store %arg8[%c0_31, %c2, %c0_32, %c0_33], %107 {strides = array<i32>} : memref<8x4x16x16xf32, #tpu.memory_space<vmem>>, vector<8x1x16x16xf32>,
    %108 = arith.truncf %104 : vector<8x16x16xf32> to vector<8x16x16xbf16>
    "tpu.trace_start"() <{level = 10 : i32, message = "gef,gfd->ged"}> : () -> ()
    %cst_34 = arith.constant dense<0.000000e+00> : vector<8x16x8xf32>
    %109 = tpu.matmul %108, %88, %cst_34 {dimension_numbers = #tpu.dot_dimension_numbers<[2], [1], [1], [2], [0, 0, 0, 1, 1, 2], [0], [0]>} : vector<8x16x16xbf16>, vector<8x16x8xbf16>, vector<8x16x8xf32> -> vector<8x16x8xf32>
    "tpu.trace_stop"() : () -> ()
    %110 = vector.shape_cast %109 : vector<8x16x8xf32> to vector<128x8xf32>
    %111 = arith.truncf %110 : vector<128x8xf32> to vector<128x8xbf16>
    %112 = vector.extract_strided_slice %7 {offsets = [16, 0], sizes = [8, 32], strides = [1, 1]} : vector<32x32xbf16> to vector<8x32xbf16>
    %cst_35 = arith.constant dense<0.000000e+00> : vector<128x32xf32>
    %113 = tpu.matmul %111, %112, %cst_35 {dimension_numbers = #tpu.dot_dimension_numbers<[1], [0], [0], [1], [0, 0, 1, 1], [], []>} : vector<128x8xbf16>, vector<8x32xbf16>, vector<128x32xf32> -> vector<128x32xf32>
    %114 = arith.addf %79, %113 : vector<128x32xf32>
    %115 = vector.extract_strided_slice %6 {offsets = [0, 24], sizes = [128, 8], strides = [1, 1]} : vector<128x96xf32> to vector<128x8xf32>
    %116 = vector.shape_cast %115 : vector<128x8xf32> to vector<8x16x8xf32>
    %117 = arith.truncf %116 : vector<8x16x8xf32> to vector<8x16x8xbf16>
    %118 = vector.extract_strided_slice %6 {offsets = [0, 56], sizes = [128, 8], strides = [1, 1]} : vector<128x96xf32> to vector<128x8xf32>
    %119 = vector.shape_cast %118 : vector<128x8xf32> to vector<8x16x8xf32>
    %120 = arith.truncf %119 : vector<8x16x8xf32> to vector<8x16x8xbf16>
    %121 = vector.extract_strided_slice %6 {offsets = [0, 88], sizes = [128, 8], strides = [1, 1]} : vector<128x96xf32> to vector<128x8xf32>
    %122 = vector.shape_cast %121 : vector<128x8xf32> to vector<8x16x8xf32>
    %123 = arith.truncf %122 : vector<8x16x8xf32> to vector<8x16x8xbf16>
    "tpu.trace_start"() <{level = 10 : i32, message = "ged,gfd->gef"}> : () -> ()
    %cst_36 = arith.constant dense<0.000000e+00> : vector<8x16x16xf32>
    %124 = tpu.matmul %117, %120, %cst_36 {dimension_numbers = #tpu.dot_dimension_numbers<[2], [2], [1], [1], [0, 0, 0, 1, 1, 1], [0], [0]>} : vector<8x16x8xbf16>, vector<8x16x8xbf16>, vector<8x16x16xf32> -> vector<8x16x16xf32>
    "tpu.trace_stop"() : () -> ()
    %125 = vector.extract_strided_slice %8 {offsets = [3, 0, 0], sizes = [1, 16, 16], strides = [1, 1, 1]} : vector<4x16x16xf32> to vector<1x16x16xf32>
    %126 = vector.shape_cast %125 : vector<1x16x16xf32> to vector<16x16xf32>
    %127 = vector.shape_cast %126 : vector<16x16xf32> to vector<1x16x16xf32>
    %128 = vector.broadcast %127 : vector<1x16x16xf32> to vector<8x16x16xf32>
    %129 = arith.addf %124, %128 : vector<8x16x16xf32>
    %cst_37 = arith.constant dense<0xFF800000> : vector<8x16xf32>
    %130 = vector.multi_reduction <maximumf>, %129, %cst_37 [2] : vector<8x16x16xf32> to vector<8x16xf32>
    %131 = vector.shape_cast %130 : vector<8x16xf32> to vector<8x16x1xf32>
    %132 = vector.broadcast %131 : vector<8x16x1xf32> to vector<8x16x16xf32>
    %133 = arith.subf %129, %132 : vector<8x16x16xf32>
    %134 = math.exp %133 : vector<8x16x16xf32>
    %cst_38 = arith.constant dense<0.000000e+00> : vector<8x16xf32>
    %135 = vector.multi_reduction <add>, %134, %cst_38 [2] : vector<8x16x16xf32> to vector<8x16xf32>
    %136 = vector.shape_cast %135 : vector<8x16xf32> to vector<8x16x1xf32>
    %137 = tpu.reciprocal %136 {approx = true} : vector<8x16x1xf32> -> vector<8x16x1xf32>
    %138 = vector.broadcast %137 : vector<8x16x1xf32> to vector<8x16x16xf32>
    %139 = arith.mulf %134, %138 : vector<8x16x16xf32>
    %c0_39 = arith.constant 0 : index
    %c3 = arith.constant 3 : index
    %c0_40 = arith.constant 0 : index
    %c0_41 = arith.constant 0 : index
    %140 = vector.load %arg8[%c0_39, %c3, %c0_40, %c0_41] : memref<8x4x16x16xf32, #tpu.memory_space<vmem>>, vector<8x1x16x16xf32>
    %141 = vector.shape_cast %140 : vector<8x1x16x16xf32> to vector<8x16x16xf32>
    %142 = vector.shape_cast %139 : vector<8x16x16xf32> to vector<8x1x16x16xf32>
    tpu.vector_store %arg8[%c0_39, %c3, %c0_40, %c0_41], %142 {strides = array<i32>} : memref<8x4x16x16xf32, #tpu.memory_space<vmem>>, vector<8x1x16x16xf32>,
    %143 = arith.truncf %139 : vector<8x16x16xf32> to vector<8x16x16xbf16>
    "tpu.trace_start"() <{level = 10 : i32, message = "gef,gfd->ged"}> : () -> ()
    %cst_42 = arith.constant dense<0.000000e+00> : vector<8x16x8xf32>
    %144 = tpu.matmul %143, %123, %cst_42 {dimension_numbers = #tpu.dot_dimension_numbers<[2], [1], [1], [2], [0, 0, 0, 1, 1, 2], [0], [0]>} : vector<8x16x16xbf16>, vector<8x16x8xbf16>, vector<8x16x8xf32> -> vector<8x16x8xf32>
    "tpu.trace_stop"() : () -> ()
    %145 = vector.shape_cast %144 : vector<8x16x8xf32> to vector<128x8xf32>
    %146 = arith.truncf %145 : vector<128x8xf32> to vector<128x8xbf16>
    %147 = vector.extract_strided_slice %7 {offsets = [24, 0], sizes = [8, 32], strides = [1, 1]} : vector<32x32xbf16> to vector<8x32xbf16>
    %cst_43 = arith.constant dense<0.000000e+00> : vector<128x32xf32>
    %148 = tpu.matmul %146, %147, %cst_43 {dimension_numbers = #tpu.dot_dimension_numbers<[1], [0], [0], [1], [0, 0, 1, 1], [], []>} : vector<128x8xbf16>, vector<8x32xbf16>, vector<128x32xf32> -> vector<128x32xf32>
    %149 = arith.addf %114, %148 : vector<128x32xf32>
    %c0_44 = arith.constant 0 : index
    %c0_45 = arith.constant 0 : index
    %150 = vector.load %arg5[%c0_44, %c0_45] : memref<1x32xf32, #tpu.memory_space<vmem>>, vector<1x32xf32>
    %151 = vector.broadcast %150 : vector<1x32xf32> to vector<128x32xf32>
    %152 = arith.addf %149, %151 : vector<128x32xf32>
    %c0_46 = arith.constant 0 : index
    %c0_47 = arith.constant 0 : index
    %153 = vector.load %arg7[%c0_46, %c0_47] : memref<128x32xf32, #tpu.memory_space<vmem>>, vector<128x32xf32>
    tpu.vector_store %arg7[%c0_46, %c0_47], %152 {strides = array<i32>} : memref<128x32xf32, #tpu.memory_space<vmem>>, vector<128x32xf32>,
    return
  }
  func.func @transform_0(%arg0: i32) -> (i32, i32) {
    %c0_i32 = arith.constant 0 : i32
    %c0_i32_0 = arith.constant 0 : i32
    return %arg0, %c0_i32 : i32, i32
  }
  func.func @transform_1(%arg0: i32) -> (i32, i32) {
    %c0_i32 = arith.constant 0 : i32
    %c0_i32_0 = arith.constant 0 : i32
    %c0_i32_1 = arith.constant 0 : i32
    return %c0_i32, %c0_i32_0 : i32, i32
  }
  func.func @transform_2(%arg0: i32) -> (i32, i32) {
    %c0_i32 = arith.constant 0 : i32
    %c0_i32_0 = arith.constant 0 : i32
    %c0_i32_1 = arith.constant 0 : i32
    return %c0_i32, %c0_i32_0 : i32, i32
  }
  func.func @transform_3(%arg0: i32) -> (i32, i32) {
    %c0_i32 = arith.constant 0 : i32
    %c0_i32_0 = arith.constant 0 : i32
    %c0_i32_1 = arith.constant 0 : i32
    return %c0_i32, %c0_i32_0 : i32, i32
  }
  func.func @transform_4(%arg0: i32) -> (i32, i32) {
    %c0_i32 = arith.constant 0 : i32
    %c0_i32_0 = arith.constant 0 : i32
    %c0_i32_1 = arith.constant 0 : i32
    return %c0_i32, %c0_i32_0 : i32, i32
  }
  func.func @transform_5(%arg0: i32) -> (i32, i32, i32) {
    %c0_i32 = arith.constant 0 : i32
    %c0_i32_0 = arith.constant 0 : i32
    %c0_i32_1 = arith.constant 0 : i32
    %c0_i32_2 = arith.constant 0 : i32
    return %c0_i32, %c0_i32_0, %c0_i32_1 : i32, i32, i32
  }
  func.func @transform_6(%arg0: i32) -> (i32, i32) {
    %c0_i32 = arith.constant 0 : i32
    %c0_i32_0 = arith.constant 0 : i32
    return %arg0, %c0_i32 : i32, i32
  }
  func.func @transform_7(%arg0: i32) -> (i32, i32, i32, i32) {
    %c0_i32 = arith.constant 0 : i32
    %c0_i32_0 = arith.constant 0 : i32
    %c0_i32_1 = arith.constant 0 : i32
    %c0_i32_2 = arith.constant 0 : i32
    return %arg0, %c0_i32, %c0_i32_0, %c0_i32_1 : i32, i32, i32, i32
  }
}

</mosaic_0001>

<llo_original>
// kernel: tpu_custom_call.1
$region0: #{tpu_custom_call.1}
  #allocation0 [shape = 'u32[]', space=smem, size = 0x4, offset = 0x4, fixed_abs, tag = 'smem constant byte address 0x4 - core index']
  #allocation1 [shape = 'u32[144,128]{1,0:T(1,128)}', space=vmem, size = 0x12000, scoped, tag = 'internal scratch']
  %s0 = inlined_call_operand.vmem [shape: f32[256,32], index: 0, kind: input, shape index: {}]
  %s1 = inlined_call_operand.vmem [shape: bf16[32,96], index: 1, kind: input, shape index: {}]
  %s2 = inlined_call_operand.vmem [shape: f32[1,96], index: 2, kind: input, shape index: {}]
  %s3 = inlined_call_operand.vmem [shape: bf16[32,32], index: 3, kind: input, shape index: {}]
  %s4 = inlined_call_operand.vmem [shape: f32[1,32], index: 4, kind: input, shape index: {}]
  %s5 = inlined_call_operand.vmem [shape: f32[4,16,16], index: 5, kind: input, shape index: {}]
  %s6 = inlined_call_operand.vmem [shape: f32[256,32], index: 6, kind: output, shape index: {0}]
  %s7 = inlined_call_operand.hbm [shape: f32[16,4,16,16], index: 7, kind: output, shape index: {1}]
  %8 = xla_tuple %s6, %s7
  %s9 = sld [smem:[#allocation0]]
  $region65: #{tpu_custom_call.1} parent=0
    _
  %s11 = ssub.s32 1, %s9
  %s12 = scalar_select 0, %s11, %s9
  $region1: #{tpu_custom_call.1} parent=0
    #allocation2 [shape = 'u8[524288]{0}', space=vmem, size = 0x80000, scoped, tag = 'output window, operand 1']
    #allocation3 [shape = 's32[2]{0}', space=sflag, size = 0x8, scoped, tag = 'scoped memory for tpu_custom_call.1']
    %13 = vsyncpa [#allocation3], 0
    %s14 = scalar_lea.sflag [#allocation3], 1
    %15 = vsyncpa %s14, 0
    loop: start=0, step=1, limit=4
    $region2: #{tpu_custom_call.1} parent=1 // loop_pre_header
      _
    $region3: #{tpu_custom_call.1} parent=1 // loop_header
      %s17 = sphi 0, %s21
      %p18 = scmp.ge.s32.totalorder %s17, 4
      %s27 = sphi 0, %s29
      %s30 = sphi 0, %s27
      %s31 = sphi 0, %s30
      %s47 = sphi 0, %s31
      %s51 = sphi 0, %s51
      %s53 = sphi 0, %s51
      %s54 = sphi 0, %s53
      %s68 = sphi 0, %s54
      %s72 = sphi 0, %s72
      %s74 = sphi 0, %s72
      %s75 = sphi 0, %s74
      %s89 = sphi 0, %s75
      %s93 = sphi 0, %s93
      %s95 = sphi 0, %s93
      %s96 = sphi 0, %s95
      %s110 = sphi 0, %s96
      %s114 = sphi 0, %s114
      %s116 = sphi 0, %s114
      %s117 = sphi 0, %s116
      %s131 = sphi 0, %s117
      %s135 = sphi 0, %s135
      %s137 = sphi 0, %s135
      %s138 = sphi 0, %s137
      %s152 = sphi 0, %s138
      %s158 = sphi 0, %s160
      %s161 = sphi 0, %s158
      %s162 = sphi 0, %s161
      %s178 = sphi 0, %s162
      %s184 = sphi 0, %s186
      %s187 = sphi 0, %s184
      %s188 = sphi 0, %s187
      %s204 = sphi 0, %s188
    $region4: #{tpu_custom_call.1} parent=1 // loop_header_branch
      %20 = sbr.rel (%p18) target = $region8
    $region5: #{tpu_custom_call.1} parent=1 // loop_body
      %s22 = ssub.s32 %s17, 1
      %s23 = ssub.s32 %s17, 2
      %s24 = sadd.s32 %s17, 1
      %s25 = ssub.s32 %s17, %s24
      %p26 = scmp.eq.s32.totalorder %s25, 0
      %s28 = sadd.s32 %s27, 1
      %s29 = scalar_select %p26, %s27, %s28
      %p32 = pneg %p26
      %p33 = scmp.eq.s32.totalorder %s17, 1
      %p34 = por %p32, %p33
      %p35 = scmp.ne.s32.totalorder %s27, %s30
      %p36 = scmp.eq.s32.totalorder %s17, 0
      %p37 = por %p35, %p36
      %p38 = scmp.ne.s32.totalorder %s27, %s30
      %p39 = scmp.eq.s32.totalorder %s22, 1
      %p40 = por %p38, %p39
      %p41 = scmp.ne.s32.totalorder %s30, %s31
      %p42 = scmp.eq.s32.totalorder %s22, 0
      %p43 = por %p41, %p42
      %p44 = scmp.ne.s32.totalorder %s30, %s31
      %p45 = scmp.eq.s32.totalorder %s23, 1
      %p46 = por %p44, %p45
      %p48 = scmp.ne.s32.totalorder %s31, %s47
      %p49 = scmp.eq.s32.totalorder %s23, 0
      %p50 = por %p48, %p49
      %s52 = sadd.s32 %s51, 1
      %p55 = scmp.eq.s32.totalorder %s17, 1
      %p56 = scmp.ne.s32.totalorder %s51, %s53
      %p57 = scmp.eq.s32.totalorder %s17, 0
      %p58 = por %p56, %p57
      %p59 = scmp.ne.s32.totalorder %s51, %s53
      %p60 = scmp.eq.s32.totalorder %s22, 1
      %p61 = por %p59, %p60
      %p62 = scmp.ne.s32.totalorder %s53, %s54
      %p63 = scmp.eq.s32.totalorder %s22, 0
      %p64 = por %p62, %p63
      %p65 = scmp.ne.s32.totalorder %s53, %s54
      %p66 = scmp.eq.s32.totalorder %s23, 1
      %p67 = por %p65, %p66
      %p69 = scmp.ne.s32.totalorder %s54, %s68
      %p70 = scmp.eq.s32.totalorder %s23, 0
      %p71 = por %p69, %p70
      %s73 = sadd.s32 %s72, 1
      %p76 = scmp.eq.s32.totalorder %s17, 1
      %p77 = scmp.ne.s32.totalorder %s72, %s74
      %p78 = scmp.eq.s32.totalorder %s17, 0
      %p79 = por %p77, %p78
      %p80 = scmp.ne.s32.totalorder %s72, %s74
      %p81 = scmp.eq.s32.totalorder %s22, 1
      %p82 = por %p80, %p81
      %p83 = scmp.ne.s32.totalorder %s74, %s75
      %p84 = scmp.eq.s32.totalorder %s22, 0
      %p85 = por %p83, %p84
      %p86 = scmp.ne.s32.totalorder %s74, %s75
      %p87 = scmp.eq.s32.totalorder %s23, 1
      %p88 = por %p86, %p87
      %p90 = scmp.ne.s32.totalorder %s75, %s89
      %p91 = scmp.eq.s32.totalorder %s23, 0
      %p92 = por %p90, %p91
      %s94 = sadd.s32 %s93, 1
      %p97 = scmp.eq.s32.totalorder %s17, 1
      %p98 = scmp.ne.s32.totalorder %s93, %s95
      %p99 = scmp.eq.s32.totalorder %s17, 0
      %p100 = por %p98, %p99
      %p101 = scmp.ne.s32.totalorder %s93, %s95
      %p102 = scmp.eq.s32.totalorder %s22, 1
      %p103 = por %p101, %p102
      %p104 = scmp.ne.s32.totalorder %s95, %s96
      %p105 = scmp.eq.s32.totalorder %s22, 0
      %p106 = por %p104, %p105
      %p107 = scmp.ne.s32.totalorder %s95, %s96
      %p108 = scmp.eq.s32.totalorder %s23, 1
      %p109 = por %p107, %p108
      %p111 = scmp.ne.s32.totalorder %s96, %s110
      %p112 = scmp.eq.s32.totalorder %s23, 0
      %p113 = por %p111, %p112
      %s115 = sadd.s32 %s114, 1
      %p118 = scmp.eq.s32.totalorder %s17, 1
      %p119 = scmp.ne.s32.totalorder %s114, %s116
      %p120 = scmp.eq.s32.totalorder %s17, 0
      %p121 = por %p119, %p120
      %p122 = scmp.ne.s32.totalorder %s114, %s116
      %p123 = scmp.eq.s32.totalorder %s22, 1
      %p124 = por %p122, %p123
      %p125 = scmp.ne.s32.totalorder %s116, %s117
      %p126 = scmp.eq.s32.totalorder %s22, 0
      %p127 = por %p125, %p126
      %p128 = scmp.ne.s32.totalorder %s116, %s117
      %p129 = scmp.eq.s32.totalorder %s23, 1
      %p130 = por %p128, %p129
      %p132 = scmp.ne.s32.totalorder %s117, %s131
      %p133 = scmp.eq.s32.totalorder %s23, 0
      %p134 = por %p132, %p133
      %s136 = sadd.s32 %s135, 1
      %p139 = scmp.eq.s32.totalorder %s17, 1
      %p140 = scmp.ne.s32.totalorder %s135, %s137
      %p141 = scmp.eq.s32.totalorder %s17, 0
      %p142 = por %p140, %p141
      %p143 = scmp.ne.s32.totalorder %s135, %s137
      %p144 = scmp.eq.s32.totalorder %s22, 1
      %p145 = por %p143, %p144
      %p146 = scmp.ne.s32.totalorder %s137, %s138
      %p147 = scmp.eq.s32.totalorder %s22, 0
      %p148 = por %p146, %p147
      %p149 = scmp.ne.s32.totalorder %s137, %s138
      %p150 = scmp.eq.s32.totalorder %s23, 1
      %p151 = por %p149, %p150
      %p153 = scmp.ne.s32.totalorder %s138, %s152
      %p154 = scmp.eq.s32.totalorder %s23, 0
      %p155 = por %p153, %p154
      %s156 = ssub.s32 %s17, %s24
      %p157 = scmp.eq.s32.totalorder %s156, 0
      %s159 = sadd.s32 %s158, 1
      %s160 = scalar_select %p157, %s158, %s159
      %p163 = pneg %p157
      %p164 = scmp.eq.s32.totalorder %s17, 1
      %p165 = por %p163, %p164
      %p166 = scmp.ne.s32.totalorder %s158, %s161
      %p167 = scmp.eq.s32.totalorder %s17, 0
      %p168 = por %p166, %p167
      %p169 = scmp.ne.s32.totalorder %s158, %s161
      %p170 = scmp.eq.s32.totalorder %s22, 1
      %p171 = por %p169, %p170
      %p172 = scmp.ne.s32.totalorder %s161, %s162
      %p173 = scmp.eq.s32.totalorder %s22, 0
      %p174 = por %p172, %p173
      %p175 = scmp.ne.s32.totalorder %s161, %s162
      %p176 = scmp.eq.s32.totalorder %s23, 1
      %p177 = por %p175, %p176
      %p179 = scmp.ne.s32.totalorder %s162, %s178
      %p180 = scmp.eq.s32.totalorder %s23, 0
      %p181 = por %p179, %p180
      %s182 = ssub.s32 %s17, %s24
      %p183 = scmp.eq.s32.totalorder %s182, 0
      %s185 = sadd.s32 %s184, 1
      %s186 = scalar_select %p183, %s184, %s185
      %p189 = pneg %p183
      %p190 = scmp.eq.s32.totalorder %s17, 1
      %p191 = por %p189, %p190
      %p192 = scmp.ne.s32.totalorder %s184, %s187
      %p193 = scmp.eq.s32.totalorder %s17, 0
      %p194 = por %p192, %p193
      %p195 = scmp.ne.s32.totalorder %s184, %s187
      %p196 = scmp.eq.s32.totalorder %s22, 1
      %p197 = por %p195, %p196
      %p198 = scmp.ne.s32.totalorder %s187, %s188
      %p199 = scmp.eq.s32.totalorder %s22, 0
      %p200 = por %p198, %p199
      %p201 = scmp.ne.s32.totalorder %s187, %s188
      %p202 = scmp.eq.s32.totalorder %s23, 1
      %p203 = por %p201, %p202
      %p205 = scmp.ne.s32.totalorder %s188, %s204
      %p206 = scmp.eq.s32.totalorder %s23, 0
      %p207 = por %p205, %p206
      %p208 = scmp.le.s32.totalorder 1, %s17
      %p209 = scmp.lt.s32.totalorder %s17, 3
      %p210 = pnand %p208, %p209
      %p211 = pneg %p210
      // Predicated region
      $region9: #{tpu_custom_call.1} parent=5 // pred_check
        _
      $region10: #{tpu_custom_call.1} parent=5 // pred_check_branch
        %213 = sbr.rel (%p210) target = $region12
      $region11: #{tpu_custom_call.1} parent=5 // pred_region
        %s214 = ssub.s32 %s17, 1
        // Predicated region
        $region13: #{tpu_custom_call.1} parent=11 // pred_check
          %p215 = pneg %p64
        $region14: #{tpu_custom_call.1} parent=11 // pred_check_branch
          %217 = sbr.rel (%p215) target = $region16
        $region15: #{tpu_custom_call.1} parent=11 // pred_region
          _
        $region16: #{tpu_custom_call.1} parent=11 // pred_fallthru
          _
        // Predicated region
        $region17: #{tpu_custom_call.1} parent=11 // pred_check
          %p218 = pneg %p85
        $region18: #{tpu_custom_call.1} parent=11 // pred_check_branch
          %220 = sbr.rel (%p218) target = $region20
        $region19: #{tpu_custom_call.1} parent=11 // pred_region
          _
        $region20: #{tpu_custom_call.1} parent=11 // pred_fallthru
          _
        // Predicated region
        $region21: #{tpu_custom_call.1} parent=11 // pred_check
          %p221 = pneg %p106
        $region22: #{tpu_custom_call.1} parent=11 // pred_check_branch
          %223 = sbr.rel (%p221) target = $region24
        $region23: #{tpu_custom_call.1} parent=11 // pred_region
          _
        $region24: #{tpu_custom_call.1} parent=11 // pred_fallthru
          _
        // Predicated region
        $region25: #{tpu_custom_call.1} parent=11 // pred_check
          %p224 = pneg %p127
        $region26: #{tpu_custom_call.1} parent=11 // pred_check_branch
          %226 = sbr.rel (%p224) target = $region28
        $region27: #{tpu_custom_call.1} parent=11 // pred_region
          _
        $region28: #{tpu_custom_call.1} parent=11 // pred_fallthru
          _
        // Predicated region
        $region29: #{tpu_custom_call.1} parent=11 // pred_check
          %p227 = pneg %p148
        $region30: #{tpu_custom_call.1} parent=11 // pred_check_branch
          %229 = sbr.rel (%p227) target = $region32
        $region31: #{tpu_custom_call.1} parent=11 // pred_region
          _
        $region32: #{tpu_custom_call.1} parent=11 // pred_fallthru
          _
      $region12: #{tpu_custom_call.1} parent=5 // pred_fallthru
        _
      %p230 = scmp.lt.s32.totalorder %s17, 2
      // Predicated region
      $region33: #{tpu_custom_call.1} parent=5 // pred_check
        %p231 = pneg %p230
      $region34: #{tpu_custom_call.1} parent=5 // pred_check_branch
        %233 = sbr.rel (%p231) target = $region36
      $region35: #{tpu_custom_call.1} parent=5 // pred_region
        // Predicated region
        $region37: #{tpu_custom_call.1} parent=35 // pred_check
          %p234 = pneg %p37
        $region38: #{tpu_custom_call.1} parent=35 // pred_check_branch
          %236 = sbr.rel (%p234) target = $region40
        $region39: #{tpu_custom_call.1} parent=35 // pred_region
          %s237 = smul.u32 16, %s17
          %p238 = scmp.lt.s32.totalorder %s237, 31
          %s239 = scalar_select %p238, %s237, 31
          %s240 = smul.addr %s239, 8
          %s241 = scalar_lea.vmem %s0, %s240
          %s242 = smul.u32 16, %s17
        $region40: #{tpu_custom_call.1} parent=35 // pred_fallthru
          _
      $region36: #{tpu_custom_call.1} parent=5 // pred_fallthru
        _
      %p243 = scmp.le.s32.totalorder 1, %s17
      %p244 = scmp.lt.s32.totalorder %s17, 3
      %p245 = pnand %p243, %p244
      %p246 = pneg %p245
      // Predicated region
      $region41: #{tpu_custom_call.1} parent=5 // pred_check
        _
      $region42: #{tpu_custom_call.1} parent=5 // pred_check_branch
        %248 = sbr.rel (%p245) target = $region44
      $region43: #{tpu_custom_call.1} parent=5 // pred_region
        %s249 = ssub.s32 %s17, 1
        %s250 = smul.u32 16, %s22
        %p251 = scmp.lt.s32.totalorder %s250, 31
        %s252 = scalar_select %p251, %s250, 31
        %s253 = smul.addr %s252, 8
        %s254 = scalar_lea.vmem %s0, %s253
        %p255 = pneg %p43
        %p256 = pneg %p40
        %p257 = pneg %p64
        %p258 = pneg %p61
        %p259 = pneg %p85
        %p260 = pneg %p82
        %p261 = pneg %p106
        %p262 = pneg %p103
        %p263 = pneg %p127
        %p264 = pneg %p124
        %p265 = pneg %p148
        %p266 = pneg %p145
        %p267 = pneg %p174
        %p268 = pneg %p171
        %s269 = smul.u32 16, %s22
        %p270 = scmp.lt.s32.totalorder %s269, 31
        %s271 = scalar_select %p270, %s269, 31
        %s272 = smul.addr %s271, 8
        %s273 = scalar_lea.vmem %s6, %s272
        %p274 = pneg %p200
        %p275 = pneg %p197
        %s276 = sand.u32 %s187, 1
        %s277 = scalar_lea.sflag [#allocation3], %s276
        %s278 = sand.u32 %s187, 1
        %s279 = smul.addr %s278, 512
        %s280 = scalar_lea.vmem [#allocation2], %s279
        %s281 = smul.u32 16, %s22
        %p282 = scmp.lt.s32.totalorder %s281, 31
        %s283 = scalar_select %p282, %s281, 31
        %s284 = smul.addr %s283, 8
        %s285 = scalar_lea.vmem %s0, %s284
        %s286 = smul.u32 16, %s22
        %s287 = smul.u32 16, %s22
        %p288 = scmp.lt.s32.totalorder %s287, 31
        %s289 = scalar_select %p288, %s287, 31
        %s290 = smul.addr %s289, 8
        %s291 = scalar_lea.vmem %s6, %s290
        %s292 = smul.u32 16, %s22
        %s293 = smul.u32 8, %s22
        %v295 = vld [vmem:[%s285] sm:$0xff]
        %v296 = vld [vmem:[%s285 + $0x8] sm:$0xff]
        %v297 = vld [vmem:[%s285 + $0x10] sm:$0xff]
        %v298 = vld [vmem:[%s285 + $0x18] sm:$0xff]
        %v299 = vld [vmem:[%s285 + $0x20] sm:$0xff]
        %v300 = vld [vmem:[%s285 + $0x28] sm:$0xff]
        %v301 = vld [vmem:[%s285 + $0x30] sm:$0xff]
        %v302 = vld [vmem:[%s285 + $0x38] sm:$0xff]
        %v303 = vld [vmem:[%s285 + $0x40] sm:$0xff]
        %v304 = vld [vmem:[%s285 + $0x48] sm:$0xff]
        %v305 = vld [vmem:[%s285 + $0x50] sm:$0xff]
        %v306 = vld [vmem:[%s285 + $0x58] sm:$0xff]
        %v307 = vld [vmem:[%s285 + $0x60] sm:$0xff]
        %v308 = vld [vmem:[%s285 + $0x68] sm:$0xff]
        %v309 = vld [vmem:[%s285 + $0x70] sm:$0xff]
        %v310 = vld [vmem:[%s285 + $0x78] sm:$0xff]
        %v311 = vpack.c.bf16 %v296, %v295
        %v312 = vpack.c.bf16 %v298, %v297
        %v313 = vpack.c.bf16 %v300, %v299
        %v314 = vpack.c.bf16 %v302, %v301
        %v315 = vpack.c.bf16 %v304, %v303
        %v316 = vpack.c.bf16 %v306, %v305
        %v317 = vpack.c.bf16 %v308, %v307
        %v318 = vpack.c.bf16 %v310, %v309
        %v319 = vld [vmem:[%s1] sm:$0xf]
        %v320 = vld [vmem:[%s1 + $0x4] sm:$0xf]
        %v321 = vld [vmem:[%s1 + $0x8] sm:$0xf]
        %v322 = vld [vmem:[%s1 + $0xc] sm:$0xf]
        %v323 = vld [vmem:[%s2] sm:$0x1]
        %v325 = vlaneseq
        %v326 = vshrl.u32 %v325, 7
        %v327 = vsub.s32 0, %v326
        %v328 = vrot.slane %v323, %v327
        %v334 = vunpack.c.l.b16 %v319
        %v335 = vunpack.c.l.b16 %v320
        %v336 = vunpack.c.l.b16 %v321
        %v337 = vunpack.c.l.b16 %v322
        %v338 = vpack.c.b16 %v335, %v334
        %v339 = vpack.c.b16 %v337, %v336
        %vm342 = vcmask 261120
        %v344 = vsel %vm342, %v311, 0
        %v347 = vsel %vm342, %v312, 0
        %v350 = vsel %vm342, %v313, 0
        %v353 = vsel %vm342, %v314, 0
        %v356 = vsel %vm342, %v315, 0
        %v359 = vsel %vm342, %v316, 0
        %v362 = vsel %vm342, %v317, 0
        %v365 = vsel %vm342, %v318, 0
        %367 = vmatprep.subr.bf16.mxu0 0
        %368 = vmatpush1.bf16.msra.mxu0 %v338
        %369 = vmatprep.subr.bf16.mxu0 0
        %370 = vmatpush1.bf16.msra.mxu0 %v339
        %371 = vmatprep.subr.bf16.mxu0 0
        %372 = vmatpush1.bf16.msra.mxu0 0
        %373 = vmatprep.subr.bf16.mxu0 0
        %374 = vmatpush1.bf16.msra.mxu0 0
        %375 = vmatprep.subr.bf16.mxu0 0
        %376 = vmatpush1.bf16.msra.mxu0 0
        %377 = vmatprep.subr.bf16.mxu0 0
        %378 = vmatpush1.bf16.msra.mxu0 0
        %379 = vmatprep.subr.bf16.mxu0 0
        %380 = vmatpush1.bf16.msra.mxu0 0
        %381 = vmatprep.subr.bf16.mxu0 0
        %382 = vmatpush1.bf16.msra.mxu0 0
        %383 = vmatprep.subr.bf16.mxu0 0
        %384 = vmatpush1.bf16.msra.mxu0 0
        %385 = vmatprep.subr.bf16.mxu0 0
        %386 = vmatpush1.bf16.msra.mxu0 0
        %387 = vmatprep.subr.bf16.mxu0 0
        %388 = vmatpush1.bf16.msra.mxu0 0
        %389 = vmatprep.subr.bf16.mxu0 0
        %390 = vmatpush1.bf16.msra.mxu0 0
        %391 = vmatprep.subr.bf16.mxu0 0
        %392 = vmatpush1.bf16.msra.mxu0 0
        %393 = vmatprep.subr.bf16.mxu0 0
        %394 = vmatpush1.bf16.msra.mxu0 0
        %395 = vmatprep.subr.bf16.mxu0 0
        %396 = vmatpush1.bf16.msra.mxu0 0
        %397 = vmatprep.subr.bf16.mxu0 0
        %398 = vmatpush1.bf16.msra.mxu0 0
        %399 = vmatprep.mubr.bf16.mxu0 0
        %400 = vmatmul.mubr.bf16.gmra.mrb[0].mxu0 %v344
        %v401 = vpop.f32.mrb[0].mxu0
        %v402 = vadd.f32 %v328, %v401
        %v403 = vpop.f32.mrb[0].mxu0
        %v404 = vpop.f32.mrb[0].mxu0
        %v405 = vadd.f32 %v328, %v404
        %v406 = vpop.f32.mrb[0].mxu0
        %407 = vmatprep.mubr.bf16.mxu0 0
        %408 = vmatmul.mubr.bf16.gmra.mrb[0].mxu0 %v347
        %v409 = vpop.f32.mrb[0].mxu0
        %v410 = vadd.f32 %v328, %v409
        %v411 = vpop.f32.mrb[0].mxu0
        %v412 = vpop.f32.mrb[0].mxu0
        %v413 = vadd.f32 %v328, %v412
        %v414 = vpop.f32.mrb[0].mxu0
        %415 = vmatprep.mubr.bf16.mxu0 0
        %416 = vmatmul.mubr.bf16.gmra.mrb[0].mxu0 %v350
        %v417 = vpop.f32.mrb[0].mxu0
        %v418 = vadd.f32 %v328, %v417
        %v419 = vpop.f32.mrb[0].mxu0
        %v420 = vpop.f32.mrb[0].mxu0
        %v421 = vadd.f32 %v328, %v420
        %v422 = vpop.f32.mrb[0].mxu0
        %423 = vmatprep.mubr.bf16.mxu0 0
        %424 = vmatmul.mubr.bf16.gmra.mrb[0].mxu0 %v353
        %v425 = vpop.f32.mrb[0].mxu0
        %v426 = vadd.f32 %v328, %v425
        %v427 = vpop.f32.mrb[0].mxu0
        %v428 = vpop.f32.mrb[0].mxu0
        %v429 = vadd.f32 %v328, %v428
        %v430 = vpop.f32.mrb[0].mxu0
        %431 = vmatprep.mubr.bf16.mxu0 0
        %432 = vmatmul.mubr.bf16.gmra.mrb[0].mxu0 %v356
        %v433 = vpop.f32.mrb[0].mxu0
        %v434 = vadd.f32 %v328, %v433
        %v435 = vpop.f32.mrb[0].mxu0
        %v436 = vpop.f32.mrb[0].mxu0
        %v437 = vadd.f32 %v328, %v436
        %v438 = vpop.f32.mrb[0].mxu0
        %439 = vmatprep.mubr.bf16.mxu0 0
        %440 = vmatmul.mubr.bf16.gmra.mrb[0].mxu0 %v359
        %v441 = vpop.f32.mrb[0].mxu0
        %v442 = vadd.f32 %v328, %v441
        %v443 = vpop.f32.mrb[0].mxu0
        %v444 = vpop.f32.mrb[0].mxu0
        %v445 = vadd.f32 %v328, %v444
        %v446 = vpop.f32.mrb[0].mxu0
        %447 = vmatprep.mubr.bf16.mxu0 0
        %448 = vmatmul.mubr.bf16.gmra.mrb[0].mxu0 %v362
        %v449 = vpop.f32.mrb[0].mxu0
        %v450 = vadd.f32 %v328, %v449
        %v451 = vpop.f32.mrb[0].mxu0
        %v452 = vpop.f32.mrb[0].mxu0
        %v453 = vadd.f32 %v328, %v452
        %v454 = vpop.f32.mrb[0].mxu0
        %455 = vmatprep.mubr.bf16.mxu0 0
        %456 = vmatmul.mubr.bf16.gmra.mrb[0].mxu0 %v365
        %v457 = vpop.f32.mrb[0].mxu0
        %v458 = vadd.f32 %v328, %v457
        %v459 = vpop.f32.mrb[0].mxu0
        %v460 = vpop.f32.mrb[0].mxu0
        %v461 = vadd.f32 %v328, %v460
        %v462 = vpop.f32.mrb[0].mxu0
        %463 = vdwg.mxu0
        %v464 = vld [vmem:[%s3] sm:$0xf]
        %v465 = vld [vmem:[%s3 + $0x4] sm:$0xf]
        %v466 = vld [vmem:[%s3 + $0x8] sm:$0xf]
        %v467 = vld [vmem:[%s3 + $0xc] sm:$0xf]
        %v468 = vld [vmem:[%s5] sm:$0xff]
        %v469 = vld [vmem:[%s5 + $0x8] sm:$0xff]
        %v470 = vld [vmem:[%s5 + $0x10] sm:$0xff]
        %v471 = vld [vmem:[%s5 + $0x18] sm:$0xff]
        %v472 = vld [vmem:[%s5 + $0x20] sm:$0xff]
        %v473 = vld [vmem:[%s5 + $0x28] sm:$0xff]
        %v474 = vld [vmem:[%s5 + $0x30] sm:$0xff]
        %v475 = vld [vmem:[%s5 + $0x38] sm:$0xff]
        %v476 = vpack.c.bf16 %v405, %v402
        %v477 = vpack.c.bf16 %v413, %v410
        %v478 = vpack.c.bf16 %v421, %v418
        %v479 = vpack.c.bf16 %v429, %v426
        %v480 = vpack.c.bf16 %v437, %v434
        %v481 = vpack.c.bf16 %v445, %v442
        %v482 = vpack.c.bf16 %v453, %v450
        %v483 = vpack.c.bf16 %v461, %v458
        %485 = vrot.lane.b32.xlu0 %v476, 96
        %v486 = vpop.permute.xlu0 %485
        %vm487 = vcmask 64512
        %v489 = vsel %vm487, %v476, 0
        %v492 = vsel %vm487, %v486, 0
        %494 = vmatprep.subr.bf16.mxu0 0
        %495 = vmatpush1.bf16.xpose.msra.mxu0 %v492
        %496 = vmatprep.subr.bf16.mxu0 0
        %497 = vmatpush1.bf16.xpose.msra.mxu0 0
        %498 = vmatprep.subr.bf16.mxu0 0
        %499 = vmatpush1.bf16.xpose.msra.mxu0 0
        %500 = vmatprep.subr.bf16.mxu0 0
        %501 = vmatpush1.bf16.xpose.msra.mxu0 0
        %502 = vmatprep.subr.bf16.mxu0 0
        %503 = vmatpush1.bf16.xpose.msra.mxu0 0
        %504 = vmatprep.subr.bf16.mxu0 0
        %505 = vmatpush1.bf16.xpose.msra.mxu0 0
        %506 = vmatprep.subr.bf16.mxu0 0
        %507 = vmatpush1.bf16.xpose.msra.mxu0 0
        %508 = vmatprep.subr.bf16.mxu0 0
        %509 = vmatpush1.bf16.xpose.msra.mxu0 0
        %510 = vmatprep.subr.bf16.mxu0 0
        %511 = vmatpush1.bf16.xpose.msra.mxu0 0
        %512 = vmatprep.subr.bf16.mxu0 0
        %513 = vmatpush1.bf16.xpose.msra.mxu0 0
        %514 = vmatprep.subr.bf16.mxu0 0
        %515 = vmatpush1.bf16.xpose.msra.mxu0 0
        %516 = vmatprep.subr.bf16.mxu0 0
        %517 = vmatpush1.bf16.xpose.msra.mxu0 0
        %518 = vmatprep.subr.bf16.mxu0 0
        %519 = vmatpush1.bf16.xpose.msra.mxu0 0
        %520 = vmatprep.subr.bf16.mxu0 0
        %521 = vmatpush1.bf16.xpose.msra.mxu0 0
        %522 = vmatprep.subr.bf16.mxu0 0
        %523 = vmatpush1.bf16.xpose.msra.mxu0 0
        %524 = vmatprep.subr.bf16.mxu0 0
        %525 = vmatpush1.bf16.xpose.msra.mxu0 0
        %526 = vmatprep.mubr.bf16.mxu0 0
        %527 = vmatmul.mubr.bf16.gmra.mrb[0].mxu0 %v489
        %v528 = vpop.f32.mrb[0].mxu0
        %v529 = vadd.f32 %v468, %v528
        %v530 = vpop.f32.mrb[0].mxu0
        %v531 = vpop.f32.mrb[0].mxu0
        %v532 = vadd.f32 %v469, %v531
        %v533 = vpop.f32.mrb[0].mxu0
        %534 = vdwg.mxu0
        %536 = vrot.lane.b32.xlu0 %v477, 96
        %v537 = vpop.permute.xlu0 %536
        %v539 = vsel %vm487, %v477, 0
        %v542 = vsel %vm487, %v537, 0
        %544 = vmatprep.subr.bf16.mxu0 0
        %545 = vmatpush1.bf16.xpose.msra.mxu0 %v542
        %546 = vmatprep.subr.bf16.mxu0 0
        %547 = vmatpush1.bf16.xpose.msra.mxu0 0
        %548 = vmatprep.subr.bf16.mxu0 0
        %549 = vmatpush1.bf16.xpose.msra.mxu0 0
        %550 = vmatprep.subr.bf16.mxu0 0
        %551 = vmatpush1.bf16.xpose.msra.mxu0 0
        %552 = vmatprep.subr.bf16.mxu0 0
        %553 = vmatpush1.bf16.xpose.msra.mxu0 0
        %554 = vmatprep.subr.bf16.mxu0 0
        %555 = vmatpush1.bf16.xpose.msra.mxu0 0
        %556 = vmatprep.subr.bf16.mxu0 0
        %557 = vmatpush1.bf16.xpose.msra.mxu0 0
        %558 = vmatprep.subr.bf16.mxu0 0
        %559 = vmatpush1.bf16.xpose.msra.mxu0 0
        %560 = vmatprep.subr.bf16.mxu0 0
        %561 = vmatpush1.bf16.xpose.msra.mxu0 0
        %562 = vmatprep.subr.bf16.mxu0 0
        %563 = vmatpush1.bf16.xpose.msra.mxu0 0
        %564 = vmatprep.subr.bf16.mxu0 0
        %565 = vmatpush1.bf16.xpose.msra.mxu0 0
        %566 = vmatprep.subr.bf16.mxu0 0
        %567 = vmatpush1.bf16.xpose.msra.mxu0 0
        %568 = vmatprep.subr.bf16.mxu0 0
        %569 = vmatpush1.bf16.xpose.msra.mxu0 0
        %570 = vmatprep.subr.bf16.mxu0 0
        %571 = vmatpush1.bf16.xpose.msra.mxu0 0
        %572 = vmatprep.subr.bf16.mxu0 0
        %573 = vmatpush1.bf16.xpose.msra.mxu0 0
        %574 = vmatprep.subr.bf16.mxu0 0
        %575 = vmatpush1.bf16.xpose.msra.mxu0 0
        %576 = vmatprep.mubr.bf16.mxu0 0
        %577 = vmatmul.mubr.bf16.gmra.mrb[0].mxu0 %v539
        %v578 = vpop.f32.mrb[0].mxu0
        %v579 = vadd.f32 %v468, %v578
        %v580 = vpop.f32.mrb[0].mxu0
        %v581 = vpop.f32.mrb[0].mxu0
        %v582 = vadd.f32 %v469, %v581
        %v583 = vpop.f32.mrb[0].mxu0
        %584 = vdwg.mxu0
        %586 = vrot.lane.b32.xlu0 %v478, 96
        %v587 = vpop.permute.xlu0 %586
        %v589 = vsel %vm487, %v478, 0
        %v592 = vsel %vm487, %v587, 0
        %594 = vmatprep.subr.bf16.mxu0 0
        %595 = vmatpush1.bf16.xpose.msra.mxu0 %v592
        %596 = vmatprep.subr.bf16.mxu0 0
        %597 = vmatpush1.bf16.xpose.msra.mxu0 0
        %598 = vmatprep.subr.bf16.mxu0 0
        %599 = vmatpush1.bf16.xpose.msra.mxu0 0
        %600 = vmatprep.subr.bf16.mxu0 0
        %601 = vmatpush1.bf16.xpose.msra.mxu0 0
        %602 = vmatprep.subr.bf16.mxu0 0
        %603 = vmatpush1.bf16.xpose.msra.mxu0 0
        %604 = vmatprep.subr.bf16.mxu0 0
        %605 = vmatpush1.bf16.xpose.msra.mxu0 0
        %606 = vmatprep.subr.bf16.mxu0 0
        %607 = vmatpush1.bf16.xpose.msra.mxu0 0
        %608 = vmatprep.subr.bf16.mxu0 0
        %609 = vmatpush1.bf16.xpose.msra.mxu0 0
        %610 = vmatprep.subr.bf16.mxu0 0
        %611 = vmatpush1.bf16.xpose.msra.mxu0 0
        %612 = vmatprep.subr.bf16.mxu0 0
        %613 = vmatpush1.bf16.xpose.msra.mxu0 0
        %614 = vmatprep.subr.bf16.mxu0 0
        %615 = vmatpush1.bf16.xpose.msra.mxu0 0
        %616 = vmatprep.subr.bf16.mxu0 0
        %617 = vmatpush1.bf16.xpose.msra.mxu0 0
        %618 = vmatprep.subr.bf16.mxu0 0
        %619 = vmatpush1.bf16.xpose.msra.mxu0 0
        %620 = vmatprep.subr.bf16.mxu0 0
        %621 = vmatpush1.bf16.xpose.msra.mxu0 0
        %622 = vmatprep.subr.bf16.mxu0 0
        %623 = vmatpush1.bf16.xpose.msra.mxu0 0
        %624 = vmatprep.subr.bf16.mxu0 0
        %625 = vmatpush1.bf16.xpose.msra.mxu0 0
        %626 = vmatprep.mubr.bf16.mxu0 0
        %627 = vmatmul.mubr.bf16.gmra.mrb[0].mxu0 %v589
        %v628 = vpop.f32.mrb[0].mxu0
        %v629 = vadd.f32 %v468, %v628
        %v630 = vpop.f32.mrb[0].mxu0
        %v631 = vpop.f32.mrb[0].mxu0
        %v632 = vadd.f32 %v469, %v631
        %v633 = vpop.f32.mrb[0].mxu0
        %634 = vdwg.mxu0
        %636 = vrot.lane.b32.xlu0 %v479, 96
        %v637 = vpop.permute.xlu0 %636
        %v639 = vsel %vm487, %v479, 0
        %v642 = vsel %vm487, %v637, 0
        %644 = vmatprep.subr.bf16.mxu0 0
        %645 = vmatpush1.bf16.xpose.msra.mxu0 %v642
        %646 = vmatprep.subr.bf16.mxu0 0
        %647 = vmatpush1.bf16.xpose.msra.mxu0 0
        %648 = vmatprep.subr.bf16.mxu0 0
        %649 = vmatpush1.bf16.xpose.msra.mxu0 0
        %650 = vmatprep.subr.bf16.mxu0 0
        %651 = vmatpush1.bf16.xpose.msra.mxu0 0
        %652 = vmatprep.subr.bf16.mxu0 0
        %653 = vmatpush1.bf16.xpose.msra.mxu0 0
        %654 = vmatprep.subr.bf16.mxu0 0
        %655 = vmatpush1.bf16.xpose.msra.mxu0 0
        %656 = vmatprep.subr.bf16.mxu0 0
        %657 = vmatpush1.bf16.xpose.msra.mxu0 0
        %658 = vmatprep.subr.bf16.mxu0 0
        %659 = vmatpush1.bf16.xpose.msra.mxu0 0
        %660 = vmatprep.subr.bf16.mxu0 0
        %661 = vmatpush1.bf16.xpose.msra.mxu0 0
        %662 = vmatprep.subr.bf16.mxu0 0
        %663 = vmatpush1.bf16.xpose.msra.mxu0 0
        %664 = vmatprep.subr.bf16.mxu0 0
        %665 = vmatpush1.bf16.xpose.msra.mxu0 0
        %666 = vmatprep.subr.bf16.mxu0 0
        %667 = vmatpush1.bf16.xpose.msra.mxu0 0
        %668 = vmatprep.subr.bf16.mxu0 0
        %669 = vmatpush1.bf16.xpose.msra.mxu0 0
        %670 = vmatprep.subr.bf16.mxu0 0
        %671 = vmatpush1.bf16.xpose.msra.mxu0 0
        %672 = vmatprep.subr.bf16.mxu0 0
        %673 = vmatpush1.bf16.xpose.msra.mxu0 0
        %674 = vmatprep.subr.bf16.mxu0 0
        %675 = vmatpush1.bf16.xpose.msra.mxu0 0
        %676 = vmatprep.mubr.bf16.mxu0 0
        %677 = vmatmul.mubr.bf16.gmra.mrb[0].mxu0 %v639
        %v678 = vpop.f32.mrb[0].mxu0
        %v679 = vadd.f32 %v468, %v678
        %v680 = vpop.f32.mrb[0].mxu0
        %v681 = vpop.f32.mrb[0].mxu0
        %v682 = vadd.f32 %v469, %v681
        %v683 = vpop.f32.mrb[0].mxu0
        %684 = vdwg.mxu0
        %686 = vrot.lane.b32.xlu0 %v480, 96
        %v687 = vpop.permute.xlu0 %686
        %v689 = vsel %vm487, %v480, 0
        %v692 = vsel %vm487, %v687, 0
        %694 = vmatprep.subr.bf16.mxu0 0
        %695 = vmatpush1.bf16.xpose.msra.mxu0 %v692
        %696 = vmatprep.subr.bf16.mxu0 0
        %697 = vmatpush1.bf16.xpose.msra.mxu0 0
        %698 = vmatprep.subr.bf16.mxu0 0
        %699 = vmatpush1.bf16.xpose.msra.mxu0 0
        %700 = vmatprep.subr.bf16.mxu0 0
        %701 = vmatpush1.bf16.xpose.msra.mxu0 0
        %702 = vmatprep.subr.bf16.mxu0 0
        %703 = vmatpush1.bf16.xpose.msra.mxu0 0
        %704 = vmatprep.subr.bf16.mxu0 0
        %705 = vmatpush1.bf16.xpose.msra.mxu0 0
        %706 = vmatprep.subr.bf16.mxu0 0
        %707 = vmatpush1.bf16.xpose.msra.mxu0 0
        %708 = vmatprep.subr.bf16.mxu0 0
        %709 = vmatpush1.bf16.xpose.msra.mxu0 0
        %710 = vmatprep.subr.bf16.mxu0 0
        %711 = vmatpush1.bf16.xpose.msra.mxu0 0
        %712 = vmatprep.subr.bf16.mxu0 0
        %713 = vmatpush1.bf16.xpose.msra.mxu0 0
        %714 = vmatprep.subr.bf16.mxu0 0
        %715 = vmatpush1.bf16.xpose.msra.mxu0 0
        %716 = vmatprep.subr.bf16.mxu0 0
        %717 = vmatpush1.bf16.xpose.msra.mxu0 0
        %718 = vmatprep.subr.bf16.mxu0 0
        %719 = vmatpush1.bf16.xpose.msra.mxu0 0
        %720 = vmatprep.subr.bf16.mxu0 0
        %721 = vmatpush1.bf16.xpose.msra.mxu0 0
        %722 = vmatprep.subr.bf16.mxu0 0
        %723 = vmatpush1.bf16.xpose.msra.mxu0 0
        %724 = vmatprep.subr.bf16.mxu0 0
        %725 = vmatpush1.bf16.xpose.msra.mxu0 0
        %726 = vmatprep.mubr.bf16.mxu0 0
        %727 = vmatmul.mubr.bf16.gmra.mrb[0].mxu0 %v689
        %v728 = vpop.f32.mrb[0].mxu0
        %v729 = vadd.f32 %v468, %v728
        %v730 = vpop.f32.mrb[0].mxu0
        %v731 = vpop.f32.mrb[0].mxu0
        %v732 = vadd.f32 %v469, %v731
        %v733 = vpop.f32.mrb[0].mxu0
        %734 = vdwg.mxu0
        %736 = vrot.lane.b32.xlu0 %v481, 96
        %v737 = vpop.permute.xlu0 %736
        %v739 = vsel %vm487, %v481, 0
        %v742 = vsel %vm487, %v737, 0
        %744 = vmatprep.subr.bf16.mxu0 0
        %745 = vmatpush1.bf16.xpose.msra.mxu0 %v742
        %746 = vmatprep.subr.bf16.mxu0 0
        %747 = vmatpush1.bf16.xpose.msra.mxu0 0
        %748 = vmatprep.subr.bf16.mxu0 0
        %749 = vmatpush1.bf16.xpose.msra.mxu0 0
        %750 = vmatprep.subr.bf16.mxu0 0
        %751 = vmatpush1.bf16.xpose.msra.mxu0 0
        %752 = vmatprep.subr.bf16.mxu0 0
        %753 = vmatpush1.bf16.xpose.msra.mxu0 0
        %754 = vmatprep.subr.bf16.mxu0 0
        %755 = vmatpush1.bf16.xpose.msra.mxu0 0
        %756 = vmatprep.subr.bf16.mxu0 0
        %757 = vmatpush1.bf16.xpose.msra.mxu0 0
        %758 = vmatprep.subr.bf16.mxu0 0
        %759 = vmatpush1.bf16.xpose.msra.mxu0 0
        %760 = vmatprep.subr.bf16.mxu0 0
        %761 = vmatpush1.bf16.xpose.msra.mxu0 0
        %762 = vmatprep.subr.bf16.mxu0 0
        %763 = vmatpush1.bf16.xpose.msra.mxu0 0
        %764 = vmatprep.subr.bf16.mxu0 0
        %765 = vmatpush1.bf16.xpose.msra.mxu0 0
        %766 = vmatprep.subr.bf16.mxu0 0
        %767 = vmatpush1.bf16.xpose.msra.mxu0 0
        %768 = vmatprep.subr.bf16.mxu0 0
        %769 = vmatpush1.bf16.xpose.msra.mxu0 0
        %770 = vmatprep.subr.bf16.mxu0 0
        %771 = vmatpush1.bf16.xpose.msra.mxu0 0
        %772 = vmatprep.subr.bf16.mxu0 0
        %773 = vmatpush1.bf16.xpose.msra.mxu0 0
        %774 = vmatprep.subr.bf16.mxu0 0
        %775 = vmatpush1.bf16.xpose.msra.mxu0 0
        %776 = vmatprep.mubr.bf16.mxu0 0
        %777 = vmatmul.mubr.bf16.gmra.mrb[0].mxu0 %v739
        %v778 = vpop.f32.mrb[0].mxu0
        %v779 = vadd.f32 %v468, %v778
        %v780 = vpop.f32.mrb[0].mxu0
        %v781 = vpop.f32.mrb[0].mxu0
        %v782 = vadd.f32 %v469, %v781
        %v783 = vpop.f32.mrb[0].mxu0
        %784 = vdwg.mxu0
        %786 = vrot.lane.b32.xlu0 %v482, 96
        %v787 = vpop.permute.xlu0 %786
        %v789 = vsel %vm487, %v482, 0
        %v792 = vsel %vm487, %v787, 0
        %794 = vmatprep.subr.bf16.mxu0 0
        %795 = vmatpush1.bf16.xpose.msra.mxu0 %v792
        %796 = vmatprep.subr.bf16.mxu0 0
        %797 = vmatpush1.bf16.xpose.msra.mxu0 0
        %798 = vmatprep.subr.bf16.mxu0 0
        %799 = vmatpush1.bf16.xpose.msra.mxu0 0
        %800 = vmatprep.subr.bf16.mxu0 0
        %801 = vmatpush1.bf16.xpose.msra.mxu0 0
        %802 = vmatprep.subr.bf16.mxu0 0
        %803 = vmatpush1.bf16.xpose.msra.mxu0 0
        %804 = vmatprep.subr.bf16.mxu0 0
        %805 = vmatpush1.bf16.xpose.msra.mxu0 0
        %806 = vmatprep.subr.bf16.mxu0 0
        %807 = vmatpush1.bf16.xpose.msra.mxu0 0
        %808 = vmatprep.subr.bf16.mxu0 0
        %809 = vmatpush1.bf16.xpose.msra.mxu0 0
        %810 = vmatprep.subr.bf16.mxu0 0
        %811 = vmatpush1.bf16.xpose.msra.mxu0 0
        %812 = vmatprep.subr.bf16.mxu0 0
        %813 = vmatpush1.bf16.xpose.msra.mxu0 0
        %814 = vmatprep.subr.bf16.mxu0 0
        %815 = vmatpush1.bf16.xpose.msra.mxu0 0
        %816 = vmatprep.subr.bf16.mxu0 0
        %817 = vmatpush1.bf16.xpose.msra.mxu0 0
        %818 = vmatprep.subr.bf16.mxu0 0
        %819 = vmatpush1.bf16.xpose.msra.mxu0 0
        %820 = vmatprep.subr.bf16.mxu0 0
        %821 = vmatpush1.bf16.xpose.msra.mxu0 0
        %822 = vmatprep.subr.bf16.mxu0 0
        %823 = vmatpush1.bf16.xpose.msra.mxu0 0
        %824 = vmatprep.subr.bf16.mxu0 0
        %825 = vmatpush1.bf16.xpose.msra.mxu0 0
        %826 = vmatprep.mubr.bf16.mxu0 0
        %827 = vmatmul.mubr.bf16.gmra.mrb[0].mxu0 %v789
        %v828 = vpop.f32.mrb[0].mxu0
        %v829 = vadd.f32 %v468, %v828
        %v830 = vpop.f32.mrb[0].mxu0
        %v831 = vpop.f32.mrb[0].mxu0
        %v832 = vadd.f32 %v469, %v831
        %v833 = vpop.f32.mrb[0].mxu0
        %834 = vdwg.mxu0
        %836 = vrot.lane.b32.xlu0 %v483, 96
        %v837 = vpop.permute.xlu0 %836
        %v839 = vsel %vm487, %v483, 0
        %v842 = vsel %vm487, %v837, 0
        %844 = vmatprep.subr.bf16.mxu0 0
        %845 = vmatpush1.bf16.xpose.msra.mxu0 %v842
        %846 = vmatprep.subr.bf16.mxu0 0
        %847 = vmatpush1.bf16.xpose.msra.mxu0 0
        %848 = vmatprep.subr.bf16.mxu0 0
        %849 = vmatpush1.bf16.xpose.msra.mxu0 0
        %850 = vmatprep.subr.bf16.mxu0 0
        %851 = vmatpush1.bf16.xpose.msra.mxu0 0
        %852 = vmatprep.subr.bf16.mxu0 0
        %853 = vmatpush1.bf16.xpose.msra.mxu0 0
        %854 = vmatprep.subr.bf16.mxu0 0
        %855 = vmatpush1.bf16.xpose.msra.mxu0 0
        %856 = vmatprep.subr.bf16.mxu0 0
        %857 = vmatpush1.bf16.xpose.msra.mxu0 0
        %858 = vmatprep.subr.bf16.mxu0 0
        %859 = vmatpush1.bf16.xpose.msra.mxu0 0
        %860 = vmatprep.subr.bf16.mxu0 0
        %861 = vmatpush1.bf16.xpose.msra.mxu0 0
        %862 = vmatprep.subr.bf16.mxu0 0
        %863 = vmatpush1.bf16.xpose.msra.mxu0 0
        %864 = vmatprep.subr.bf16.mxu0 0
        %865 = vmatpush1.bf16.xpose.msra.mxu0 0
        %866 = vmatprep.subr.bf16.mxu0 0
        %867 = vmatpush1.bf16.xpose.msra.mxu0 0
        %868 = vmatprep.subr.bf16.mxu0 0
        %869 = vmatpush1.bf16.xpose.msra.mxu0 0
        %870 = vmatprep.subr.bf16.mxu0 0
        %871 = vmatpush1.bf16.xpose.msra.mxu0 0
        %872 = vmatprep.subr.bf16.mxu0 0
        %873 = vmatpush1.bf16.xpose.msra.mxu0 0
        %874 = vmatprep.subr.bf16.mxu0 0
        %875 = vmatpush1.bf16.xpose.msra.mxu0 0
        %876 = vmatprep.mubr.bf16.mxu0 0
        %877 = vmatmul.mubr.bf16.gmra.mrb[0].mxu0 %v839
        %v878 = vpop.f32.mrb[0].mxu0
        %v879 = vadd.f32 %v468, %v878
        %v880 = vpop.f32.mrb[0].mxu0
        %v881 = vpop.f32.mrb[0].mxu0
        %v882 = vadd.f32 %v469, %v881
        %v883 = vpop.f32.mrb[0].mxu0
        %884 = vdwg.mxu0
        %vm885 = vcmask 130048
        %v886 = vsel %vm885, %v529, -inf
        %887 = vmax.xlane.f32.xlu0 %v886
        %v888 = vpop.xlane.xlu0 %887
        %v889 = vsel %vm885, %v532, -inf
        %890 = vmax.xlane.f32.xlu0 %v889
        %v891 = vpop.xlane.xlu0 %890
        %v892 = vsel %vm885, %v579, -inf
        %893 = vmax.xlane.f32.xlu0 %v892
        %v894 = vpop.xlane.xlu0 %893
        %v895 = vsel %vm885, %v582, -inf
        %896 = vmax.xlane.f32.xlu0 %v895
        %v897 = vpop.xlane.xlu0 %896
        %v898 = vsel %vm885, %v629, -inf
        %899 = vmax.xlane.f32.xlu0 %v898
        %v900 = vpop.xlane.xlu0 %899
        %v901 = vsel %vm885, %v632, -inf
        %902 = vmax.xlane.f32.xlu0 %v901
        %v903 = vpop.xlane.xlu0 %902
        %v904 = vsel %vm885, %v679, -inf
        %905 = vmax.xlane.f32.xlu0 %v904
        %v906 = vpop.xlane.xlu0 %905
        %v907 = vsel %vm885, %v682, -inf
        %908 = vmax.xlane.f32.xlu0 %v907
        %v909 = vpop.xlane.xlu0 %908
        %v910 = vsel %vm885, %v729, -inf
        %911 = vmax.xlane.f32.xlu0 %v910
        %v912 = vpop.xlane.xlu0 %911
        %v913 = vsel %vm885, %v732, -inf
        %914 = vmax.xlane.f32.xlu0 %v913
        %v915 = vpop.xlane.xlu0 %914
        %v916 = vsel %vm885, %v779, -inf
        %917 = vmax.xlane.f32.xlu0 %v916
        %v918 = vpop.xlane.xlu0 %917
        %v919 = vsel %vm885, %v782, -inf
        %920 = vmax.xlane.f32.xlu0 %v919
        %v921 = vpop.xlane.xlu0 %920
        %v922 = vsel %vm885, %v829, -inf
        %923 = vmax.xlane.f32.xlu0 %v922
        %v924 = vpop.xlane.xlu0 %923
        %v925 = vsel %vm885, %v832, -inf
        %926 = vmax.xlane.f32.xlu0 %v925
        %v927 = vpop.xlane.xlu0 %926
        %v928 = vsel %vm885, %v879, -inf
        %929 = vmax.xlane.f32.xlu0 %v928
        %v930 = vpop.xlane.xlu0 %929
        %v931 = vsel %vm885, %v882, -inf
        %932 = vmax.xlane.f32.xlu0 %v931
        %v933 = vpop.xlane.xlu0 %932
        %v934 = vsub.f32 %v529, %v888
        %v935 = vsub.f32 %v532, %v891
        %v936 = vsub.f32 %v579, %v894
        %v937 = vsub.f32 %v582, %v897
        %v938 = vsub.f32 %v629, %v900
        %v939 = vsub.f32 %v632, %v903
        %v940 = vsub.f32 %v679, %v906
        %v941 = vsub.f32 %v682, %v909
        %v942 = vsub.f32 %v729, %v912
        %v943 = vsub.f32 %v732, %v915
        %v944 = vsub.f32 %v779, %v918
        %v945 = vsub.f32 %v782, %v921
        %v946 = vsub.f32 %v829, %v924
        %v947 = vsub.f32 %v832, %v927
        %v948 = vsub.f32 %v879, %v930
        %v949 = vsub.f32 %v882, %v933
        %v950 = vmul.f32 %v934, 1.442695
        %v951 = vpow.pop %v950
        %v952 = vmul.f32 %v935, 1.442695
        %v953 = vpow.pop %v952
        %v954 = vmul.f32 %v936, 1.442695
        %v955 = vpow.pop %v954
        %v956 = vmul.f32 %v937, 1.442695
        %v957 = vpow.pop %v956
        %v958 = vmul.f32 %v938, 1.442695
        %v959 = vpow.pop %v958
        %v960 = vmul.f32 %v939, 1.442695
        %v961 = vpow.pop %v960
        %v962 = vmul.f32 %v940, 1.442695
        %v963 = vpow.pop %v962
        %v964 = vmul.f32 %v941, 1.442695
        %v965 = vpow.pop %v964
        %v966 = vmul.f32 %v942, 1.442695
        %v967 = vpow.pop %v966
        %v968 = vmul.f32 %v943, 1.442695
        %v969 = vpow.pop %v968
        %v970 = vmul.f32 %v944, 1.442695
        %v971 = vpow.pop %v970
        %v972 = vmul.f32 %v945, 1.442695
        %v973 = vpow.pop %v972
        %v974 = vmul.f32 %v946, 1.442695
        %v975 = vpow.pop %v974
        %v976 = vmul.f32 %v947, 1.442695
        %v977 = vpow.pop %v976
        %v978 = vmul.f32 %v948, 1.442695
        %v979 = vpow.pop %v978
        %v980 = vmul.f32 %v949, 1.442695
        %v981 = vpow.pop %v980
        %v982 = vsel %vm885, %v951, 0.0
        %983 = vadd.xlane.f32.xlu0 %v982
        %v984 = vpop.xlane.xlu0 %983
        %v985 = vsel %vm885, %v953, 0.0
        %986 = vadd.xlane.f32.xlu0 %v985
        %v987 = vpop.xlane.xlu0 %986
        %v988 = vsel %vm885, %v955, 0.0
        %989 = vadd.xlane.f32.xlu0 %v988
        %v990 = vpop.xlane.xlu0 %989
        %v991 = vsel %vm885, %v957, 0.0
        %992 = vadd.xlane.f32.xlu0 %v991
        %v993 = vpop.xlane.xlu0 %992
        %v994 = vsel %vm885, %v959, 0.0
        %995 = vadd.xlane.f32.xlu0 %v994
        %v996 = vpop.xlane.xlu0 %995
        %v997 = vsel %vm885, %v961, 0.0
        %998 = vadd.xlane.f32.xlu0 %v997
        %v999 = vpop.xlane.xlu0 %998
        %v1000 = vsel %vm885, %v963, 0.0
        %1001 = vadd.xlane.f32.xlu0 %v1000
        %v1002 = vpop.xlane.xlu0 %1001
        %v1003 = vsel %vm885, %v965, 0.0
        %1004 = vadd.xlane.f32.xlu0 %v1003
        %v1005 = vpop.xlane.xlu0 %1004
        %v1006 = vsel %vm885, %v967, 0.0
        %1007 = vadd.xlane.f32.xlu0 %v1006
        %v1008 = vpop.xlane.xlu0 %1007
        %v1009 = vsel %vm885, %v969, 0.0
        %1010 = vadd.xlane.f32.xlu0 %v1009
        %v1011 = vpop.xlane.xlu0 %1010
        %v1012 = vsel %vm885, %v971, 0.0
        %1013 = vadd.xlane.f32.xlu0 %v1012
        %v1014 = vpop.xlane.xlu0 %1013
        %v1015 = vsel %vm885, %v973, 0.0
        %1016 = vadd.xlane.f32.xlu0 %v1015
        %v1017 = vpop.xlane.xlu0 %1016
        %v1018 = vsel %vm885, %v975, 0.0
        %1019 = vadd.xlane.f32.xlu0 %v1018
        %v1020 = vpop.xlane.xlu0 %1019
        %v1021 = vsel %vm885, %v977, 0.0
        %1022 = vadd.xlane.f32.xlu0 %v1021
        %v1023 = vpop.xlane.xlu0 %1022
        %v1024 = vsel %vm885, %v979, 0.0
        %1025 = vadd.xlane.f32.xlu0 %v1024
        %v1026 = vpop.xlane.xlu0 %1025
        %v1027 = vsel %vm885, %v981, 0.0
        %1028 = vadd.xlane.f32.xlu0 %v1027
        %v1029 = vpop.xlane.xlu0 %1028
        %v1030 = vrcp.pop %v984
        %v1031 = vrcp.pop %v987
        %v1032 = vrcp.pop %v990
        %v1033 = vrcp.pop %v993
        %v1034 = vrcp.pop %v996
        %v1035 = vrcp.pop %v999
        %v1036 = vrcp.pop %v1002
        %v1037 = vrcp.pop %v1005
        %v1038 = vrcp.pop %v1008
        %v1039 = vrcp.pop %v1011
        %v1040 = vrcp.pop %v1014
        %v1041 = vrcp.pop %v1017
        %v1042 = vrcp.pop %v1020
        %v1043 = vrcp.pop %v1023
        %v1044 = vrcp.pop %v1026
        %v1045 = vrcp.pop %v1029
        %v1046 = vmul.f32 %v951, %v1030
        %v1047 = vmul.f32 %v953, %v1031
        %v1048 = vmul.f32 %v955, %v1032
        %v1049 = vmul.f32 %v957, %v1033
        %v1050 = vmul.f32 %v959, %v1034
        %v1051 = vmul.f32 %v961, %v1035
        %v1052 = vmul.f32 %v963, %v1036
        %v1053 = vmul.f32 %v965, %v1037
        %v1054 = vmul.f32 %v967, %v1038
        %v1055 = vmul.f32 %v969, %v1039
        %v1056 = vmul.f32 %v971, %v1040
        %v1057 = vmul.f32 %v973, %v1041
        %v1058 = vmul.f32 %v975, %v1042
        %v1059 = vmul.f32 %v977, %v1043
        %v1060 = vmul.f32 %v979, %v1044
        %v1061 = vmul.f32 %v981, %v1045
        %1062 = vst.msk [vmem:[%s280] sm:$0xff] %vm885, %v1046
        %1063 = vst.msk [vmem:[%s280 + $0x8] sm:$0xff] %vm885, %v1047
        %1064 = vst.msk [vmem:[%s280 + $0x40] sm:$0xff] %vm885, %v1048
        %1065 = vst.msk [vmem:[%s280 + $0x48] sm:$0xff] %vm885, %v1049
        %1066 = vst.msk [vmem:[%s280 + $0x80] sm:$0xff] %vm885, %v1050
        %1067 = vst.msk [vmem:[%s280 + $0x88] sm:$0xff] %vm885, %v1051
        %1068 = vst.msk [vmem:[%s280 + $0xc0] sm:$0xff] %vm885, %v1052
        %1069 = vst.msk [vmem:[%s280 + $0xc8] sm:$0xff] %vm885, %v1053
        %1070 = vst.msk [vmem:[%s280 + $0x100] sm:$0xff] %vm885, %v1054
        %1071 = vst.msk [vmem:[%s280 + $0x108] sm:$0xff] %vm885, %v1055
        %1072 = vst.msk [vmem:[%s280 + $0x140] sm:$0xff] %vm885, %v1056
        %1073 = vst.msk [vmem:[%s280 + $0x148] sm:$0xff] %vm885, %v1057
        %1074 = vst.msk [vmem:[%s280 + $0x180] sm:$0xff] %vm885, %v1058
        %1075 = vst.msk [vmem:[%s280 + $0x188] sm:$0xff] %vm885, %v1059
        %1076 = vst.msk [vmem:[%s280 + $0x1c0] sm:$0xff] %vm885, %v1060
        %1077 = vst.msk [vmem:[%s280 + $0x1c8] sm:$0xff] %vm885, %v1061
        %v1078 = vpack.c.bf16 %v1047, %v1046
        %v1079 = vpack.c.bf16 %v1049, %v1048
        %v1080 = vpack.c.bf16 %v1051, %v1050
        %v1081 = vpack.c.bf16 %v1053, %v1052
        %v1082 = vpack.c.bf16 %v1055, %v1054
        %v1083 = vpack.c.bf16 %v1057, %v1056
        %v1084 = vpack.c.bf16 %v1059, %v1058
        %v1085 = vpack.c.bf16 %v1061, %v1060
        %1086 = vrot.lane.b32.xlu0 %v476, 64
        %v1087 = vpop.permute.xlu0 %1086
        %v1090 = vsel %vm885, %v1078, 0
        %1092 = vmatprep.subr.bf16.mxu0 0
        %1093 = vmatpush1.bf16.msra.mxu0 %v1087
        %1094 = vmatprep.subr.bf16.mxu0 0
        %1095 = vmatpush1.bf16.msra.mxu0 0
        %1096 = vmatprep.subr.bf16.mxu0 0
        %1097 = vmatpush1.bf16.msra.mxu0 0
        %1098 = vmatprep.subr.bf16.mxu0 0
        %1099 = vmatpush1.bf16.msra.mxu0 0
        %1100 = vmatprep.subr.bf16.mxu0 0
        %1101 = vmatpush1.bf16.msra.mxu0 0
        %1102 = vmatprep.subr.bf16.mxu0 0
        %1103 = vmatpush1.bf16.msra.mxu0 0
        %1104 = vmatprep.subr.bf16.mxu0 0
        %1105 = vmatpush1.bf16.msra.mxu0 0
        %1106 = vmatprep.subr.bf16.mxu0 0
        %1107 = vmatpush1.bf16.msra.mxu0 0
        %1108 = vmatprep.subr.bf16.mxu0 0
        %1109 = vmatpush1.bf16.msra.mxu0 0
        %1110 = vmatprep.subr.bf16.mxu0 0
        %1111 = vmatpush1.bf16.msra.mxu0 0
        %1112 = vmatprep.subr.bf16.mxu0 0
        %1113 = vmatpush1.bf16.msra.mxu0 0
        %1114 = vmatprep.subr.bf16.mxu0 0
        %1115 = vmatpush1.bf16.msra.mxu0 0
        %1116 = vmatprep.subr.bf16.mxu0 0
        %1117 = vmatpush1.bf16.msra.mxu0 0
        %1118 = vmatprep.subr.bf16.mxu0 0
        %1119 = vmatpush1.bf16.msra.mxu0 0
        %1120 = vmatprep.subr.bf16.mxu0 0
        %1121 = vmatpush1.bf16.msra.mxu0 0
        %1122 = vmatprep.subr.bf16.mxu0 0
        %1123 = vmatpush1.bf16.msra.mxu0 0
        %1124 = vmatprep.mubr.bf16.mxu0 0
        %1125 = vmatmul.mubr.bf16.gmra.mrb[0].mxu0 %v1090
        %v1126 = vpop.f32.mrb[0].mxu0
        %v1127 = vadd.f32 0.0, %v1126
        %v1128 = vpop.f32.mrb[0].mxu0
        %v1129 = vpop.f32.mrb[0].mxu0
        %v1130 = vadd.f32 0.0, %v1129
        %v1131 = vpop.f32.mrb[0].mxu0
        %1132 = vdwg.mxu0
        %1133 = vrot.lane.b32.xlu0 %v477, 64
        %v1134 = vpop.permute.xlu0 %1133
        %v1137 = vsel %vm885, %v1079, 0
        %1139 = vmatprep.subr.bf16.mxu0 0
        %1140 = vmatpush1.bf16.msra.mxu0 %v1134
        %1141 = vmatprep.subr.bf16.mxu0 0
        %1142 = vmatpush1.bf16.msra.mxu0 0
        %1143 = vmatprep.subr.bf16.mxu0 0
        %1144 = vmatpush1.bf16.msra.mxu0 0
        %1145 = vmatprep.subr.bf16.mxu0 0
        %1146 = vmatpush1.bf16.msra.mxu0 0
        %1147 = vmatprep.subr.bf16.mxu0 0
        %1148 = vmatpush1.bf16.msra.mxu0 0
        %1149 = vmatprep.subr.bf16.mxu0 0
        %1150 = vmatpush1.bf16.msra.mxu0 0
        %1151 = vmatprep.subr.bf16.mxu0 0
        %1152 = vmatpush1.bf16.msra.mxu0 0
        %1153 = vmatprep.subr.bf16.mxu0 0
        %1154 = vmatpush1.bf16.msra.mxu0 0
        %1155 = vmatprep.subr.bf16.mxu0 0
        %1156 = vmatpush1.bf16.msra.mxu0 0
        %1157 = vmatprep.subr.bf16.mxu0 0
        %1158 = vmatpush1.bf16.msra.mxu0 0
        %1159 = vmatprep.subr.bf16.mxu0 0
        %1160 = vmatpush1.bf16.msra.mxu0 0
        %1161 = vmatprep.subr.bf16.mxu0 0
        %1162 = vmatpush1.bf16.msra.mxu0 0
        %1163 = vmatprep.subr.bf16.mxu0 0
        %1164 = vmatpush1.bf16.msra.mxu0 0
        %1165 = vmatprep.subr.bf16.mxu0 0
        %1166 = vmatpush1.bf16.msra.mxu0 0
        %1167 = vmatprep.subr.bf16.mxu0 0
        %1168 = vmatpush1.bf16.msra.mxu0 0
        %1169 = vmatprep.subr.bf16.mxu0 0
        %1170 = vmatpush1.bf16.msra.mxu0 0
        %1171 = vmatprep.mubr.bf16.mxu0 0
        %1172 = vmatmul.mubr.bf16.gmra.mrb[0].mxu0 %v1137
        %v1173 = vpop.f32.mrb[0].mxu0
        %v1174 = vadd.f32 0.0, %v1173
        %v1175 = vpop.f32.mrb[0].mxu0
        %v1176 = vpop.f32.mrb[0].mxu0
        %v1177 = vadd.f32 0.0, %v1176
        %v1178 = vpop.f32.mrb[0].mxu0
        %1179 = vdwg.mxu0
        %1180 = vrot.lane.b32.xlu0 %v478, 64
        %v1181 = vpop.permute.xlu0 %1180
        %v1184 = vsel %vm885, %v1080, 0
        %1186 = vmatprep.subr.bf16.mxu0 0
        %1187 = vmatpush1.bf16.msra.mxu0 %v1181
        %1188 = vmatprep.subr.bf16.mxu0 0
        %1189 = vmatpush1.bf16.msra.mxu0 0
        %1190 = vmatprep.subr.bf16.mxu0 0
        %1191 = vmatpush1.bf16.msra.mxu0 0
        %1192 = vmatprep.subr.bf16.mxu0 0
        %1193 = vmatpush1.bf16.msra.mxu0 0
        %1194 = vmatprep.subr.bf16.mxu0 0
        %1195 = vmatpush1.bf16.msra.mxu0 0
        %1196 = vmatprep.subr.bf16.mxu0 0
        %1197 = vmatpush1.bf16.msra.mxu0 0
        %1198 = vmatprep.subr.bf16.mxu0 0
        %1199 = vmatpush1.bf16.msra.mxu0 0
        %1200 = vmatprep.subr.bf16.mxu0 0
        %1201 = vmatpush1.bf16.msra.mxu0 0
        %1202 = vmatprep.subr.bf16.mxu0 0
        %1203 = vmatpush1.bf16.msra.mxu0 0
        %1204 = vmatprep.subr.bf16.mxu0 0
        %1205 = vmatpush1.bf16.msra.mxu0 0
        %1206 = vmatprep.subr.bf16.mxu0 0
        %1207 = vmatpush1.bf16.msra.mxu0 0
        %1208 = vmatprep.subr.bf16.mxu0 0
        %1209 = vmatpush1.bf16.msra.mxu0 0
        %1210 = vmatprep.subr.bf16.mxu0 0
        %1211 = vmatpush1.bf16.msra.mxu0 0
        %1212 = vmatprep.subr.bf16.mxu0 0
        %1213 = vmatpush1.bf16.msra.mxu0 0
        %1214 = vmatprep.subr.bf16.mxu0 0
        %1215 = vmatpush1.bf16.msra.mxu0 0
        %1216 = vmatprep.subr.bf16.mxu0 0
        %1217 = vmatpush1.bf16.msra.mxu0 0
        %1218 = vmatprep.mubr.bf16.mxu0 0
        %1219 = vmatmul.mubr.bf16.gmra.mrb[0].mxu0 %v1184
        %v1220 = vpop.f32.mrb[0].mxu0
        %v1221 = vadd.f32 0.0, %v1220
        %v1222 = vpop.f32.mrb[0].mxu0
        %v1223 = vpop.f32.mrb[0].mxu0
        %v1224 = vadd.f32 0.0, %v1223
        %v1225 = vpop.f32.mrb[0].mxu0
        %1226 = vdwg.mxu0
        %1227 = vrot.lane.b32.xlu0 %v479, 64
        %v1228 = vpop.permute.xlu0 %1227
        %v1231 = vsel %vm885, %v1081, 0
        %1233 = vmatprep.subr.bf16.mxu0 0
        %1234 = vmatpush1.bf16.msra.mxu0 %v1228
        %1235 = vmatprep.subr.bf16.mxu0 0
        %1236 = vmatpush1.bf16.msra.mxu0 0
        %1237 = vmatprep.subr.bf16.mxu0 0
        %1238 = vmatpush1.bf16.msra.mxu0 0
        %1239 = vmatprep.subr.bf16.mxu0 0
        %1240 = vmatpush1.bf16.msra.mxu0 0
        %1241 = vmatprep.subr.bf16.mxu0 0
        %1242 = vmatpush1.bf16.msra.mxu0 0
        %1243 = vmatprep.subr.bf16.mxu0 0
        %1244 = vmatpush1.bf16.msra.mxu0 0
        %1245 = vmatprep.subr.bf16.mxu0 0
        %1246 = vmatpush1.bf16.msra.mxu0 0
        %1247 = vmatprep.subr.bf16.mxu0 0
        %1248 = vmatpush1.bf16.msra.mxu0 0
        %1249 = vmatprep.subr.bf16.mxu0 0
        %1250 = vmatpush1.bf16.msra.mxu0 0
        %1251 = vmatprep.subr.bf16.mxu0 0
        %1252 = vmatpush1.bf16.msra.mxu0 0
        %1253 = vmatprep.subr.bf16.mxu0 0
        %1254 = vmatpush1.bf16.msra.mxu0 0
        %1255 = vmatprep.subr.bf16.mxu0 0
        %1256 = vmatpush1.bf16.msra.mxu0 0
        %1257 = vmatprep.subr.bf16.mxu0 0
        %1258 = vmatpush1.bf16.msra.mxu0 0
        %1259 = vmatprep.subr.bf16.mxu0 0
        %1260 = vmatpush1.bf16.msra.mxu0 0
        %1261 = vmatprep.subr.bf16.mxu0 0
        %1262 = vmatpush1.bf16.msra.mxu0 0
        %1263 = vmatprep.subr.bf16.mxu0 0
        %1264 = vmatpush1.bf16.msra.mxu0 0
        %1265 = vmatprep.mubr.bf16.mxu0 0
        %1266 = vmatmul.mubr.bf16.gmra.mrb[0].mxu0 %v1231
        %v1267 = vpop.f32.mrb[0].mxu0
        %v1268 = vadd.f32 0.0, %v1267
        %v1269 = vpop.f32.mrb[0].mxu0
        %v1270 = vpop.f32.mrb[0].mxu0
        %v1271 = vadd.f32 0.0, %v1270
        %v1272 = vpop.f32.mrb[0].mxu0
        %1273 = vdwg.mxu0
        %1274 = vrot.lane.b32.xlu0 %v480, 64
        %v1275 = vpop.permute.xlu0 %1274
        %v1278 = vsel %vm885, %v1082, 0
        %1280 = vmatprep.subr.bf16.mxu0 0
        %1281 = vmatpush1.bf16.msra.mxu0 %v1275
        %1282 = vmatprep.subr.bf16.mxu0 0
        %1283 = vmatpush1.bf16.msra.mxu0 0
        %1284 = vmatprep.subr.bf16.mxu0 0
        %1285 = vmatpush1.bf16.msra.mxu0 0
        %1286 = vmatprep.subr.bf16.mxu0 0
        %1287 = vmatpush1.bf16.msra.mxu0 0
        %1288 = vmatprep.subr.bf16.mxu0 0
        %1289 = vmatpush1.bf16.msra.mxu0 0
        %1290 = vmatprep.subr.bf16.mxu0 0
        %1291 = vmatpush1.bf16.msra.mxu0 0
        %1292 = vmatprep.subr.bf16.mxu0 0
        %1293 = vmatpush1.bf16.msra.mxu0 0
        %1294 = vmatprep.subr.bf16.mxu0 0
        %1295 = vmatpush1.bf16.msra.mxu0 0
        %1296 = vmatprep.subr.bf16.mxu0 0
        %1297 = vmatpush1.bf16.msra.mxu0 0
        %1298 = vmatprep.subr.bf16.mxu0 0
        %1299 = vmatpush1.bf16.msra.mxu0 0
        %1300 = vmatprep.subr.bf16.mxu0 0
        %1301 = vmatpush1.bf16.msra.mxu0 0
        %1302 = vmatprep.subr.bf16.mxu0 0
        %1303 = vmatpush1.bf16.msra.mxu0 0
        %1304 = vmatprep.subr.bf16.mxu0 0
        %1305 = vmatpush1.bf16.msra.mxu0 0
        %1306 = vmatprep.subr.bf16.mxu0 0
        %1307 = vmatpush1.bf16.msra.mxu0 0
        %1308 = vmatprep.subr.bf16.mxu0 0
        %1309 = vmatpush1.bf16.msra.mxu0 0
        %1310 = vmatprep.subr.bf16.mxu0 0
        %1311 = vmatpush1.bf16.msra.mxu0 0
        %1312 = vmatprep.mubr.bf16.mxu0 0
        %1313 = vmatmul.mubr.bf16.gmra.mrb[0].mxu0 %v1278
        %v1314 = vpop.f32.mrb[0].mxu0
        %v1315 = vadd.f32 0.0, %v1314
        %v1316 = vpop.f32.mrb[0].mxu0
        %v1317 = vpop.f32.mrb[0].mxu0
        %v1318 = vadd.f32 0.0, %v1317
        %v1319 = vpop.f32.mrb[0].mxu0
        %1320 = vdwg.mxu0
        %1321 = vrot.lane.b32.xlu0 %v481, 64
        %v1322 = vpop.permute.xlu0 %1321
        %v1325 = vsel %vm885, %v1083, 0
        %1327 = vmatprep.subr.bf16.mxu0 0
        %1328 = vmatpush1.bf16.msra.mxu0 %v1322
        %1329 = vmatprep.subr.bf16.mxu0 0
        %1330 = vmatpush1.bf16.msra.mxu0 0
        %1331 = vmatprep.subr.bf16.mxu0 0
        %1332 = vmatpush1.bf16.msra.mxu0 0
        %1333 = vmatprep.subr.bf16.mxu0 0
        %1334 = vmatpush1.bf16.msra.mxu0 0
        %1335 = vmatprep.subr.bf16.mxu0 0
        %1336 = vmatpush1.bf16.msra.mxu0 0
        %1337 = vmatprep.subr.bf16.mxu0 0
        %1338 = vmatpush1.bf16.msra.mxu0 0
        %1339 = vmatprep.subr.bf16.mxu0 0
        %1340 = vmatpush1.bf16.msra.mxu0 0
        %1341 = vmatprep.subr.bf16.mxu0 0
        %1342 = vmatpush1.bf16.msra.mxu0 0
        %1343 = vmatprep.subr.bf16.mxu0 0
        %1344 = vmatpush1.bf16.msra.mxu0 0
        %1345 = vmatprep.subr.bf16.mxu0 0
        %1346 = vmatpush1.bf16.msra.mxu0 0
        %1347 = vmatprep.subr.bf16.mxu0 0
        %1348 = vmatpush1.bf16.msra.mxu0 0
        %1349 = vmatprep.subr.bf16.mxu0 0
        %1350 = vmatpush1.bf16.msra.mxu0 0
        %1351 = vmatprep.subr.bf16.mxu0 0
        %1352 = vmatpush1.bf16.msra.mxu0 0
        %1353 = vmatprep.subr.bf16.mxu0 0
        %1354 = vmatpush1.bf16.msra.mxu0 0
        %1355 = vmatprep.subr.bf16.mxu0 0
        %1356 = vmatpush1.bf16.msra.mxu0 0
        %1357 = vmatprep.subr.bf16.mxu0 0
        %1358 = vmatpush1.bf16.msra.mxu0 0
        %1359 = vmatprep.mubr.bf16.mxu0 0
        %1360 = vmatmul.mubr.bf16.gmra.mrb[0].mxu0 %v1325
        %v1361 = vpop.f32.mrb[0].mxu0
        %v1362 = vadd.f32 0.0, %v1361
        %v1363 = vpop.f32.mrb[0].mxu0
        %v1364 = vpop.f32.mrb[0].mxu0
        %v1365 = vadd.f32 0.0, %v1364
        %v1366 = vpop.f32.mrb[0].mxu0
        %1367 = vdwg.mxu0
        %1368 = vrot.lane.b32.xlu0 %v482, 64
        %v1369 = vpop.permute.xlu0 %1368
        %v1372 = vsel %vm885, %v1084, 0
        %1374 = vmatprep.subr.bf16.mxu0 0
        %1375 = vmatpush1.bf16.msra.mxu0 %v1369
        %1376 = vmatprep.subr.bf16.mxu0 0
        %1377 = vmatpush1.bf16.msra.mxu0 0
        %1378 = vmatprep.subr.bf16.mxu0 0
        %1379 = vmatpush1.bf16.msra.mxu0 0
        %1380 = vmatprep.subr.bf16.mxu0 0
        %1381 = vmatpush1.bf16.msra.mxu0 0
        %1382 = vmatprep.subr.bf16.mxu0 0
        %1383 = vmatpush1.bf16.msra.mxu0 0
        %1384 = vmatprep.subr.bf16.mxu0 0
        %1385 = vmatpush1.bf16.msra.mxu0 0
        %1386 = vmatprep.subr.bf16.mxu0 0
        %1387 = vmatpush1.bf16.msra.mxu0 0
        %1388 = vmatprep.subr.bf16.mxu0 0
        %1389 = vmatpush1.bf16.msra.mxu0 0
        %1390 = vmatprep.subr.bf16.mxu0 0
        %1391 = vmatpush1.bf16.msra.mxu0 0
        %1392 = vmatprep.subr.bf16.mxu0 0
        %1393 = vmatpush1.bf16.msra.mxu0 0
        %1394 = vmatprep.subr.bf16.mxu0 0
        %1395 = vmatpush1.bf16.msra.mxu0 0
        %1396 = vmatprep.subr.bf16.mxu0 0
        %1397 = vmatpush1.bf16.msra.mxu0 0
        %1398 = vmatprep.subr.bf16.mxu0 0
        %1399 = vmatpush1.bf16.msra.mxu0 0
        %1400 = vmatprep.subr.bf16.mxu0 0
        %1401 = vmatpush1.bf16.msra.mxu0 0
        %1402 = vmatprep.subr.bf16.mxu0 0
        %1403 = vmatpush1.bf16.msra.mxu0 0
        %1404 = vmatprep.subr.bf16.mxu0 0
        %1405 = vmatpush1.bf16.msra.mxu0 0
        %1406 = vmatprep.mubr.bf16.mxu0 0
        %1407 = vmatmul.mubr.bf16.gmra.mrb[0].mxu0 %v1372
        %v1408 = vpop.f32.mrb[0].mxu0
        %v1409 = vadd.f32 0.0, %v1408
        %v1410 = vpop.f32.mrb[0].mxu0
        %v1411 = vpop.f32.mrb[0].mxu0
        %v1412 = vadd.f32 0.0, %v1411
        %v1413 = vpop.f32.mrb[0].mxu0
        %1414 = vdwg.mxu0
        %1415 = vrot.lane.b32.xlu0 %v483, 64
        %v1416 = vpop.permute.xlu0 %1415
        %v1419 = vsel %vm885, %v1085, 0
        %1421 = vmatprep.subr.bf16.mxu0 0
        %1422 = vmatpush1.bf16.msra.mxu0 %v1416
        %1423 = vmatprep.subr.bf16.mxu0 0
        %1424 = vmatpush1.bf16.msra.mxu0 0
        %1425 = vmatprep.subr.bf16.mxu0 0
        %1426 = vmatpush1.bf16.msra.mxu0 0
        %1427 = vmatprep.subr.bf16.mxu0 0
        %1428 = vmatpush1.bf16.msra.mxu0 0
        %1429 = vmatprep.subr.bf16.mxu0 0
        %1430 = vmatpush1.bf16.msra.mxu0 0
        %1431 = vmatprep.subr.bf16.mxu0 0
        %1432 = vmatpush1.bf16.msra.mxu0 0
        %1433 = vmatprep.subr.bf16.mxu0 0
        %1434 = vmatpush1.bf16.msra.mxu0 0
        %1435 = vmatprep.subr.bf16.mxu0 0
        %1436 = vmatpush1.bf16.msra.mxu0 0
        %1437 = vmatprep.subr.bf16.mxu0 0
        %1438 = vmatpush1.bf16.msra.mxu0 0
        %1439 = vmatprep.subr.bf16.mxu0 0
        %1440 = vmatpush1.bf16.msra.mxu0 0
        %1441 = vmatprep.subr.bf16.mxu0 0
        %1442 = vmatpush1.bf16.msra.mxu0 0
        %1443 = vmatprep.subr.bf16.mxu0 0
        %1444 = vmatpush1.bf16.msra.mxu0 0
        %1445 = vmatprep.subr.bf16.mxu0 0
        %1446 = vmatpush1.bf16.msra.mxu0 0
        %1447 = vmatprep.subr.bf16.mxu0 0
        %1448 = vmatpush1.bf16.msra.mxu0 0
        %1449 = vmatprep.subr.bf16.mxu0 0
        %1450 = vmatpush1.bf16.msra.mxu0 0
        %1451 = vmatprep.subr.bf16.mxu0 0
        %1452 = vmatpush1.bf16.msra.mxu0 0
        %1453 = vmatprep.mubr.bf16.mxu0 0
        %1454 = vmatmul.mubr.bf16.gmra.mrb[0].mxu0 %v1419
        %v1455 = vpop.f32.mrb[0].mxu0
        %v1456 = vadd.f32 0.0, %v1455
        %v1457 = vpop.f32.mrb[0].mxu0
        %v1458 = vpop.f32.mrb[0].mxu0
        %v1459 = vadd.f32 0.0, %v1458
        %v1460 = vpop.f32.mrb[0].mxu0
        %1461 = vdwg.mxu0
        %v1462 = vpack.c.bf16 %v1130, %v1127
        %v1463 = vpack.c.bf16 %v1177, %v1174
        %v1464 = vpack.c.bf16 %v1224, %v1221
        %v1465 = vpack.c.bf16 %v1271, %v1268
        %v1466 = vpack.c.bf16 %v1318, %v1315
        %v1467 = vpack.c.bf16 %v1365, %v1362
        %v1468 = vpack.c.bf16 %v1412, %v1409
        %v1469 = vpack.c.bf16 %v1459, %v1456
        %1470 = vrot.lane.b32.xlu0 %v476, 120
        %v1471 = vpop.permute.xlu0 %1470
        %1472 = vrot.lane.b32.xlu0 %v476, 88
        %v1473 = vpop.permute.xlu0 %1472
        %v1475 = vsel %vm487, %v1471, 0
        %v1478 = vsel %vm487, %v1473, 0
        %1480 = vmatprep.subr.bf16.mxu0 0
        %1481 = vmatpush1.bf16.xpose.msra.mxu0 %v1478
        %1482 = vmatprep.subr.bf16.mxu0 0
        %1483 = vmatpush1.bf16.xpose.msra.mxu0 0
        %1484 = vmatprep.subr.bf16.mxu0 0
        %1485 = vmatpush1.bf16.xpose.msra.mxu0 0
        %1486 = vmatprep.subr.bf16.mxu0 0
        %1487 = vmatpush1.bf16.xpose.msra.mxu0 0
        %1488 = vmatprep.subr.bf16.mxu0 0
        %1489 = vmatpush1.bf16.xpose.msra.mxu0 0
        %1490 = vmatprep.subr.bf16.mxu0 0
        %1491 = vmatpush1.bf16.xpose.msra.mxu0 0
        %1492 = vmatprep.subr.bf16.mxu0 0
        %1493 = vmatpush1.bf16.xpose.msra.mxu0 0
        %1494 = vmatprep.subr.bf16.mxu0 0
        %1495 = vmatpush1.bf16.xpose.msra.mxu0 0
        %1496 = vmatprep.subr.bf16.mxu0 0
        %1497 = vmatpush1.bf16.xpose.msra.mxu0 0
        %1498 = vmatprep.subr.bf16.mxu0 0
        %1499 = vmatpush1.bf16.xpose.msra.mxu0 0
        %1500 = vmatprep.subr.bf16.mxu0 0
        %1501 = vmatpush1.bf16.xpose.msra.mxu0 0
        %1502 = vmatprep.subr.bf16.mxu0 0
        %1503 = vmatpush1.bf16.xpose.msra.mxu0 0
        %1504 = vmatprep.subr.bf16.mxu0 0
        %1505 = vmatpush1.bf16.xpose.msra.mxu0 0
        %1506 = vmatprep.subr.bf16.mxu0 0
        %1507 = vmatpush1.bf16.xpose.msra.mxu0 0
        %1508 = vmatprep.subr.bf16.mxu0 0
        %1509 = vmatpush1.bf16.xpose.msra.mxu0 0
        %1510 = vmatprep.subr.bf16.mxu0 0
        %1511 = vmatpush1.bf16.xpose.msra.mxu0 0
        %1512 = vmatprep.mubr.bf16.mxu0 0
        %1513 = vmatmul.mubr.bf16.gmra.mrb[0].mxu0 %v1475
        %v1514 = vpop.f32.mrb[0].mxu0
        %v1515 = vadd.f32 %v470, %v1514
        %v1516 = vpop.f32.mrb[0].mxu0
        %v1517 = vpop.f32.mrb[0].mxu0
        %v1518 = vadd.f32 %v471, %v1517
        %v1519 = vpop.f32.mrb[0].mxu0
        %1520 = vdwg.mxu0
        %1521 = vrot.lane.b32.xlu0 %v477, 120
        %v1522 = vpop.permute.xlu0 %1521
        %1523 = vrot.lane.b32.xlu0 %v477, 88
        %v1524 = vpop.permute.xlu0 %1523
        %v1526 = vsel %vm487, %v1522, 0
        %v1529 = vsel %vm487, %v1524, 0
        %1531 = vmatprep.subr.bf16.mxu0 0
        %1532 = vmatpush1.bf16.xpose.msra.mxu0 %v1529
        %1533 = vmatprep.subr.bf16.mxu0 0
        %1534 = vmatpush1.bf16.xpose.msra.mxu0 0
        %1535 = vmatprep.subr.bf16.mxu0 0
        %1536 = vmatpush1.bf16.xpose.msra.mxu0 0
        %1537 = vmatprep.subr.bf16.mxu0 0
        %1538 = vmatpush1.bf16.xpose.msra.mxu0 0
        %1539 = vmatprep.subr.bf16.mxu0 0
        %1540 = vmatpush1.bf16.xpose.msra.mxu0 0
        %1541 = vmatprep.subr.bf16.mxu0 0
        %1542 = vmatpush1.bf16.xpose.msra.mxu0 0
        %1543 = vmatprep.subr.bf16.mxu0 0
        %1544 = vmatpush1.bf16.xpose.msra.mxu0 0
        %1545 = vmatprep.subr.bf16.mxu0 0
        %1546 = vmatpush1.bf16.xpose.msra.mxu0 0
        %1547 = vmatprep.subr.bf16.mxu0 0
        %1548 = vmatpush1.bf16.xpose.msra.mxu0 0
        %1549 = vmatprep.subr.bf16.mxu0 0
        %1550 = vmatpush1.bf16.xpose.msra.mxu0 0
        %1551 = vmatprep.subr.bf16.mxu0 0
        %1552 = vmatpush1.bf16.xpose.msra.mxu0 0
        %1553 = vmatprep.subr.bf16.mxu0 0
        %1554 = vmatpush1.bf16.xpose.msra.mxu0 0
        %1555 = vmatprep.subr.bf16.mxu0 0
        %1556 = vmatpush1.bf16.xpose.msra.mxu0 0
        %1557 = vmatprep.subr.bf16.mxu0 0
        %1558 = vmatpush1.bf16.xpose.msra.mxu0 0
        %1559 = vmatprep.subr.bf16.mxu0 0
        %1560 = vmatpush1.bf16.xpose.msra.mxu0 0
        %1561 = vmatprep.subr.bf16.mxu0 0
        %1562 = vmatpush1.bf16.xpose.msra.mxu0 0
        %1563 = vmatprep.mubr.bf16.mxu0 0
        %1564 = vmatmul.mubr.bf16.gmra.mrb[0].mxu0 %v1526
        %v1565 = vpop.f32.mrb[0].mxu0
        %v1566 = vadd.f32 %v470, %v1565
        %v1567 = vpop.f32.mrb[0].mxu0
        %v1568 = vpop.f32.mrb[0].mxu0
        %v1569 = vadd.f32 %v471, %v1568
        %v1570 = vpop.f32.mrb[0].mxu0
        %1571 = vdwg.mxu0
        %1572 = vrot.lane.b32.xlu0 %v478, 120
        %v1573 = vpop.permute.xlu0 %1572
        %1574 = vrot.lane.b32.xlu0 %v478, 88
        %v1575 = vpop.permute.xlu0 %1574
        %v1577 = vsel %vm487, %v1573, 0
        %v1580 = vsel %vm487, %v1575, 0
        %1582 = vmatprep.subr.bf16.mxu0 0
        %1583 = vmatpush1.bf16.xpose.msra.mxu0 %v1580
        %1584 = vmatprep.subr.bf16.mxu0 0
        %1585 = vmatpush1.bf16.xpose.msra.mxu0 0
        %1586 = vmatprep.subr.bf16.mxu0 0
        %1587 = vmatpush1.bf16.xpose.msra.mxu0 0
        %1588 = vmatprep.subr.bf16.mxu0 0
        %1589 = vmatpush1.bf16.xpose.msra.mxu0 0
        %1590 = vmatprep.subr.bf16.mxu0 0
        %1591 = vmatpush1.bf16.xpose.msra.mxu0 0
        %1592 = vmatprep.subr.bf16.mxu0 0
        %1593 = vmatpush1.bf16.xpose.msra.mxu0 0
        %1594 = vmatprep.subr.bf16.mxu0 0
        %1595 = vmatpush1.bf16.xpose.msra.mxu0 0
        %1596 = vmatprep.subr.bf16.mxu0 0
        %1597 = vmatpush1.bf16.xpose.msra.mxu0 0
        %1598 = vmatprep.subr.bf16.mxu0 0
        %1599 = vmatpush1.bf16.xpose.msra.mxu0 0
        %1600 = vmatprep.subr.bf16.mxu0 0
        %1601 = vmatpush1.bf16.xpose.msra.mxu0 0
        %1602 = vmatprep.subr.bf16.mxu0 0
        %1603 = vmatpush1.bf16.xpose.msra.mxu0 0
        %1604 = vmatprep.subr.bf16.mxu0 0
        %1605 = vmatpush1.bf16.xpose.msra.mxu0 0
        %1606 = vmatprep.subr.bf16.mxu0 0
        %1607 = vmatpush1.bf16.xpose.msra.mxu0 0
        %1608 = vmatprep.subr.bf16.mxu0 0
        %1609 = vmatpush1.bf16.xpose.msra.mxu0 0
        %1610 = vmatprep.subr.bf16.mxu0 0
        %1611 = vmatpush1.bf16.xpose.msra.mxu0 0
        %1612 = vmatprep.subr.bf16.mxu0 0
        %1613 = vmatpush1.bf16.xpose.msra.mxu0 0
        %1614 = vmatprep.mubr.bf16.mxu0 0
        %1615 = vmatmul.mubr.bf16.gmra.mrb[0].mxu0 %v1577
        %v1616 = vpop.f32.mrb[0].mxu0
        %v1617 = vadd.f32 %v470, %v1616
        %v1618 = vpop.f32.mrb[0].mxu0
        %v1619 = vpop.f32.mrb[0].mxu0
        %v1620 = vadd.f32 %v471, %v1619
        %v1621 = vpop.f32.mrb[0].mxu0
        %1622 = vdwg.mxu0
        %1623 = vrot.lane.b32.xlu0 %v479, 120
        %v1624 = vpop.permute.xlu0 %1623
        %1625 = vrot.lane.b32.xlu0 %v479, 88
        %v1626 = vpop.permute.xlu0 %1625
        %v1628 = vsel %vm487, %v1624, 0
        %v1631 = vsel %vm487, %v1626, 0
        %1633 = vmatprep.subr.bf16.mxu0 0
        %1634 = vmatpush1.bf16.xpose.msra.mxu0 %v1631
        %1635 = vmatprep.subr.bf16.mxu0 0
        %1636 = vmatpush1.bf16.xpose.msra.mxu0 0
        %1637 = vmatprep.subr.bf16.mxu0 0
        %1638 = vmatpush1.bf16.xpose.msra.mxu0 0
        %1639 = vmatprep.subr.bf16.mxu0 0
        %1640 = vmatpush1.bf16.xpose.msra.mxu0 0
        %1641 = vmatprep.subr.bf16.mxu0 0
        %1642 = vmatpush1.bf16.xpose.msra.mxu0 0
        %1643 = vmatprep.subr.bf16.mxu0 0
        %1644 = vmatpush1.bf16.xpose.msra.mxu0 0
        %1645 = vmatprep.subr.bf16.mxu0 0
        %1646 = vmatpush1.bf16.xpose.msra.mxu0 0
        %1647 = vmatprep.subr.bf16.mxu0 0
        %1648 = vmatpush1.bf16.xpose.msra.mxu0 0
        %1649 = vmatprep.subr.bf16.mxu0 0
        %1650 = vmatpush1.bf16.xpose.msra.mxu0 0
        %1651 = vmatprep.subr.bf16.mxu0 0
        %1652 = vmatpush1.bf16.xpose.msra.mxu0 0
        %1653 = vmatprep.subr.bf16.mxu0 0
        %1654 = vmatpush1.bf16.xpose.msra.mxu0 0
        %1655 = vmatprep.subr.bf16.mxu0 0
        %1656 = vmatpush1.bf16.xpose.msra.mxu0 0
        %1657 = vmatprep.subr.bf16.mxu0 0
        %1658 = vmatpush1.bf16.xpose.msra.mxu0 0
        %1659 = vmatprep.subr.bf16.mxu0 0
        %1660 = vmatpush1.bf16.xpose.msra.mxu0 0
        %1661 = vmatprep.subr.bf16.mxu0 0
        %1662 = vmatpush1.bf16.xpose.msra.mxu0 0
        %1663 = vmatprep.subr.bf16.mxu0 0
        %1664 = vmatpush1.bf16.xpose.msra.mxu0 0
        %1665 = vmatprep.mubr.bf16.mxu0 0
        %1666 = vmatmul.mubr.bf16.gmra.mrb[0].mxu0 %v1628
        %v1667 = vpop.f32.mrb[0].mxu0
        %v1668 = vadd.f32 %v470, %v1667
        %v1669 = vpop.f32.mrb[0].mxu0
        %v1670 = vpop.f32.mrb[0].mxu0
        %v1671 = vadd.f32 %v471, %v1670
        %v1672 = vpop.f32.mrb[0].mxu0
        %1673 = vdwg.mxu0
        %1674 = vrot.lane.b32.xlu0 %v480, 120
        %v1675 = vpop.permute.xlu0 %1674
        %1676 = vrot.lane.b32.xlu0 %v480, 88
        %v1677 = vpop.permute.xlu0 %1676
        %v1679 = vsel %vm487, %v1675, 0
        %v1682 = vsel %vm487, %v1677, 0
        %1684 = vmatprep.subr.bf16.mxu0 0
        %1685 = vmatpush1.bf16.xpose.msra.mxu0 %v1682
        %1686 = vmatprep.subr.bf16.mxu0 0
        %1687 = vmatpush1.bf16.xpose.msra.mxu0 0
        %1688 = vmatprep.subr.bf16.mxu0 0
        %1689 = vmatpush1.bf16.xpose.msra.mxu0 0
        %1690 = vmatprep.subr.bf16.mxu0 0
        %1691 = vmatpush1.bf16.xpose.msra.mxu0 0
        %1692 = vmatprep.subr.bf16.mxu0 0
        %1693 = vmatpush1.bf16.xpose.msra.mxu0 0
        %1694 = vmatprep.subr.bf16.mxu0 0
        %1695 = vmatpush1.bf16.xpose.msra.mxu0 0
        %1696 = vmatprep.subr.bf16.mxu0 0
        %1697 = vmatpush1.bf16.xpose.msra.mxu0 0
        %1698 = vmatprep.subr.bf16.mxu0 0
        %1699 = vmatpush1.bf16.xpose.msra.mxu0 0
        %1700 = vmatprep.subr.bf16.mxu0 0
        %1701 = vmatpush1.bf16.xpose.msra.mxu0 0
        %1702 = vmatprep.subr.bf16.mxu0 0
        %1703 = vmatpush1.bf16.xpose.msra.mxu0 0
        %1704 = vmatprep.subr.bf16.mxu0 0
        %1705 = vmatpush1.bf16.xpose.msra.mxu0 0
        %1706 = vmatprep.subr.bf16.mxu0 0
        %1707 = vmatpush1.bf16.xpose.msra.mxu0 0
        %1708 = vmatprep.subr.bf16.mxu0 0
        %1709 = vmatpush1.bf16.xpose.msra.mxu0 0
        %1710 = vmatprep.subr.bf16.mxu0 0
        %1711 = vmatpush1.bf16.xpose.msra.mxu0 0
        %1712 = vmatprep.subr.bf16.mxu0 0
        %1713 = vmatpush1.bf16.xpose.msra.mxu0 0
        %1714 = vmatprep.subr.bf16.mxu0 0
        %1715 = vmatpush1.bf16.xpose.msra.mxu0 0
        %1716 = vmatprep.mubr.bf16.mxu0 0
        %1717 = vmatmul.mubr.bf16.gmra.mrb[0].mxu0 %v1679
        %v1718 = vpop.f32.mrb[0].mxu0
        %v1719 = vadd.f32 %v470, %v1718
        %v1720 = vpop.f32.mrb[0].mxu0
        %v1721 = vpop.f32.mrb[0].mxu0
        %v1722 = vadd.f32 %v471, %v1721
        %v1723 = vpop.f32.mrb[0].mxu0
        %1724 = vdwg.mxu0
        %1725 = vrot.lane.b32.xlu0 %v481, 120
        %v1726 = vpop.permute.xlu0 %1725
        %1727 = vrot.lane.b32.xlu0 %v481, 88
        %v1728 = vpop.permute.xlu0 %1727
        %v1730 = vsel %vm487, %v1726, 0
        %v1733 = vsel %vm487, %v1728, 0
        %1735 = vmatprep.subr.bf16.mxu0 0
        %1736 = vmatpush1.bf16.xpose.msra.mxu0 %v1733
        %1737 = vmatprep.subr.bf16.mxu0 0
        %1738 = vmatpush1.bf16.xpose.msra.mxu0 0
        %1739 = vmatprep.subr.bf16.mxu0 0
        %1740 = vmatpush1.bf16.xpose.msra.mxu0 0
        %1741 = vmatprep.subr.bf16.mxu0 0
        %1742 = vmatpush1.bf16.xpose.msra.mxu0 0
        %1743 = vmatprep.subr.bf16.mxu0 0
        %1744 = vmatpush1.bf16.xpose.msra.mxu0 0
        %1745 = vmatprep.subr.bf16.mxu0 0
        %1746 = vmatpush1.bf16.xpose.msra.mxu0 0
        %1747 = vmatprep.subr.bf16.mxu0 0
        %1748 = vmatpush1.bf16.xpose.msra.mxu0 0
        %1749 = vmatprep.subr.bf16.mxu0 0
        %1750 = vmatpush1.bf16.xpose.msra.mxu0 0
        %1751 = vmatprep.subr.bf16.mxu0 0
        %1752 = vmatpush1.bf16.xpose.msra.mxu0 0
        %1753 = vmatprep.subr.bf16.mxu0 0
        %1754 = vmatpush1.bf16.xpose.msra.mxu0 0
        %1755 = vmatprep.subr.bf16.mxu0 0
        %1756 = vmatpush1.bf16.xpose.msra.mxu0 0
        %1757 = vmatprep.subr.bf16.mxu0 0
        %1758 = vmatpush1.bf16.xpose.msra.mxu0 0
        %1759 = vmatprep.subr.bf16.mxu0 0
        %1760 = vmatpush1.bf16.xpose.msra.mxu0 0
        %1761 = vmatprep.subr.bf16.mxu0 0
        %1762 = vmatpush1.bf16.xpose.msra.mxu0 0
        %1763 = vmatprep.subr.bf16.mxu0 0
        %1764 = vmatpush1.bf16.xpose.msra.mxu0 0
        %1765 = vmatprep.subr.bf16.mxu0 0
        %1766 = vmatpush1.bf16.xpose.msra.mxu0 0
        %1767 = vmatprep.mubr.bf16.mxu0 0
        %1768 = vmatmul.mubr.bf16.gmra.mrb[0].mxu0 %v1730
        %v1769 = vpop.f32.mrb[0].mxu0
        %v1770 = vadd.f32 %v470, %v1769
        %v1771 = vpop.f32.mrb[0].mxu0
        %v1772 = vpop.f32.mrb[0].mxu0
        %v1773 = vadd.f32 %v471, %v1772
        %v1774 = vpop.f32.mrb[0].mxu0
        %1775 = vdwg.mxu0
        %1776 = vrot.lane.b32.xlu0 %v482, 120
        %v1777 = vpop.permute.xlu0 %1776
        %1778 = vrot.lane.b32.xlu0 %v482, 88
        %v1779 = vpop.permute.xlu0 %1778
        %v1781 = vsel %vm487, %v1777, 0
        %v1784 = vsel %vm487, %v1779, 0
        %1786 = vmatprep.subr.bf16.mxu0 0
        %1787 = vmatpush1.bf16.xpose.msra.mxu0 %v1784
        %1788 = vmatprep.subr.bf16.mxu0 0
        %1789 = vmatpush1.bf16.xpose.msra.mxu0 0
        %1790 = vmatprep.subr.bf16.mxu0 0
        %1791 = vmatpush1.bf16.xpose.msra.mxu0 0
        %1792 = vmatprep.subr.bf16.mxu0 0
        %1793 = vmatpush1.bf16.xpose.msra.mxu0 0
        %1794 = vmatprep.subr.bf16.mxu0 0
        %1795 = vmatpush1.bf16.xpose.msra.mxu0 0
        %1796 = vmatprep.subr.bf16.mxu0 0
        %1797 = vmatpush1.bf16.xpose.msra.mxu0 0
        %1798 = vmatprep.subr.bf16.mxu0 0
        %1799 = vmatpush1.bf16.xpose.msra.mxu0 0
        %1800 = vmatprep.subr.bf16.mxu0 0
        %1801 = vmatpush1.bf16.xpose.msra.mxu0 0
        %1802 = vmatprep.subr.bf16.mxu0 0
        %1803 = vmatpush1.bf16.xpose.msra.mxu0 0
        %1804 = vmatprep.subr.bf16.mxu0 0
        %1805 = vmatpush1.bf16.xpose.msra.mxu0 0
        %1806 = vmatprep.subr.bf16.mxu0 0
        %1807 = vmatpush1.bf16.xpose.msra.mxu0 0
        %1808 = vmatprep.subr.bf16.mxu0 0
        %1809 = vmatpush1.bf16.xpose.msra.mxu0 0
        %1810 = vmatprep.subr.bf16.mxu0 0
        %1811 = vmatpush1.bf16.xpose.msra.mxu0 0
        %1812 = vmatprep.subr.bf16.mxu0 0
        %1813 = vmatpush1.bf16.xpose.msra.mxu0 0
        %1814 = vmatprep.subr.bf16.mxu0 0
        %1815 = vmatpush1.bf16.xpose.msra.mxu0 0
        %1816 = vmatprep.subr.bf16.mxu0 0
        %1817 = vmatpush1.bf16.xpose.msra.mxu0 0
        %1818 = vmatprep.mubr.bf16.mxu0 0
        %1819 = vmatmul.mubr.bf16.gmra.mrb[0].mxu0 %v1781
        %v1820 = vpop.f32.mrb[0].mxu0
        %v1821 = vadd.f32 %v470, %v1820
        %v1822 = vpop.f32.mrb[0].mxu0
        %v1823 = vpop.f32.mrb[0].mxu0
        %v1824 = vadd.f32 %v471, %v1823
        %v1825 = vpop.f32.mrb[0].mxu0
        %1826 = vdwg.mxu0
        %1827 = vrot.lane.b32.xlu0 %v483, 120
        %v1828 = vpop.permute.xlu0 %1827
        %1829 = vrot.lane.b32.xlu0 %v483, 88
        %v1830 = vpop.permute.xlu0 %1829
        %v1832 = vsel %vm487, %v1828, 0
        %v1835 = vsel %vm487, %v1830, 0
        %1837 = vmatprep.subr.bf16.mxu0 0
        %1838 = vmatpush1.bf16.xpose.msra.mxu0 %v1835
        %1839 = vmatprep.subr.bf16.mxu0 0
        %1840 = vmatpush1.bf16.xpose.msra.mxu0 0
        %1841 = vmatprep.subr.bf16.mxu0 0
        %1842 = vmatpush1.bf16.xpose.msra.mxu0 0
        %1843 = vmatprep.subr.bf16.mxu0 0
        %1844 = vmatpush1.bf16.xpose.msra.mxu0 0
        %1845 = vmatprep.subr.bf16.mxu0 0
        %1846 = vmatpush1.bf16.xpose.msra.mxu0 0
        %1847 = vmatprep.subr.bf16.mxu0 0
        %1848 = vmatpush1.bf16.xpose.msra.mxu0 0
        %1849 = vmatprep.subr.bf16.mxu0 0
        %1850 = vmatpush1.bf16.xpose.msra.mxu0 0
        %1851 = vmatprep.subr.bf16.mxu0 0
        %1852 = vmatpush1.bf16.xpose.msra.mxu0 0
        %1853 = vmatprep.subr.bf16.mxu0 0
        %1854 = vmatpush1.bf16.xpose.msra.mxu0 0
        %1855 = vmatprep.subr.bf16.mxu0 0
        %1856 = vmatpush1.bf16.xpose.msra.mxu0 0
        %1857 = vmatprep.subr.bf16.mxu0 0
        %1858 = vmatpush1.bf16.xpose.msra.mxu0 0
        %1859 = vmatprep.subr.bf16.mxu0 0
        %1860 = vmatpush1.bf16.xpose.msra.mxu0 0
        %1861 = vmatprep.subr.bf16.mxu0 0
        %1862 = vmatpush1.bf16.xpose.msra.mxu0 0
        %1863 = vmatprep.subr.bf16.mxu0 0
        %1864 = vmatpush1.bf16.xpose.msra.mxu0 0
        %1865 = vmatprep.subr.bf16.mxu0 0
        %1866 = vmatpush1.bf16.xpose.msra.mxu0 0
        %1867 = vmatprep.subr.bf16.mxu0 0
        %1868 = vmatpush1.bf16.xpose.msra.mxu0 0
        %1869 = vmatprep.mubr.bf16.mxu0 0
        %1870 = vmatmul.mubr.bf16.gmra.mrb[0].mxu0 %v1832
        %v1871 = vpop.f32.mrb[0].mxu0
        %v1872 = vadd.f32 %v470, %v1871
        %v1873 = vpop.f32.mrb[0].mxu0
        %v1874 = vpop.f32.mrb[0].mxu0
        %v1875 = vadd.f32 %v471, %v1874
        %v1876 = vpop.f32.mrb[0].mxu0
        %1877 = vdwg.mxu0
        %v1878 = vsel %vm885, %v1515, -inf
        %1879 = vmax.xlane.f32.xlu0 %v1878
        %v1880 = vpop.xlane.xlu0 %1879
        %v1881 = vsel %vm885, %v1518, -inf
        %1882 = vmax.xlane.f32.xlu0 %v1881
        %v1883 = vpop.xlane.xlu0 %1882
        %v1884 = vsel %vm885, %v1566, -inf
        %1885 = vmax.xlane.f32.xlu0 %v1884
        %v1886 = vpop.xlane.xlu0 %1885
        %v1887 = vsel %vm885, %v1569, -inf
        %1888 = vmax.xlane.f32.xlu0 %v1887
        %v1889 = vpop.xlane.xlu0 %1888
        %v1890 = vsel %vm885, %v1617, -inf
        %1891 = vmax.xlane.f32.xlu0 %v1890
        %v1892 = vpop.xlane.xlu0 %1891
        %v1893 = vsel %vm885, %v1620, -inf
        %1894 = vmax.xlane.f32.xlu0 %v1893
        %v1895 = vpop.xlane.xlu0 %1894
        %v1896 = vsel %vm885, %v1668, -inf
        %1897 = vmax.xlane.f32.xlu0 %v1896
        %v1898 = vpop.xlane.xlu0 %1897
        %v1899 = vsel %vm885, %v1671, -inf
        %1900 = vmax.xlane.f32.xlu0 %v1899
        %v1901 = vpop.xlane.xlu0 %1900
        %v1902 = vsel %vm885, %v1719, -inf
        %1903 = vmax.xlane.f32.xlu0 %v1902
        %v1904 = vpop.xlane.xlu0 %1903
        %v1905 = vsel %vm885, %v1722, -inf
        %1906 = vmax.xlane.f32.xlu0 %v1905
        %v1907 = vpop.xlane.xlu0 %1906
        %v1908 = vsel %vm885, %v1770, -inf
        %1909 = vmax.xlane.f32.xlu0 %v1908
        %v1910 = vpop.xlane.xlu0 %1909
        %v1911 = vsel %vm885, %v1773, -inf
        %1912 = vmax.xlane.f32.xlu0 %v1911
        %v1913 = vpop.xlane.xlu0 %1912
        %v1914 = vsel %vm885, %v1821, -inf
        %1915 = vmax.xlane.f32.xlu0 %v1914
        %v1916 = vpop.xlane.xlu0 %1915
        %v1917 = vsel %vm885, %v1824, -inf
        %1918 = vmax.xlane.f32.xlu0 %v1917
        %v1919 = vpop.xlane.xlu0 %1918
        %v1920 = vsel %vm885, %v1872, -inf
        %1921 = vmax.xlane.f32.xlu0 %v1920
        %v1922 = vpop.xlane.xlu0 %1921
        %v1923 = vsel %vm885, %v1875, -inf
        %1924 = vmax.xlane.f32.xlu0 %v1923
        %v1925 = vpop.xlane.xlu0 %1924
        %v1926 = vsub.f32 %v1515, %v1880
        %v1927 = vsub.f32 %v1518, %v1883
        %v1928 = vsub.f32 %v1566, %v1886
        %v1929 = vsub.f32 %v1569, %v1889
        %v1930 = vsub.f32 %v1617, %v1892
        %v1931 = vsub.f32 %v1620, %v1895
        %v1932 = vsub.f32 %v1668, %v1898
        %v1933 = vsub.f32 %v1671, %v1901
        %v1934 = vsub.f32 %v1719, %v1904
        %v1935 = vsub.f32 %v1722, %v1907
        %v1936 = vsub.f32 %v1770, %v1910
        %v1937 = vsub.f32 %v1773, %v1913
        %v1938 = vsub.f32 %v1821, %v1916
        %v1939 = vsub.f32 %v1824, %v1919
        %v1940 = vsub.f32 %v1872, %v1922
        %v1941 = vsub.f32 %v1875, %v1925
        %v1942 = vmul.f32 %v1926, 1.442695
        %v1943 = vpow.pop %v1942
        %v1944 = vmul.f32 %v1927, 1.442695
        %v1945 = vpow.pop %v1944
        %v1946 = vmul.f32 %v1928, 1.442695
        %v1947 = vpow.pop %v1946
        %v1948 = vmul.f32 %v1929, 1.442695
        %v1949 = vpow.pop %v1948
        %v1950 = vmul.f32 %v1930, 1.442695
        %v1951 = vpow.pop %v1950
        %v1952 = vmul.f32 %v1931, 1.442695
        %v1953 = vpow.pop %v1952
        %v1954 = vmul.f32 %v1932, 1.442695
        %v1955 = vpow.pop %v1954
        %v1956 = vmul.f32 %v1933, 1.442695
        %v1957 = vpow.pop %v1956
        %v1958 = vmul.f32 %v1934, 1.442695
        %v1959 = vpow.pop %v1958
        %v1960 = vmul.f32 %v1935, 1.442695
        %v1961 = vpow.pop %v1960
        %v1962 = vmul.f32 %v1936, 1.442695
        %v1963 = vpow.pop %v1962
        %v1964 = vmul.f32 %v1937, 1.442695
        %v1965 = vpow.pop %v1964
        %v1966 = vmul.f32 %v1938, 1.442695
        %v1967 = vpow.pop %v1966
        %v1968 = vmul.f32 %v1939, 1.442695
        %v1969 = vpow.pop %v1968
        %v1970 = vmul.f32 %v1940, 1.442695
        %v1971 = vpow.pop %v1970
        %v1972 = vmul.f32 %v1941, 1.442695
        %v1973 = vpow.pop %v1972
        %v1974 = vsel %vm885, %v1943, 0.0
        %1975 = vadd.xlane.f32.xlu0 %v1974
        %v1976 = vpop.xlane.xlu0 %1975
        %v1977 = vsel %vm885, %v1945, 0.0
        %1978 = vadd.xlane.f32.xlu0 %v1977
        %v1979 = vpop.xlane.xlu0 %1978
        %v1980 = vsel %vm885, %v1947, 0.0
        %1981 = vadd.xlane.f32.xlu0 %v1980
        %v1982 = vpop.xlane.xlu0 %1981
        %v1983 = vsel %vm885, %v1949, 0.0
        %1984 = vadd.xlane.f32.xlu0 %v1983
        %v1985 = vpop.xlane.xlu0 %1984
        %v1986 = vsel %vm885, %v1951, 0.0
        %1987 = vadd.xlane.f32.xlu0 %v1986
        %v1988 = vpop.xlane.xlu0 %1987
        %v1989 = vsel %vm885, %v1953, 0.0
        %1990 = vadd.xlane.f32.xlu0 %v1989
        %v1991 = vpop.xlane.xlu0 %1990
        %v1992 = vsel %vm885, %v1955, 0.0
        %1993 = vadd.xlane.f32.xlu0 %v1992
        %v1994 = vpop.xlane.xlu0 %1993
        %v1995 = vsel %vm885, %v1957, 0.0
        %1996 = vadd.xlane.f32.xlu0 %v1995
        %v1997 = vpop.xlane.xlu0 %1996
        %v1998 = vsel %vm885, %v1959, 0.0
        %1999 = vadd.xlane.f32.xlu0 %v1998
        %v2000 = vpop.xlane.xlu0 %1999
        %v2001 = vsel %vm885, %v1961, 0.0
        %2002 = vadd.xlane.f32.xlu0 %v2001
        %v2003 = vpop.xlane.xlu0 %2002
        %v2004 = vsel %vm885, %v1963, 0.0
        %2005 = vadd.xlane.f32.xlu0 %v2004
        %v2006 = vpop.xlane.xlu0 %2005
        %v2007 = vsel %vm885, %v1965, 0.0
        %2008 = vadd.xlane.f32.xlu0 %v2007
        %v2009 = vpop.xlane.xlu0 %2008
        %v2010 = vsel %vm885, %v1967, 0.0
        %2011 = vadd.xlane.f32.xlu0 %v2010
        %v2012 = vpop.xlane.xlu0 %2011
        %v2013 = vsel %vm885, %v1969, 0.0
        %2014 = vadd.xlane.f32.xlu0 %v2013
        %v2015 = vpop.xlane.xlu0 %2014
        %v2016 = vsel %vm885, %v1971, 0.0
        %2017 = vadd.xlane.f32.xlu0 %v2016
        %v2018 = vpop.xlane.xlu0 %2017
        %v2019 = vsel %vm885, %v1973, 0.0
        %2020 = vadd.xlane.f32.xlu0 %v2019
        %v2021 = vpop.xlane.xlu0 %2020
        %v2022 = vrcp.pop %v1976
        %v2023 = vrcp.pop %v1979
        %v2024 = vrcp.pop %v1982
        %v2025 = vrcp.pop %v1985
        %v2026 = vrcp.pop %v1988
        %v2027 = vrcp.pop %v1991
        %v2028 = vrcp.pop %v1994
        %v2029 = vrcp.pop %v1997
        %v2030 = vrcp.pop %v2000
        %v2031 = vrcp.pop %v2003
        %v2032 = vrcp.pop %v2006
        %v2033 = vrcp.pop %v2009
        %v2034 = vrcp.pop %v2012
        %v2035 = vrcp.pop %v2015
        %v2036 = vrcp.pop %v2018
        %v2037 = vrcp.pop %v2021
        %v2038 = vmul.f32 %v1943, %v2022
        %v2039 = vmul.f32 %v1945, %v2023
        %v2040 = vmul.f32 %v1947, %v2024
        %v2041 = vmul.f32 %v1949, %v2025
        %v2042 = vmul.f32 %v1951, %v2026
        %v2043 = vmul.f32 %v1953, %v2027
        %v2044 = vmul.f32 %v1955, %v2028
        %v2045 = vmul.f32 %v1957, %v2029
        %v2046 = vmul.f32 %v1959, %v2030
        %v2047 = vmul.f32 %v1961, %v2031
        %v2048 = vmul.f32 %v1963, %v2032
        %v2049 = vmul.f32 %v1965, %v2033
        %v2050 = vmul.f32 %v1967, %v2034
        %v2051 = vmul.f32 %v1969, %v2035
        %v2052 = vmul.f32 %v1971, %v2036
        %v2053 = vmul.f32 %v1973, %v2037
        %s2054 = scalar_lea.vmem %s280, 16 [#allocation2]
        %2055 = vst.msk [vmem:[%s2054] sm:$0xff] %vm885, %v2038
        %2056 = vst.msk [vmem:[%s2054 + $0x8] sm:$0xff] %vm885, %v2039
        %2057 = vst.msk [vmem:[%s2054 + $0x40] sm:$0xff] %vm885, %v2040
        %2058 = vst.msk [vmem:[%s2054 + $0x48] sm:$0xff] %vm885, %v2041
        %2059 = vst.msk [vmem:[%s2054 + $0x80] sm:$0xff] %vm885, %v2042
        %2060 = vst.msk [vmem:[%s2054 + $0x88] sm:$0xff] %vm885, %v2043
        %2061 = vst.msk [vmem:[%s2054 + $0xc0] sm:$0xff] %vm885, %v2044
        %2062 = vst.msk [vmem:[%s2054 + $0xc8] sm:$0xff] %vm885, %v2045
        %2063 = vst.msk [vmem:[%s2054 + $0x100] sm:$0xff] %vm885, %v2046
        %2064 = vst.msk [vmem:[%s2054 + $0x108] sm:$0xff] %vm885, %v2047
        %2065 = vst.msk [vmem:[%s2054 + $0x140] sm:$0xff] %vm885, %v2048
        %2066 = vst.msk [vmem:[%s2054 + $0x148] sm:$0xff] %vm885, %v2049
        %2067 = vst.msk [vmem:[%s2054 + $0x180] sm:$0xff] %vm885, %v2050
        %2068 = vst.msk [vmem:[%s2054 + $0x188] sm:$0xff] %vm885, %v2051
        %2069 = vst.msk [vmem:[%s2054 + $0x1c0] sm:$0xff] %vm885, %v2052
        %2070 = vst.msk [vmem:[%s2054 + $0x1c8] sm:$0xff] %vm885, %v2053
        %v2071 = vpack.c.bf16 %v2039, %v2038
        %v2072 = vpack.c.bf16 %v2041, %v2040
        %v2073 = vpack.c.bf16 %v2043, %v2042
        %v2074 = vpack.c.bf16 %v2045, %v2044
        %v2075 = vpack.c.bf16 %v2047, %v2046
        %v2076 = vpack.c.bf16 %v2049, %v2048
        %v2077 = vpack.c.bf16 %v2051, %v2050
        %v2078 = vpack.c.bf16 %v2053, %v2052
        %2079 = vrot.lane.b32.xlu0 %v476, 56
        %v2080 = vpop.permute.xlu0 %2079
        %v2083 = vsel %vm885, %v2071, 0
        %2085 = vmatprep.subr.bf16.mxu0 0
        %2086 = vmatpush1.bf16.msra.mxu0 %v2080
        %2087 = vmatprep.subr.bf16.mxu0 0
        %2088 = vmatpush1.bf16.msra.mxu0 0
        %2089 = vmatprep.subr.bf16.mxu0 0
        %2090 = vmatpush1.bf16.msra.mxu0 0
        %2091 = vmatprep.subr.bf16.mxu0 0
        %2092 = vmatpush1.bf16.msra.mxu0 0
        %2093 = vmatprep.subr.bf16.mxu0 0
        %2094 = vmatpush1.bf16.msra.mxu0 0
        %2095 = vmatprep.subr.bf16.mxu0 0
        %2096 = vmatpush1.bf16.msra.mxu0 0
        %2097 = vmatprep.subr.bf16.mxu0 0
        %2098 = vmatpush1.bf16.msra.mxu0 0
        %2099 = vmatprep.subr.bf16.mxu0 0
        %2100 = vmatpush1.bf16.msra.mxu0 0
        %2101 = vmatprep.subr.bf16.mxu0 0
        %2102 = vmatpush1.bf16.msra.mxu0 0
        %2103 = vmatprep.subr.bf16.mxu0 0
        %2104 = vmatpush1.bf16.msra.mxu0 0
        %2105 = vmatprep.subr.bf16.mxu0 0
        %2106 = vmatpush1.bf16.msra.mxu0 0
        %2107 = vmatprep.subr.bf16.mxu0 0
        %2108 = vmatpush1.bf16.msra.mxu0 0
        %2109 = vmatprep.subr.bf16.mxu0 0
        %2110 = vmatpush1.bf16.msra.mxu0 0
        %2111 = vmatprep.subr.bf16.mxu0 0
        %2112 = vmatpush1.bf16.msra.mxu0 0
        %2113 = vmatprep.subr.bf16.mxu0 0
        %2114 = vmatpush1.bf16.msra.mxu0 0
        %2115 = vmatprep.subr.bf16.mxu0 0
        %2116 = vmatpush1.bf16.msra.mxu0 0
        %2117 = vmatprep.mubr.bf16.mxu0 0
        %2118 = vmatmul.mubr.bf16.gmra.mrb[0].mxu0 %v2083
        %v2119 = vpop.f32.mrb[0].mxu0
        %v2120 = vadd.f32 0.0, %v2119
        %v2121 = vpop.f32.mrb[0].mxu0
        %v2122 = vpop.f32.mrb[0].mxu0
        %v2123 = vadd.f32 0.0, %v2122
        %v2124 = vpop.f32.mrb[0].mxu0
        %2125 = vdwg.mxu0
        %2126 = vrot.lane.b32.xlu0 %v477, 56
        %v2127 = vpop.permute.xlu0 %2126
        %v2130 = vsel %vm885, %v2072, 0
        %2132 = vmatprep.subr.bf16.mxu0 0
        %2133 = vmatpush1.bf16.msra.mxu0 %v2127
        %2134 = vmatprep.subr.bf16.mxu0 0
        %2135 = vmatpush1.bf16.msra.mxu0 0
        %2136 = vmatprep.subr.bf16.mxu0 0
        %2137 = vmatpush1.bf16.msra.mxu0 0
        %2138 = vmatprep.subr.bf16.mxu0 0
        %2139 = vmatpush1.bf16.msra.mxu0 0
        %2140 = vmatprep.subr.bf16.mxu0 0
        %2141 = vmatpush1.bf16.msra.mxu0 0
        %2142 = vmatprep.subr.bf16.mxu0 0
        %2143 = vmatpush1.bf16.msra.mxu0 0
        %2144 = vmatprep.subr.bf16.mxu0 0
        %2145 = vmatpush1.bf16.msra.mxu0 0
        %2146 = vmatprep.subr.bf16.mxu0 0
        %2147 = vmatpush1.bf16.msra.mxu0 0
        %2148 = vmatprep.subr.bf16.mxu0 0
        %2149 = vmatpush1.bf16.msra.mxu0 0
        %2150 = vmatprep.subr.bf16.mxu0 0
        %2151 = vmatpush1.bf16.msra.mxu0 0
        %2152 = vmatprep.subr.bf16.mxu0 0
        %2153 = vmatpush1.bf16.msra.mxu0 0
        %2154 = vmatprep.subr.bf16.mxu0 0
        %2155 = vmatpush1.bf16.msra.mxu0 0
        %2156 = vmatprep.subr.bf16.mxu0 0
        %2157 = vmatpush1.bf16.msra.mxu0 0
        %2158 = vmatprep.subr.bf16.mxu0 0
        %2159 = vmatpush1.bf16.msra.mxu0 0
        %2160 = vmatprep.subr.bf16.mxu0 0
        %2161 = vmatpush1.bf16.msra.mxu0 0
        %2162 = vmatprep.subr.bf16.mxu0 0
        %2163 = vmatpush1.bf16.msra.mxu0 0
        %2164 = vmatprep.mubr.bf16.mxu0 0
        %2165 = vmatmul.mubr.bf16.gmra.mrb[0].mxu0 %v2130
        %v2166 = vpop.f32.mrb[0].mxu0
        %v2167 = vadd.f32 0.0, %v2166
        %v2168 = vpop.f32.mrb[0].mxu0
        %v2169 = vpop.f32.mrb[0].mxu0
        %v2170 = vadd.f32 0.0, %v2169
        %v2171 = vpop.f32.mrb[0].mxu0
        %2172 = vdwg.mxu0
        %2173 = vrot.lane.b32.xlu0 %v478, 56
        %v2174 = vpop.permute.xlu0 %2173
        %v2177 = vsel %vm885, %v2073, 0
        %2179 = vmatprep.subr.bf16.mxu0 0
        %2180 = vmatpush1.bf16.msra.mxu0 %v2174
        %2181 = vmatprep.subr.bf16.mxu0 0
        %2182 = vmatpush1.bf16.msra.mxu0 0
        %2183 = vmatprep.subr.bf16.mxu0 0
        %2184 = vmatpush1.bf16.msra.mxu0 0
        %2185 = vmatprep.subr.bf16.mxu0 0
        %2186 = vmatpush1.bf16.msra.mxu0 0
        %2187 = vmatprep.subr.bf16.mxu0 0
        %2188 = vmatpush1.bf16.msra.mxu0 0
        %2189 = vmatprep.subr.bf16.mxu0 0
        %2190 = vmatpush1.bf16.msra.mxu0 0
        %2191 = vmatprep.subr.bf16.mxu0 0
        %2192 = vmatpush1.bf16.msra.mxu0 0
        %2193 = vmatprep.subr.bf16.mxu0 0
        %2194 = vmatpush1.bf16.msra.mxu0 0
        %2195 = vmatprep.subr.bf16.mxu0 0
        %2196 = vmatpush1.bf16.msra.mxu0 0
        %2197 = vmatprep.subr.bf16.mxu0 0
        %2198 = vmatpush1.bf16.msra.mxu0 0
        %2199 = vmatprep.subr.bf16.mxu0 0
        %2200 = vmatpush1.bf16.msra.mxu0 0
        %2201 = vmatprep.subr.bf16.mxu0 0
        %2202 = vmatpush1.bf16.msra.mxu0 0
        %2203 = vmatprep.subr.bf16.mxu0 0
        %2204 = vmatpush1.bf16.msra.mxu0 0
        %2205 = vmatprep.subr.bf16.mxu0 0
        %2206 = vmatpush1.bf16.msra.mxu0 0
        %2207 = vmatprep.subr.bf16.mxu0 0
        %2208 = vmatpush1.bf16.msra.mxu0 0
        %2209 = vmatprep.subr.bf16.mxu0 0
        %2210 = vmatpush1.bf16.msra.mxu0 0
        %2211 = vmatprep.mubr.bf16.mxu0 0
        %2212 = vmatmul.mubr.bf16.gmra.mrb[0].mxu0 %v2177
        %v2213 = vpop.f32.mrb[0].mxu0
        %v2214 = vadd.f32 0.0, %v2213
        %v2215 = vpop.f32.mrb[0].mxu0
        %v2216 = vpop.f32.mrb[0].mxu0
        %v2217 = vadd.f32 0.0, %v2216
        %v2218 = vpop.f32.mrb[0].mxu0
        %2219 = vdwg.mxu0
        %2220 = vrot.lane.b32.xlu0 %v479, 56
        %v2221 = vpop.permute.xlu0 %2220
        %v2224 = vsel %vm885, %v2074, 0
        %2226 = vmatprep.subr.bf16.mxu0 0
        %2227 = vmatpush1.bf16.msra.mxu0 %v2221
        %2228 = vmatprep.subr.bf16.mxu0 0
        %2229 = vmatpush1.bf16.msra.mxu0 0
        %2230 = vmatprep.subr.bf16.mxu0 0
        %2231 = vmatpush1.bf16.msra.mxu0 0
        %2232 = vmatprep.subr.bf16.mxu0 0
        %2233 = vmatpush1.bf16.msra.mxu0 0
        %2234 = vmatprep.subr.bf16.mxu0 0
        %2235 = vmatpush1.bf16.msra.mxu0 0
        %2236 = vmatprep.subr.bf16.mxu0 0
        %2237 = vmatpush1.bf16.msra.mxu0 0
        %2238 = vmatprep.subr.bf16.mxu0 0
        %2239 = vmatpush1.bf16.msra.mxu0 0
        %2240 = vmatprep.subr.bf16.mxu0 0
        %2241 = vmatpush1.bf16.msra.mxu0 0
        %2242 = vmatprep.subr.bf16.mxu0 0
        %2243 = vmatpush1.bf16.msra.mxu0 0
        %2244 = vmatprep.subr.bf16.mxu0 0
        %2245 = vmatpush1.bf16.msra.mxu0 0
        %2246 = vmatprep.subr.bf16.mxu0 0
        %2247 = vmatpush1.bf16.msra.mxu0 0
        %2248 = vmatprep.subr.bf16.mxu0 0
        %2249 = vmatpush1.bf16.msra.mxu0 0
        %2250 = vmatprep.subr.bf16.mxu0 0
        %2251 = vmatpush1.bf16.msra.mxu0 0
        %2252 = vmatprep.subr.bf16.mxu0 0
        %2253 = vmatpush1.bf16.msra.mxu0 0
        %2254 = vmatprep.subr.bf16.mxu0 0
        %2255 = vmatpush1.bf16.msra.mxu0 0
        %2256 = vmatprep.subr.bf16.mxu0 0
        %2257 = vmatpush1.bf16.msra.mxu0 0
        %2258 = vmatprep.mubr.bf16.mxu0 0
        %2259 = vmatmul.mubr.bf16.gmra.mrb[0].mxu0 %v2224
        %v2260 = vpop.f32.mrb[0].mxu0
        %v2261 = vadd.f32 0.0, %v2260
        %v2262 = vpop.f32.mrb[0].mxu0
        %v2263 = vpop.f32.mrb[0].mxu0
        %v2264 = vadd.f32 0.0, %v2263
        %v2265 = vpop.f32.mrb[0].mxu0
        %2266 = vdwg.mxu0
        %2267 = vrot.lane.b32.xlu0 %v480, 56
        %v2268 = vpop.permute.xlu0 %2267
        %v2271 = vsel %vm885, %v2075, 0
        %2273 = vmatprep.subr.bf16.mxu0 0
        %2274 = vmatpush1.bf16.msra.mxu0 %v2268
        %2275 = vmatprep.subr.bf16.mxu0 0
        %2276 = vmatpush1.bf16.msra.mxu0 0
        %2277 = vmatprep.subr.bf16.mxu0 0
        %2278 = vmatpush1.bf16.msra.mxu0 0
        %2279 = vmatprep.subr.bf16.mxu0 0
        %2280 = vmatpush1.bf16.msra.mxu0 0
        %2281 = vmatprep.subr.bf16.mxu0 0
        %2282 = vmatpush1.bf16.msra.mxu0 0
        %2283 = vmatprep.subr.bf16.mxu0 0
        %2284 = vmatpush1.bf16.msra.mxu0 0
        %2285 = vmatprep.subr.bf16.mxu0 0
        %2286 = vmatpush1.bf16.msra.mxu0 0
        %2287 = vmatprep.subr.bf16.mxu0 0
        %2288 = vmatpush1.bf16.msra.mxu0 0
        %2289 = vmatprep.subr.bf16.mxu0 0
        %2290 = vmatpush1.bf16.msra.mxu0 0
        %2291 = vmatprep.subr.bf16.mxu0 0
        %2292 = vmatpush1.bf16.msra.mxu0 0
        %2293 = vmatprep.subr.bf16.mxu0 0
        %2294 = vmatpush1.bf16.msra.mxu0 0
        %2295 = vmatprep.subr.bf16.mxu0 0
        %2296 = vmatpush1.bf16.msra.mxu0 0
        %2297 = vmatprep.subr.bf16.mxu0 0
        %2298 = vmatpush1.bf16.msra.mxu0 0
        %2299 = vmatprep.subr.bf16.mxu0 0
        %2300 = vmatpush1.bf16.msra.mxu0 0
        %2301 = vmatprep.subr.bf16.mxu0 0
        %2302 = vmatpush1.bf16.msra.mxu0 0
        %2303 = vmatprep.subr.bf16.mxu0 0
        %2304 = vmatpush1.bf16.msra.mxu0 0
        %2305 = vmatprep.mubr.bf16.mxu0 0
        %2306 = vmatmul.mubr.bf16.gmra.mrb[0].mxu0 %v2271
        %v2307 = vpop.f32.mrb[0].mxu0
        %v2308 = vadd.f32 0.0, %v2307
        %v2309 = vpop.f32.mrb[0].mxu0
        %v2310 = vpop.f32.mrb[0].mxu0
        %v2311 = vadd.f32 0.0, %v2310
        %v2312 = vpop.f32.mrb[0].mxu0
        %2313 = vdwg.mxu0
        %2314 = vrot.lane.b32.xlu0 %v481, 56
        %v2315 = vpop.permute.xlu0 %2314
        %v2318 = vsel %vm885, %v2076, 0
        %2320 = vmatprep.subr.bf16.mxu0 0
        %2321 = vmatpush1.bf16.msra.mxu0 %v2315
        %2322 = vmatprep.subr.bf16.mxu0 0
        %2323 = vmatpush1.bf16.msra.mxu0 0
        %2324 = vmatprep.subr.bf16.mxu0 0
        %2325 = vmatpush1.bf16.msra.mxu0 0
        %2326 = vmatprep.subr.bf16.mxu0 0
        %2327 = vmatpush1.bf16.msra.mxu0 0
        %2328 = vmatprep.subr.bf16.mxu0 0
        %2329 = vmatpush1.bf16.msra.mxu0 0
        %2330 = vmatprep.subr.bf16.mxu0 0
        %2331 = vmatpush1.bf16.msra.mxu0 0
        %2332 = vmatprep.subr.bf16.mxu0 0
        %2333 = vmatpush1.bf16.msra.mxu0 0
        %2334 = vmatprep.subr.bf16.mxu0 0
        %2335 = vmatpush1.bf16.msra.mxu0 0
        %2336 = vmatprep.subr.bf16.mxu0 0
        %2337 = vmatpush1.bf16.msra.mxu0 0
        %2338 = vmatprep.subr.bf16.mxu0 0
        %2339 = vmatpush1.bf16.msra.mxu0 0
        %2340 = vmatprep.subr.bf16.mxu0 0
        %2341 = vmatpush1.bf16.msra.mxu0 0
        %2342 = vmatprep.subr.bf16.mxu0 0
        %2343 = vmatpush1.bf16.msra.mxu0 0
        %2344 = vmatprep.subr.bf16.mxu0 0
        %2345 = vmatpush1.bf16.msra.mxu0 0
        %2346 = vmatprep.subr.bf16.mxu0 0
        %2347 = vmatpush1.bf16.msra.mxu0 0
        %2348 = vmatprep.subr.bf16.mxu0 0
        %2349 = vmatpush1.bf16.msra.mxu0 0
        %2350 = vmatprep.subr.bf16.mxu0 0
        %2351 = vmatpush1.bf16.msra.mxu0 0
        %2352 = vmatprep.mubr.bf16.mxu0 0
        %2353 = vmatmul.mubr.bf16.gmra.mrb[0].mxu0 %v2318
        %v2354 = vpop.f32.mrb[0].mxu0
        %v2355 = vadd.f32 0.0, %v2354
        %v2356 = vpop.f32.mrb[0].mxu0
        %v2357 = vpop.f32.mrb[0].mxu0
        %v2358 = vadd.f32 0.0, %v2357
        %v2359 = vpop.f32.mrb[0].mxu0
        %2360 = vdwg.mxu0
        %2361 = vrot.lane.b32.xlu0 %v482, 56
        %v2362 = vpop.permute.xlu0 %2361
        %v2365 = vsel %vm885, %v2077, 0
        %2367 = vmatprep.subr.bf16.mxu0 0
        %2368 = vmatpush1.bf16.msra.mxu0 %v2362
        %2369 = vmatprep.subr.bf16.mxu0 0
        %2370 = vmatpush1.bf16.msra.mxu0 0
        %2371 = vmatprep.subr.bf16.mxu0 0
        %2372 = vmatpush1.bf16.msra.mxu0 0
        %2373 = vmatprep.subr.bf16.mxu0 0
        %2374 = vmatpush1.bf16.msra.mxu0 0
        %2375 = vmatprep.subr.bf16.mxu0 0
        %2376 = vmatpush1.bf16.msra.mxu0 0
        %2377 = vmatprep.subr.bf16.mxu0 0
        %2378 = vmatpush1.bf16.msra.mxu0 0
        %2379 = vmatprep.subr.bf16.mxu0 0
        %2380 = vmatpush1.bf16.msra.mxu0 0
        %2381 = vmatprep.subr.bf16.mxu0 0
        %2382 = vmatpush1.bf16.msra.mxu0 0
        %2383 = vmatprep.subr.bf16.mxu0 0
        %2384 = vmatpush1.bf16.msra.mxu0 0
        %2385 = vmatprep.subr.bf16.mxu0 0
        %2386 = vmatpush1.bf16.msra.mxu0 0
        %2387 = vmatprep.subr.bf16.mxu0 0
        %2388 = vmatpush1.bf16.msra.mxu0 0
        %2389 = vmatprep.subr.bf16.mxu0 0
        %2390 = vmatpush1.bf16.msra.mxu0 0
        %2391 = vmatprep.subr.bf16.mxu0 0
        %2392 = vmatpush1.bf16.msra.mxu0 0
        %2393 = vmatprep.subr.bf16.mxu0 0
        %2394 = vmatpush1.bf16.msra.mxu0 0
        %2395 = vmatprep.subr.bf16.mxu0 0
        %2396 = vmatpush1.bf16.msra.mxu0 0
        %2397 = vmatprep.subr.bf16.mxu0 0
        %2398 = vmatpush1.bf16.msra.mxu0 0
        %2399 = vmatprep.mubr.bf16.mxu0 0
        %2400 = vmatmul.mubr.bf16.gmra.mrb[0].mxu0 %v2365
        %v2401 = vpop.f32.mrb[0].mxu0
        %v2402 = vadd.f32 0.0, %v2401
        %v2403 = vpop.f32.mrb[0].mxu0
        %v2404 = vpop.f32.mrb[0].mxu0
        %v2405 = vadd.f32 0.0, %v2404
        %v2406 = vpop.f32.mrb[0].mxu0
        %2407 = vdwg.mxu0
        %2408 = vrot.lane.b32.xlu0 %v483, 56
        %v2409 = vpop.permute.xlu0 %2408
        %v2412 = vsel %vm885, %v2078, 0
        %2414 = vmatprep.subr.bf16.mxu0 0
        %2415 = vmatpush1.bf16.msra.mxu0 %v2409
        %2416 = vmatprep.subr.bf16.mxu0 0
        %2417 = vmatpush1.bf16.msra.mxu0 0
        %2418 = vmatprep.subr.bf16.mxu0 0
        %2419 = vmatpush1.bf16.msra.mxu0 0
        %2420 = vmatprep.subr.bf16.mxu0 0
        %2421 = vmatpush1.bf16.msra.mxu0 0
        %2422 = vmatprep.subr.bf16.mxu0 0
        %2423 = vmatpush1.bf16.msra.mxu0 0
        %2424 = vmatprep.subr.bf16.mxu0 0
        %2425 = vmatpush1.bf16.msra.mxu0 0
        %2426 = vmatprep.subr.bf16.mxu0 0
        %2427 = vmatpush1.bf16.msra.mxu0 0
        %2428 = vmatprep.subr.bf16.mxu0 0
        %2429 = vmatpush1.bf16.msra.mxu0 0
        %2430 = vmatprep.subr.bf16.mxu0 0
        %2431 = vmatpush1.bf16.msra.mxu0 0
        %2432 = vmatprep.subr.bf16.mxu0 0
        %2433 = vmatpush1.bf16.msra.mxu0 0
        %2434 = vmatprep.subr.bf16.mxu0 0
        %2435 = vmatpush1.bf16.msra.mxu0 0
        %2436 = vmatprep.subr.bf16.mxu0 0
        %2437 = vmatpush1.bf16.msra.mxu0 0
        %2438 = vmatprep.subr.bf16.mxu0 0
        %2439 = vmatpush1.bf16.msra.mxu0 0
        %2440 = vmatprep.subr.bf16.mxu0 0
        %2441 = vmatpush1.bf16.msra.mxu0 0
        %2442 = vmatprep.subr.bf16.mxu0 0
        %2443 = vmatpush1.bf16.msra.mxu0 0
        %2444 = vmatprep.subr.bf16.mxu0 0
        %2445 = vmatpush1.bf16.msra.mxu0 0
        %2446 = vmatprep.mubr.bf16.mxu0 0
        %2447 = vmatmul.mubr.bf16.gmra.mrb[0].mxu0 %v2412
        %v2448 = vpop.f32.mrb[0].mxu0
        %v2449 = vadd.f32 0.0, %v2448
        %v2450 = vpop.f32.mrb[0].mxu0
        %v2451 = vpop.f32.mrb[0].mxu0
        %v2452 = vadd.f32 0.0, %v2451
        %v2453 = vpop.f32.mrb[0].mxu0
        %2454 = vdwg.mxu0
        %v2455 = vpack.c.bf16 %v2123, %v2120
        %v2456 = vpack.c.bf16 %v2170, %v2167
        %v2457 = vpack.c.bf16 %v2217, %v2214
        %v2458 = vpack.c.bf16 %v2264, %v2261
        %v2459 = vpack.c.bf16 %v2311, %v2308
        %v2460 = vpack.c.bf16 %v2358, %v2355
        %v2461 = vpack.c.bf16 %v2405, %v2402
        %v2462 = vpack.c.bf16 %v2452, %v2449
        %v2464 = vsel %vm487, %v2455, 0
        %v2467 = vsel %vm487, %v2456, 0
        %v2470 = vsel %vm487, %v2457, 0
        %v2473 = vsel %vm487, %v2458, 0
        %v2476 = vsel %vm487, %v2459, 0
        %v2479 = vsel %vm487, %v2460, 0
        %v2482 = vsel %vm487, %v2461, 0
        %v2485 = vsel %vm487, %v2462, 0
        %vm2487 = vcmask 1043456
        %v2489 = vsel %vm2487, %v465, 0
        %2491 = vmatprep.subr.bf16.mxu0 0
        %2492 = vmatpush1.bf16.msra.mxu0 %v2489
        %2493 = vmatprep.subr.bf16.mxu0 0
        %2494 = vmatpush1.bf16.msra.mxu0 0
        %2495 = vmatprep.subr.bf16.mxu0 0
        %2496 = vmatpush1.bf16.msra.mxu0 0
        %2497 = vmatprep.subr.bf16.mxu0 0
        %2498 = vmatpush1.bf16.msra.mxu0 0
        %2499 = vmatprep.subr.bf16.mxu0 0
        %2500 = vmatpush1.bf16.msra.mxu0 0
        %2501 = vmatprep.subr.bf16.mxu0 0
        %2502 = vmatpush1.bf16.msra.mxu0 0
        %2503 = vmatprep.subr.bf16.mxu0 0
        %2504 = vmatpush1.bf16.msra.mxu0 0
        %2505 = vmatprep.subr.bf16.mxu0 0
        %2506 = vmatpush1.bf16.msra.mxu0 0
        %2507 = vmatprep.subr.bf16.mxu0 0
        %2508 = vmatpush1.bf16.msra.mxu0 0
        %2509 = vmatprep.subr.bf16.mxu0 0
        %2510 = vmatpush1.bf16.msra.mxu0 0
        %2511 = vmatprep.subr.bf16.mxu0 0
        %2512 = vmatpush1.bf16.msra.mxu0 0
        %2513 = vmatprep.subr.bf16.mxu0 0
        %2514 = vmatpush1.bf16.msra.mxu0 0
        %2515 = vmatprep.subr.bf16.mxu0 0
        %2516 = vmatpush1.bf16.msra.mxu0 0
        %2517 = vmatprep.subr.bf16.mxu0 0
        %2518 = vmatpush1.bf16.msra.mxu0 0
        %2519 = vmatprep.subr.bf16.mxu0 0
        %2520 = vmatpush1.bf16.msra.mxu0 0
        %2521 = vmatprep.subr.bf16.mxu0 0
        %2522 = vmatpush1.bf16.msra.mxu0 0
        %2523 = vmatprep.mubr.bf16.mxu0 0
        %2524 = vmatmul.mubr.bf16.gmra.mrb[0].mxu0 %v2464
        %v2525 = vpop.f32.mrb[0].mxu0
        %v2526 = vadd.f32 0.0, %v2525
        %v2527 = vpop.f32.mrb[0].mxu0
        %v2528 = vpop.f32.mrb[0].mxu0
        %v2529 = vadd.f32 0.0, %v2528
        %v2530 = vpop.f32.mrb[0].mxu0
        %2531 = vmatprep.mubr.bf16.mxu0 0
        %2532 = vmatmul.mubr.bf16.gmra.mrb[0].mxu0 %v2467
        %v2533 = vpop.f32.mrb[0].mxu0
        %v2534 = vadd.f32 0.0, %v2533
        %v2535 = vpop.f32.mrb[0].mxu0
        %v2536 = vpop.f32.mrb[0].mxu0
        %v2537 = vadd.f32 0.0, %v2536
        %v2538 = vpop.f32.mrb[0].mxu0
        %2539 = vmatprep.mubr.bf16.mxu0 0
        %2540 = vmatmul.mubr.bf16.gmra.mrb[0].mxu0 %v2470
        %v2541 = vpop.f32.mrb[0].mxu0
        %v2542 = vadd.f32 0.0, %v2541
        %v2543 = vpop.f32.mrb[0].mxu0
        %v2544 = vpop.f32.mrb[0].mxu0
        %v2545 = vadd.f32 0.0, %v2544
        %v2546 = vpop.f32.mrb[0].mxu0
        %2547 = vmatprep.mubr.bf16.mxu0 0
        %2548 = vmatmul.mubr.bf16.gmra.mrb[0].mxu0 %v2473
        %v2549 = vpop.f32.mrb[0].mxu0
        %v2550 = vadd.f32 0.0, %v2549
        %v2551 = vpop.f32.mrb[0].mxu0
        %v2552 = vpop.f32.mrb[0].mxu0
        %v2553 = vadd.f32 0.0, %v2552
        %v2554 = vpop.f32.mrb[0].mxu0
        %2555 = vmatprep.mubr.bf16.mxu0 0
        %2556 = vmatmul.mubr.bf16.gmra.mrb[0].mxu0 %v2476
        %v2557 = vpop.f32.mrb[0].mxu0
        %v2558 = vadd.f32 0.0, %v2557
        %v2559 = vpop.f32.mrb[0].mxu0
        %v2560 = vpop.f32.mrb[0].mxu0
        %v2561 = vadd.f32 0.0, %v2560
        %v2562 = vpop.f32.mrb[0].mxu0
        %2563 = vmatprep.mubr.bf16.mxu0 0
        %2564 = vmatmul.mubr.bf16.gmra.mrb[0].mxu0 %v2479
        %v2565 = vpop.f32.mrb[0].mxu0
        %v2566 = vadd.f32 0.0, %v2565
        %v2567 = vpop.f32.mrb[0].mxu0
        %v2568 = vpop.f32.mrb[0].mxu0
        %v2569 = vadd.f32 0.0, %v2568
        %v2570 = vpop.f32.mrb[0].mxu0
        %2571 = vmatprep.mubr.bf16.mxu0 0
        %2572 = vmatmul.mubr.bf16.gmra.mrb[0].mxu0 %v2482
        %v2573 = vpop.f32.mrb[0].mxu0
        %v2574 = vadd.f32 0.0, %v2573
        %v2575 = vpop.f32.mrb[0].mxu0
        %v2576 = vpop.f32.mrb[0].mxu0
        %v2577 = vadd.f32 0.0, %v2576
        %v2578 = vpop.f32.mrb[0].mxu0
        %2579 = vmatprep.mubr.bf16.mxu0 0
        %2580 = vmatmul.mubr.bf16.gmra.mrb[0].mxu0 %v2485
        %v2581 = vpop.f32.mrb[0].mxu0
        %v2582 = vadd.f32 0.0, %v2581
        %v2583 = vpop.f32.mrb[0].mxu0
        %v2584 = vpop.f32.mrb[0].mxu0
        %v2585 = vadd.f32 0.0, %v2584
        %v2586 = vpop.f32.mrb[0].mxu0
        %2587 = vdwg.mxu0
        %v2589 = vsel %vm487, %v1462, 0
        %v2592 = vsel %vm487, %v1463, 0
        %v2595 = vsel %vm487, %v1464, 0
        %v2598 = vsel %vm487, %v1465, 0
        %v2601 = vsel %vm487, %v1466, 0
        %v2604 = vsel %vm487, %v1467, 0
        %v2607 = vsel %vm487, %v1468, 0
        %v2610 = vsel %vm487, %v1469, 0
        %v2613 = vsel %vm2487, %v464, 0
        %2615 = vmatprep.subr.bf16.mxu0 0
        %2616 = vmatpush1.bf16.msra.mxu0 %v2613
        %2617 = vmatprep.subr.bf16.mxu0 0
        %2618 = vmatpush1.bf16.msra.mxu0 0
        %2619 = vmatprep.subr.bf16.mxu0 0
        %2620 = vmatpush1.bf16.msra.mxu0 0
        %2621 = vmatprep.subr.bf16.mxu0 0
        %2622 = vmatpush1.bf16.msra.mxu0 0
        %2623 = vmatprep.subr.bf16.mxu0 0
        %2624 = vmatpush1.bf16.msra.mxu0 0
        %2625 = vmatprep.subr.bf16.mxu0 0
        %2626 = vmatpush1.bf16.msra.mxu0 0
        %2627 = vmatprep.subr.bf16.mxu0 0
        %2628 = vmatpush1.bf16.msra.mxu0 0
        %2629 = vmatprep.subr.bf16.mxu0 0
        %2630 = vmatpush1.bf16.msra.mxu0 0
        %2631 = vmatprep.subr.bf16.mxu0 0
        %2632 = vmatpush1.bf16.msra.mxu0 0
        %2633 = vmatprep.subr.bf16.mxu0 0
        %2634 = vmatpush1.bf16.msra.mxu0 0
        %2635 = vmatprep.subr.bf16.mxu0 0
        %2636 = vmatpush1.bf16.msra.mxu0 0
        %2637 = vmatprep.subr.bf16.mxu0 0
        %2638 = vmatpush1.bf16.msra.mxu0 0
        %2639 = vmatprep.subr.bf16.mxu0 0
        %2640 = vmatpush1.bf16.msra.mxu0 0
        %2641 = vmatprep.subr.bf16.mxu0 0
        %2642 = vmatpush1.bf16.msra.mxu0 0
        %2643 = vmatprep.subr.bf16.mxu0 0
        %2644 = vmatpush1.bf16.msra.mxu0 0
        %2645 = vmatprep.subr.bf16.mxu0 0
        %2646 = vmatpush1.bf16.msra.mxu0 0
        %2647 = vmatprep.mubr.bf16.mxu0 0
        %2648 = vmatmul.mubr.bf16.gmra.mrb[0].mxu0 %v2589
        %v2649 = vpop.f32.mrb[0].mxu0
        %v2650 = vadd.f32 %v2526, %v2649
        %v2651 = vpop.f32.mrb[0].mxu0
        %v2652 = vpop.f32.mrb[0].mxu0
        %v2653 = vadd.f32 %v2529, %v2652
        %v2654 = vpop.f32.mrb[0].mxu0
        %2655 = vmatprep.mubr.bf16.mxu0 0
        %2656 = vmatmul.mubr.bf16.gmra.mrb[0].mxu0 %v2592
        %v2657 = vpop.f32.mrb[0].mxu0
        %v2658 = vadd.f32 %v2534, %v2657
        %v2659 = vpop.f32.mrb[0].mxu0
        %v2660 = vpop.f32.mrb[0].mxu0
        %v2661 = vadd.f32 %v2537, %v2660
        %v2662 = vpop.f32.mrb[0].mxu0
        %2663 = vmatprep.mubr.bf16.mxu0 0
        %2664 = vmatmul.mubr.bf16.gmra.mrb[0].mxu0 %v2595
        %v2665 = vpop.f32.mrb[0].mxu0
        %v2666 = vadd.f32 %v2542, %v2665
        %v2667 = vpop.f32.mrb[0].mxu0
        %v2668 = vpop.f32.mrb[0].mxu0
        %v2669 = vadd.f32 %v2545, %v2668
        %v2670 = vpop.f32.mrb[0].mxu0
        %2671 = vmatprep.mubr.bf16.mxu0 0
        %2672 = vmatmul.mubr.bf16.gmra.mrb[0].mxu0 %v2598
        %v2673 = vpop.f32.mrb[0].mxu0
        %v2674 = vadd.f32 %v2550, %v2673
        %v2675 = vpop.f32.mrb[0].mxu0
        %v2676 = vpop.f32.mrb[0].mxu0
        %v2677 = vadd.f32 %v2553, %v2676
        %v2678 = vpop.f32.mrb[0].mxu0
        %2679 = vmatprep.mubr.bf16.mxu0 0
        %2680 = vmatmul.mubr.bf16.gmra.mrb[0].mxu0 %v2601
        %v2681 = vpop.f32.mrb[0].mxu0
        %v2682 = vadd.f32 %v2558, %v2681
        %v2683 = vpop.f32.mrb[0].mxu0
        %v2684 = vpop.f32.mrb[0].mxu0
        %v2685 = vadd.f32 %v2561, %v2684
        %v2686 = vpop.f32.mrb[0].mxu0
        %2687 = vmatprep.mubr.bf16.mxu0 0
        %2688 = vmatmul.mubr.bf16.gmra.mrb[0].mxu0 %v2604
        %v2689 = vpop.f32.mrb[0].mxu0
        %v2690 = vadd.f32 %v2566, %v2689
        %v2691 = vpop.f32.mrb[0].mxu0
        %v2692 = vpop.f32.mrb[0].mxu0
        %v2693 = vadd.f32 %v2569, %v2692
        %v2694 = vpop.f32.mrb[0].mxu0
        %2695 = vmatprep.mubr.bf16.mxu0 0
        %2696 = vmatmul.mubr.bf16.gmra.mrb[0].mxu0 %v2607
        %v2697 = vpop.f32.mrb[0].mxu0
        %v2698 = vadd.f32 %v2574, %v2697
        %v2699 = vpop.f32.mrb[0].mxu0
        %v2700 = vpop.f32.mrb[0].mxu0
        %v2701 = vadd.f32 %v2577, %v2700
        %v2702 = vpop.f32.mrb[0].mxu0
        %2703 = vmatprep.mubr.bf16.mxu0 0
        %2704 = vmatmul.mubr.bf16.gmra.mrb[0].mxu0 %v2610
        %v2705 = vpop.f32.mrb[0].mxu0
        %v2706 = vadd.f32 %v2582, %v2705
        %v2707 = vpop.f32.mrb[0].mxu0
        %v2708 = vpop.f32.mrb[0].mxu0
        %v2709 = vadd.f32 %v2585, %v2708
        %v2710 = vpop.f32.mrb[0].mxu0
        %2711 = vdwg.mxu0
        %2712 = vrot.lane.b32.xlu0 %v476, 112
        %v2713 = vpop.permute.xlu0 %2712
        %2714 = vrot.lane.b32.xlu0 %v476, 80
        %v2715 = vpop.permute.xlu0 %2714
        %v2717 = vsel %vm487, %v2713, 0
        %v2720 = vsel %vm487, %v2715, 0
        %2722 = vmatprep.subr.bf16.mxu0 0
        %2723 = vmatpush1.bf16.xpose.msra.mxu0 %v2720
        %2724 = vmatprep.subr.bf16.mxu0 0
        %2725 = vmatpush1.bf16.xpose.msra.mxu0 0
        %2726 = vmatprep.subr.bf16.mxu0 0
        %2727 = vmatpush1.bf16.xpose.msra.mxu0 0
        %2728 = vmatprep.subr.bf16.mxu0 0
        %2729 = vmatpush1.bf16.xpose.msra.mxu0 0
        %2730 = vmatprep.subr.bf16.mxu0 0
        %2731 = vmatpush1.bf16.xpose.msra.mxu0 0
        %2732 = vmatprep.subr.bf16.mxu0 0
        %2733 = vmatpush1.bf16.xpose.msra.mxu0 0
        %2734 = vmatprep.subr.bf16.mxu0 0
        %2735 = vmatpush1.bf16.xpose.msra.mxu0 0
        %2736 = vmatprep.subr.bf16.mxu0 0
        %2737 = vmatpush1.bf16.xpose.msra.mxu0 0
        %2738 = vmatprep.subr.bf16.mxu0 0
        %2739 = vmatpush1.bf16.xpose.msra.mxu0 0
        %2740 = vmatprep.subr.bf16.mxu0 0
        %2741 = vmatpush1.bf16.xpose.msra.mxu0 0
        %2742 = vmatprep.subr.bf16.mxu0 0
        %2743 = vmatpush1.bf16.xpose.msra.mxu0 0
        %2744 = vmatprep.subr.bf16.mxu0 0
        %2745 = vmatpush1.bf16.xpose.msra.mxu0 0
        %2746 = vmatprep.subr.bf16.mxu0 0
        %2747 = vmatpush1.bf16.xpose.msra.mxu0 0
        %2748 = vmatprep.subr.bf16.mxu0 0
        %2749 = vmatpush1.bf16.xpose.msra.mxu0 0
        %2750 = vmatprep.subr.bf16.mxu0 0
        %2751 = vmatpush1.bf16.xpose.msra.mxu0 0
        %2752 = vmatprep.subr.bf16.mxu0 0
        %2753 = vmatpush1.bf16.xpose.msra.mxu0 0
        %2754 = vmatprep.mubr.bf16.mxu0 0
        %2755 = vmatmul.mubr.bf16.gmra.mrb[0].mxu0 %v2717
        %v2756 = vpop.f32.mrb[0].mxu0
        %v2757 = vadd.f32 %v472, %v2756
        %v2758 = vpop.f32.mrb[0].mxu0
        %v2759 = vpop.f32.mrb[0].mxu0
        %v2760 = vadd.f32 %v473, %v2759
        %v2761 = vpop.f32.mrb[0].mxu0
        %2762 = vdwg.mxu0
        %2763 = vrot.lane.b32.xlu0 %v477, 112
        %v2764 = vpop.permute.xlu0 %2763
        %2765 = vrot.lane.b32.xlu0 %v477, 80
        %v2766 = vpop.permute.xlu0 %2765
        %v2768 = vsel %vm487, %v2764, 0
        %v2771 = vsel %vm487, %v2766, 0
        %2773 = vmatprep.subr.bf16.mxu0 0
        %2774 = vmatpush1.bf16.xpose.msra.mxu0 %v2771
        %2775 = vmatprep.subr.bf16.mxu0 0
        %2776 = vmatpush1.bf16.xpose.msra.mxu0 0
        %2777 = vmatprep.subr.bf16.mxu0 0
        %2778 = vmatpush1.bf16.xpose.msra.mxu0 0
        %2779 = vmatprep.subr.bf16.mxu0 0
        %2780 = vmatpush1.bf16.xpose.msra.mxu0 0
        %2781 = vmatprep.subr.bf16.mxu0 0
        %2782 = vmatpush1.bf16.xpose.msra.mxu0 0
        %2783 = vmatprep.subr.bf16.mxu0 0
        %2784 = vmatpush1.bf16.xpose.msra.mxu0 0
        %2785 = vmatprep.subr.bf16.mxu0 0
        %2786 = vmatpush1.bf16.xpose.msra.mxu0 0
        %2787 = vmatprep.subr.bf16.mxu0 0
        %2788 = vmatpush1.bf16.xpose.msra.mxu0 0
        %2789 = vmatprep.subr.bf16.mxu0 0
        %2790 = vmatpush1.bf16.xpose.msra.mxu0 0
        %2791 = vmatprep.subr.bf16.mxu0 0
        %2792 = vmatpush1.bf16.xpose.msra.mxu0 0
        %2793 = vmatprep.subr.bf16.mxu0 0
        %2794 = vmatpush1.bf16.xpose.msra.mxu0 0
        %2795 = vmatprep.subr.bf16.mxu0 0
        %2796 = vmatpush1.bf16.xpose.msra.mxu0 0
        %2797 = vmatprep.subr.bf16.mxu0 0
        %2798 = vmatpush1.bf16.xpose.msra.mxu0 0
        %2799 = vmatprep.subr.bf16.mxu0 0
        %2800 = vmatpush1.bf16.xpose.msra.mxu0 0
        %2801 = vmatprep.subr.bf16.mxu0 0
        %2802 = vmatpush1.bf16.xpose.msra.mxu0 0
        %2803 = vmatprep.subr.bf16.mxu0 0
        %2804 = vmatpush1.bf16.xpose.msra.mxu0 0
        %2805 = vmatprep.mubr.bf16.mxu0 0
        %2806 = vmatmul.mubr.bf16.gmra.mrb[0].mxu0 %v2768
        %v2807 = vpop.f32.mrb[0].mxu0
        %v2808 = vadd.f32 %v472, %v2807
        %v2809 = vpop.f32.mrb[0].mxu0
        %v2810 = vpop.f32.mrb[0].mxu0
        %v2811 = vadd.f32 %v473, %v2810
        %v2812 = vpop.f32.mrb[0].mxu0
        %2813 = vdwg.mxu0
        %2814 = vrot.lane.b32.xlu0 %v478, 112
        %v2815 = vpop.permute.xlu0 %2814
        %2816 = vrot.lane.b32.xlu0 %v478, 80
        %v2817 = vpop.permute.xlu0 %2816
        %v2819 = vsel %vm487, %v2815, 0
        %v2822 = vsel %vm487, %v2817, 0
        %2824 = vmatprep.subr.bf16.mxu0 0
        %2825 = vmatpush1.bf16.xpose.msra.mxu0 %v2822
        %2826 = vmatprep.subr.bf16.mxu0 0
        %2827 = vmatpush1.bf16.xpose.msra.mxu0 0
        %2828 = vmatprep.subr.bf16.mxu0 0
        %2829 = vmatpush1.bf16.xpose.msra.mxu0 0
        %2830 = vmatprep.subr.bf16.mxu0 0
        %2831 = vmatpush1.bf16.xpose.msra.mxu0 0
        %2832 = vmatprep.subr.bf16.mxu0 0
        %2833 = vmatpush1.bf16.xpose.msra.mxu0 0
        %2834 = vmatprep.subr.bf16.mxu0 0
        %2835 = vmatpush1.bf16.xpose.msra.mxu0 0
        %2836 = vmatprep.subr.bf16.mxu0 0
        %2837 = vmatpush1.bf16.xpose.msra.mxu0 0
        %2838 = vmatprep.subr.bf16.mxu0 0
        %2839 = vmatpush1.bf16.xpose.msra.mxu0 0
        %2840 = vmatprep.subr.bf16.mxu0 0
        %2841 = vmatpush1.bf16.xpose.msra.mxu0 0
        %2842 = vmatprep.subr.bf16.mxu0 0
        %2843 = vmatpush1.bf16.xpose.msra.mxu0 0
        %2844 = vmatprep.subr.bf16.mxu0 0
        %2845 = vmatpush1.bf16.xpose.msra.mxu0 0
        %2846 = vmatprep.subr.bf16.mxu0 0
        %2847 = vmatpush1.bf16.xpose.msra.mxu0 0
        %2848 = vmatprep.subr.bf16.mxu0 0
        %2849 = vmatpush1.bf16.xpose.msra.mxu0 0
        %2850 = vmatprep.subr.bf16.mxu0 0
        %2851 = vmatpush1.bf16.xpose.msra.mxu0 0
        %2852 = vmatprep.subr.bf16.mxu0 0
        %2853 = vmatpush1.bf16.xpose.msra.mxu0 0
        %2854 = vmatprep.subr.bf16.mxu0 0
        %2855 = vmatpush1.bf16.xpose.msra.mxu0 0
        %2856 = vmatprep.mubr.bf16.mxu0 0
        %2857 = vmatmul.mubr.bf16.gmra.mrb[0].mxu0 %v2819
        %v2858 = vpop.f32.mrb[0].mxu0
        %v2859 = vadd.f32 %v472, %v2858
        %v2860 = vpop.f32.mrb[0].mxu0
        %v2861 = vpop.f32.mrb[0].mxu0
        %v2862 = vadd.f32 %v473, %v2861
        %v2863 = vpop.f32.mrb[0].mxu0
        %2864 = vdwg.mxu0
        %2865 = vrot.lane.b32.xlu0 %v479, 112
        %v2866 = vpop.permute.xlu0 %2865
        %2867 = vrot.lane.b32.xlu0 %v479, 80
        %v2868 = vpop.permute.xlu0 %2867
        %v2870 = vsel %vm487, %v2866, 0
        %v2873 = vsel %vm487, %v2868, 0
        %2875 = vmatprep.subr.bf16.mxu0 0
        %2876 = vmatpush1.bf16.xpose.msra.mxu0 %v2873
        %2877 = vmatprep.subr.bf16.mxu0 0
        %2878 = vmatpush1.bf16.xpose.msra.mxu0 0
        %2879 = vmatprep.subr.bf16.mxu0 0
        %2880 = vmatpush1.bf16.xpose.msra.mxu0 0
        %2881 = vmatprep.subr.bf16.mxu0 0
        %2882 = vmatpush1.bf16.xpose.msra.mxu0 0
        %2883 = vmatprep.subr.bf16.mxu0 0
        %2884 = vmatpush1.bf16.xpose.msra.mxu0 0
        %2885 = vmatprep.subr.bf16.mxu0 0
        %2886 = vmatpush1.bf16.xpose.msra.mxu0 0
        %2887 = vmatprep.subr.bf16.mxu0 0
        %2888 = vmatpush1.bf16.xpose.msra.mxu0 0
        %2889 = vmatprep.subr.bf16.mxu0 0
        %2890 = vmatpush1.bf16.xpose.msra.mxu0 0
        %2891 = vmatprep.subr.bf16.mxu0 0
        %2892 = vmatpush1.bf16.xpose.msra.mxu0 0
        %2893 = vmatprep.subr.bf16.mxu0 0
        %2894 = vmatpush1.bf16.xpose.msra.mxu0 0
        %2895 = vmatprep.subr.bf16.mxu0 0
        %2896 = vmatpush1.bf16.xpose.msra.mxu0 0
        %2897 = vmatprep.subr.bf16.mxu0 0
        %2898 = vmatpush1.bf16.xpose.msra.mxu0 0
        %2899 = vmatprep.subr.bf16.mxu0 0
        %2900 = vmatpush1.bf16.xpose.msra.mxu0 0
        %2901 = vmatprep.subr.bf16.mxu0 0
        %2902 = vmatpush1.bf16.xpose.msra.mxu0 0
        %2903 = vmatprep.subr.bf16.mxu0 0
        %2904 = vmatpush1.bf16.xpose.msra.mxu0 0
        %2905 = vmatprep.subr.bf16.mxu0 0
        %2906 = vmatpush1.bf16.xpose.msra.mxu0 0
        %2907 = vmatprep.mubr.bf16.mxu0 0
        %2908 = vmatmul.mubr.bf16.gmra.mrb[0].mxu0 %v2870
        %v2909 = vpop.f32.mrb[0].mxu0
        %v2910 = vadd.f32 %v472, %v2909
        %v2911 = vpop.f32.mrb[0].mxu0
        %v2912 = vpop.f32.mrb[0].mxu0
        %v2913 = vadd.f32 %v473, %v2912
        %v2914 = vpop.f32.mrb[0].mxu0
        %2915 = vdwg.mxu0
        %2916 = vrot.lane.b32.xlu0 %v480, 112
        %v2917 = vpop.permute.xlu0 %2916
        %2918 = vrot.lane.b32.xlu0 %v480, 80
        %v2919 = vpop.permute.xlu0 %2918
        %v2921 = vsel %vm487, %v2917, 0
        %v2924 = vsel %vm487, %v2919, 0
        %2926 = vmatprep.subr.bf16.mxu0 0
        %2927 = vmatpush1.bf16.xpose.msra.mxu0 %v2924
        %2928 = vmatprep.subr.bf16.mxu0 0
        %2929 = vmatpush1.bf16.xpose.msra.mxu0 0
        %2930 = vmatprep.subr.bf16.mxu0 0
        %2931 = vmatpush1.bf16.xpose.msra.mxu0 0
        %2932 = vmatprep.subr.bf16.mxu0 0
        %2933 = vmatpush1.bf16.xpose.msra.mxu0 0
        %2934 = vmatprep.subr.bf16.mxu0 0
        %2935 = vmatpush1.bf16.xpose.msra.mxu0 0
        %2936 = vmatprep.subr.bf16.mxu0 0
        %2937 = vmatpush1.bf16.xpose.msra.mxu0 0
        %2938 = vmatprep.subr.bf16.mxu0 0
        %2939 = vmatpush1.bf16.xpose.msra.mxu0 0
        %2940 = vmatprep.subr.bf16.mxu0 0
        %2941 = vmatpush1.bf16.xpose.msra.mxu0 0
        %2942 = vmatprep.subr.bf16.mxu0 0
        %2943 = vmatpush1.bf16.xpose.msra.mxu0 0
        %2944 = vmatprep.subr.bf16.mxu0 0
        %2945 = vmatpush1.bf16.xpose.msra.mxu0 0
        %2946 = vmatprep.subr.bf16.mxu0 0
        %2947 = vmatpush1.bf16.xpose.msra.mxu0 0
        %2948 = vmatprep.subr.bf16.mxu0 0
        %2949 = vmatpush1.bf16.xpose.msra.mxu0 0
        %2950 = vmatprep.subr.bf16.mxu0 0
        %2951 = vmatpush1.bf16.xpose.msra.mxu0 0
        %2952 = vmatprep.subr.bf16.mxu0 0
        %2953 = vmatpush1.bf16.xpose.msra.mxu0 0
        %2954 = vmatprep.subr.bf16.mxu0 0
        %2955 = vmatpush1.bf16.xpose.msra.mxu0 0
        %2956 = vmatprep.subr.bf16.mxu0 0
        %2957 = vmatpush1.bf16.xpose.msra.mxu0 0
        %2958 = vmatprep.mubr.bf16.mxu0 0
        %2959 = vmatmul.mubr.bf16.gmra.mrb[0].mxu0 %v2921
        %v2960 = vpop.f32.mrb[0].mxu0
        %v2961 = vadd.f32 %v472, %v2960
        %v2962 = vpop.f32.mrb[0].mxu0
        %v2963 = vpop.f32.mrb[0].mxu0
        %v2964 = vadd.f32 %v473, %v2963
        %v2965 = vpop.f32.mrb[0].mxu0
        %2966 = vdwg.mxu0
        %2967 = vrot.lane.b32.xlu0 %v481, 112
        %v2968 = vpop.permute.xlu0 %2967
        %2969 = vrot.lane.b32.xlu0 %v481, 80
        %v2970 = vpop.permute.xlu0 %2969
        %v2972 = vsel %vm487, %v2968, 0
        %v2975 = vsel %vm487, %v2970, 0
        %2977 = vmatprep.subr.bf16.mxu0 0
        %2978 = vmatpush1.bf16.xpose.msra.mxu0 %v2975
        %2979 = vmatprep.subr.bf16.mxu0 0
        %2980 = vmatpush1.bf16.xpose.msra.mxu0 0
        %2981 = vmatprep.subr.bf16.mxu0 0
        %2982 = vmatpush1.bf16.xpose.msra.mxu0 0
        %2983 = vmatprep.subr.bf16.mxu0 0
        %2984 = vmatpush1.bf16.xpose.msra.mxu0 0
        %2985 = vmatprep.subr.bf16.mxu0 0
        %2986 = vmatpush1.bf16.xpose.msra.mxu0 0
        %2987 = vmatprep.subr.bf16.mxu0 0
        %2988 = vmatpush1.bf16.xpose.msra.mxu0 0
        %2989 = vmatprep.subr.bf16.mxu0 0
        %2990 = vmatpush1.bf16.xpose.msra.mxu0 0
        %2991 = vmatprep.subr.bf16.mxu0 0
        %2992 = vmatpush1.bf16.xpose.msra.mxu0 0
        %2993 = vmatprep.subr.bf16.mxu0 0
        %2994 = vmatpush1.bf16.xpose.msra.mxu0 0
        %2995 = vmatprep.subr.bf16.mxu0 0
        %2996 = vmatpush1.bf16.xpose.msra.mxu0 0
        %2997 = vmatprep.subr.bf16.mxu0 0
        %2998 = vmatpush1.bf16.xpose.msra.mxu0 0
        %2999 = vmatprep.subr.bf16.mxu0 0
        %3000 = vmatpush1.bf16.xpose.msra.mxu0 0
        %3001 = vmatprep.subr.bf16.mxu0 0
        %3002 = vmatpush1.bf16.xpose.msra.mxu0 0
        %3003 = vmatprep.subr.bf16.mxu0 0
        %3004 = vmatpush1.bf16.xpose.msra.mxu0 0
        %3005 = vmatprep.subr.bf16.mxu0 0
        %3006 = vmatpush1.bf16.xpose.msra.mxu0 0
        %3007 = vmatprep.subr.bf16.mxu0 0
        %3008 = vmatpush1.bf16.xpose.msra.mxu0 0
        %3009 = vmatprep.mubr.bf16.mxu0 0
        %3010 = vmatmul.mubr.bf16.gmra.mrb[0].mxu0 %v2972
        %v3011 = vpop.f32.mrb[0].mxu0
        %v3012 = vadd.f32 %v472, %v3011
        %v3013 = vpop.f32.mrb[0].mxu0
        %v3014 = vpop.f32.mrb[0].mxu0
        %v3015 = vadd.f32 %v473, %v3014
        %v3016 = vpop.f32.mrb[0].mxu0
        %3017 = vdwg.mxu0
        %3018 = vrot.lane.b32.xlu0 %v482, 112
        %v3019 = vpop.permute.xlu0 %3018
        %3020 = vrot.lane.b32.xlu0 %v482, 80
        %v3021 = vpop.permute.xlu0 %3020
        %v3023 = vsel %vm487, %v3019, 0
        %v3026 = vsel %vm487, %v3021, 0
        %3028 = vmatprep.subr.bf16.mxu0 0
        %3029 = vmatpush1.bf16.xpose.msra.mxu0 %v3026
        %3030 = vmatprep.subr.bf16.mxu0 0
        %3031 = vmatpush1.bf16.xpose.msra.mxu0 0
        %3032 = vmatprep.subr.bf16.mxu0 0
        %3033 = vmatpush1.bf16.xpose.msra.mxu0 0
        %3034 = vmatprep.subr.bf16.mxu0 0
        %3035 = vmatpush1.bf16.xpose.msra.mxu0 0
        %3036 = vmatprep.subr.bf16.mxu0 0
        %3037 = vmatpush1.bf16.xpose.msra.mxu0 0
        %3038 = vmatprep.subr.bf16.mxu0 0
        %3039 = vmatpush1.bf16.xpose.msra.mxu0 0
        %3040 = vmatprep.subr.bf16.mxu0 0
        %3041 = vmatpush1.bf16.xpose.msra.mxu0 0
        %3042 = vmatprep.subr.bf16.mxu0 0
        %3043 = vmatpush1.bf16.xpose.msra.mxu0 0
        %3044 = vmatprep.subr.bf16.mxu0 0
        %3045 = vmatpush1.bf16.xpose.msra.mxu0 0
        %3046 = vmatprep.subr.bf16.mxu0 0
        %3047 = vmatpush1.bf16.xpose.msra.mxu0 0
        %3048 = vmatprep.subr.bf16.mxu0 0
        %3049 = vmatpush1.bf16.xpose.msra.mxu0 0
        %3050 = vmatprep.subr.bf16.mxu0 0
        %3051 = vmatpush1.bf16.xpose.msra.mxu0 0
        %3052 = vmatprep.subr.bf16.mxu0 0
        %3053 = vmatpush1.bf16.xpose.msra.mxu0 0
        %3054 = vmatprep.subr.bf16.mxu0 0
        %3055 = vmatpush1.bf16.xpose.msra.mxu0 0
        %3056 = vmatprep.subr.bf16.mxu0 0
        %3057 = vmatpush1.bf16.xpose.msra.mxu0 0
        %3058 = vmatprep.subr.bf16.mxu0 0
        %3059 = vmatpush1.bf16.xpose.msra.mxu0 0
        %3060 = vmatprep.mubr.bf16.mxu0 0
        %3061 = vmatmul.mubr.bf16.gmra.mrb[0].mxu0 %v3023
        %v3062 = vpop.f32.mrb[0].mxu0
        %v3063 = vadd.f32 %v472, %v3062
        %v3064 = vpop.f32.mrb[0].mxu0
        %v3065 = vpop.f32.mrb[0].mxu0
        %v3066 = vadd.f32 %v473, %v3065
        %v3067 = vpop.f32.mrb[0].mxu0
        %3068 = vdwg.mxu0
        %3069 = vrot.lane.b32.xlu0 %v483, 112
        %v3070 = vpop.permute.xlu0 %3069
        %3071 = vrot.lane.b32.xlu0 %v483, 80
        %v3072 = vpop.permute.xlu0 %3071
        %v3074 = vsel %vm487, %v3070, 0
        %v3077 = vsel %vm487, %v3072, 0
        %3079 = vmatprep.subr.bf16.mxu0 0
        %3080 = vmatpush1.bf16.xpose.msra.mxu0 %v3077
        %3081 = vmatprep.subr.bf16.mxu0 0
        %3082 = vmatpush1.bf16.xpose.msra.mxu0 0
        %3083 = vmatprep.subr.bf16.mxu0 0
        %3084 = vmatpush1.bf16.xpose.msra.mxu0 0
        %3085 = vmatprep.subr.bf16.mxu0 0
        %3086 = vmatpush1.bf16.xpose.msra.mxu0 0
        %3087 = vmatprep.subr.bf16.mxu0 0
        %3088 = vmatpush1.bf16.xpose.msra.mxu0 0
        %3089 = vmatprep.subr.bf16.mxu0 0
        %3090 = vmatpush1.bf16.xpose.msra.mxu0 0
        %3091 = vmatprep.subr.bf16.mxu0 0
        %3092 = vmatpush1.bf16.xpose.msra.mxu0 0
        %3093 = vmatprep.subr.bf16.mxu0 0
        %3094 = vmatpush1.bf16.xpose.msra.mxu0 0
        %3095 = vmatprep.subr.bf16.mxu0 0
        %3096 = vmatpush1.bf16.xpose.msra.mxu0 0
        %3097 = vmatprep.subr.bf16.mxu0 0
        %3098 = vmatpush1.bf16.xpose.msra.mxu0 0
        %3099 = vmatprep.subr.bf16.mxu0 0
        %3100 = vmatpush1.bf16.xpose.msra.mxu0 0
        %3101 = vmatprep.subr.bf16.mxu0 0
        %3102 = vmatpush1.bf16.xpose.msra.mxu0 0
        %3103 = vmatprep.subr.bf16.mxu0 0
        %3104 = vmatpush1.bf16.xpose.msra.mxu0 0
        %3105 = vmatprep.subr.bf16.mxu0 0
        %3106 = vmatpush1.bf16.xpose.msra.mxu0 0
        %3107 = vmatprep.subr.bf16.mxu0 0
        %3108 = vmatpush1.bf16.xpose.msra.mxu0 0
        %3109 = vmatprep.subr.bf16.mxu0 0
        %3110 = vmatpush1.bf16.xpose.msra.mxu0 0
        %3111 = vmatprep.mubr.bf16.mxu0 0
        %3112 = vmatmul.mubr.bf16.gmra.mrb[0].mxu0 %v3074
        %v3113 = vpop.f32.mrb[0].mxu0
        %v3114 = vadd.f32 %v472, %v3113
        %v3115 = vpop.f32.mrb[0].mxu0
        %v3116 = vpop.f32.mrb[0].mxu0
        %v3117 = vadd.f32 %v473, %v3116
        %v3118 = vpop.f32.mrb[0].mxu0
        %3119 = vdwg.mxu0
        %v3120 = vsel %vm885, %v2757, -inf
        %3121 = vmax.xlane.f32.xlu0 %v3120
        %v3122 = vpop.xlane.xlu0 %3121
        %v3123 = vsel %vm885, %v2760, -inf
        %3124 = vmax.xlane.f32.xlu0 %v3123
        %v3125 = vpop.xlane.xlu0 %3124
        %v3126 = vsel %vm885, %v2808, -inf
        %3127 = vmax.xlane.f32.xlu0 %v3126
        %v3128 = vpop.xlane.xlu0 %3127
        %v3129 = vsel %vm885, %v2811, -inf
        %3130 = vmax.xlane.f32.xlu0 %v3129
        %v3131 = vpop.xlane.xlu0 %3130
        %v3132 = vsel %vm885, %v2859, -inf
        %3133 = vmax.xlane.f32.xlu0 %v3132
        %v3134 = vpop.xlane.xlu0 %3133
        %v3135 = vsel %vm885, %v2862, -inf
        %3136 = vmax.xlane.f32.xlu0 %v3135
        %v3137 = vpop.xlane.xlu0 %3136
        %v3138 = vsel %vm885, %v2910, -inf
        %3139 = vmax.xlane.f32.xlu0 %v3138
        %v3140 = vpop.xlane.xlu0 %3139
        %v3141 = vsel %vm885, %v2913, -inf
        %3142 = vmax.xlane.f32.xlu0 %v3141
        %v3143 = vpop.xlane.xlu0 %3142
        %v3144 = vsel %vm885, %v2961, -inf
        %3145 = vmax.xlane.f32.xlu0 %v3144
        %v3146 = vpop.xlane.xlu0 %3145
        %v3147 = vsel %vm885, %v2964, -inf
        %3148 = vmax.xlane.f32.xlu0 %v3147
        %v3149 = vpop.xlane.xlu0 %3148
        %v3150 = vsel %vm885, %v3012, -inf
        %3151 = vmax.xlane.f32.xlu0 %v3150
        %v3152 = vpop.xlane.xlu0 %3151
        %v3153 = vsel %vm885, %v3015, -inf
        %3154 = vmax.xlane.f32.xlu0 %v3153
        %v3155 = vpop.xlane.xlu0 %3154
        %v3156 = vsel %vm885, %v3063, -inf
        %3157 = vmax.xlane.f32.xlu0 %v3156
        %v3158 = vpop.xlane.xlu0 %3157
        %v3159 = vsel %vm885, %v3066, -inf
        %3160 = vmax.xlane.f32.xlu0 %v3159
        %v3161 = vpop.xlane.xlu0 %3160
        %v3162 = vsel %vm885, %v3114, -inf
        %3163 = vmax.xlane.f32.xlu0 %v3162
        %v3164 = vpop.xlane.xlu0 %3163
        %v3165 = vsel %vm885, %v3117, -inf
        %3166 = vmax.xlane.f32.xlu0 %v3165
        %v3167 = vpop.xlane.xlu0 %3166
        %v3168 = vsub.f32 %v2757, %v3122
        %v3169 = vsub.f32 %v2760, %v3125
        %v3170 = vsub.f32 %v2808, %v3128
        %v3171 = vsub.f32 %v2811, %v3131
        %v3172 = vsub.f32 %v2859, %v3134
        %v3173 = vsub.f32 %v2862, %v3137
        %v3174 = vsub.f32 %v2910, %v3140
        %v3175 = vsub.f32 %v2913, %v3143
        %v3176 = vsub.f32 %v2961, %v3146
        %v3177 = vsub.f32 %v2964, %v3149
        %v3178 = vsub.f32 %v3012, %v3152
        %v3179 = vsub.f32 %v3015, %v3155
        %v3180 = vsub.f32 %v3063, %v3158
        %v3181 = vsub.f32 %v3066, %v3161
        %v3182 = vsub.f32 %v3114, %v3164
        %v3183 = vsub.f32 %v3117, %v3167
        %v3184 = vmul.f32 %v3168, 1.442695
        %v3185 = vpow.pop %v3184
        %v3186 = vmul.f32 %v3169, 1.442695
        %v3187 = vpow.pop %v3186
        %v3188 = vmul.f32 %v3170, 1.442695
        %v3189 = vpow.pop %v3188
        %v3190 = vmul.f32 %v3171, 1.442695
        %v3191 = vpow.pop %v3190
        %v3192 = vmul.f32 %v3172, 1.442695
        %v3193 = vpow.pop %v3192
        %v3194 = vmul.f32 %v3173, 1.442695
        %v3195 = vpow.pop %v3194
        %v3196 = vmul.f32 %v3174, 1.442695
        %v3197 = vpow.pop %v3196
        %v3198 = vmul.f32 %v3175, 1.442695
        %v3199 = vpow.pop %v3198
        %v3200 = vmul.f32 %v3176, 1.442695
        %v3201 = vpow.pop %v3200
        %v3202 = vmul.f32 %v3177, 1.442695
        %v3203 = vpow.pop %v3202
        %v3204 = vmul.f32 %v3178, 1.442695
        %v3205 = vpow.pop %v3204
        %v3206 = vmul.f32 %v3179, 1.442695
        %v3207 = vpow.pop %v3206
        %v3208 = vmul.f32 %v3180, 1.442695
        %v3209 = vpow.pop %v3208
        %v3210 = vmul.f32 %v3181, 1.442695
        %v3211 = vpow.pop %v3210
        %v3212 = vmul.f32 %v3182, 1.442695
        %v3213 = vpow.pop %v3212
        %v3214 = vmul.f32 %v3183, 1.442695
        %v3215 = vpow.pop %v3214
        %v3216 = vsel %vm885, %v3185, 0.0
        %3217 = vadd.xlane.f32.xlu0 %v3216
        %v3218 = vpop.xlane.xlu0 %3217
        %v3219 = vsel %vm885, %v3187, 0.0
        %3220 = vadd.xlane.f32.xlu0 %v3219
        %v3221 = vpop.xlane.xlu0 %3220
        %v3222 = vsel %vm885, %v3189, 0.0
        %3223 = vadd.xlane.f32.xlu0 %v3222
        %v3224 = vpop.xlane.xlu0 %3223
        %v3225 = vsel %vm885, %v3191, 0.0
        %3226 = vadd.xlane.f32.xlu0 %v3225
        %v3227 = vpop.xlane.xlu0 %3226
        %v3228 = vsel %vm885, %v3193, 0.0
        %3229 = vadd.xlane.f32.xlu0 %v3228
        %v3230 = vpop.xlane.xlu0 %3229
        %v3231 = vsel %vm885, %v3195, 0.0
        %3232 = vadd.xlane.f32.xlu0 %v3231
        %v3233 = vpop.xlane.xlu0 %3232
        %v3234 = vsel %vm885, %v3197, 0.0
        %3235 = vadd.xlane.f32.xlu0 %v3234
        %v3236 = vpop.xlane.xlu0 %3235
        %v3237 = vsel %vm885, %v3199, 0.0
        %3238 = vadd.xlane.f32.xlu0 %v3237
        %v3239 = vpop.xlane.xlu0 %3238
        %v3240 = vsel %vm885, %v3201, 0.0
        %3241 = vadd.xlane.f32.xlu0 %v3240
        %v3242 = vpop.xlane.xlu0 %3241
        %v3243 = vsel %vm885, %v3203, 0.0
        %3244 = vadd.xlane.f32.xlu0 %v3243
        %v3245 = vpop.xlane.xlu0 %3244
        %v3246 = vsel %vm885, %v3205, 0.0
        %3247 = vadd.xlane.f32.xlu0 %v3246
        %v3248 = vpop.xlane.xlu0 %3247
        %v3249 = vsel %vm885, %v3207, 0.0
        %3250 = vadd.xlane.f32.xlu0 %v3249
        %v3251 = vpop.xlane.xlu0 %3250
        %v3252 = vsel %vm885, %v3209, 0.0
        %3253 = vadd.xlane.f32.xlu0 %v3252
        %v3254 = vpop.xlane.xlu0 %3253
        %v3255 = vsel %vm885, %v3211, 0.0
        %3256 = vadd.xlane.f32.xlu0 %v3255
        %v3257 = vpop.xlane.xlu0 %3256
        %v3258 = vsel %vm885, %v3213, 0.0
        %3259 = vadd.xlane.f32.xlu0 %v3258
        %v3260 = vpop.xlane.xlu0 %3259
        %v3261 = vsel %vm885, %v3215, 0.0
        %3262 = vadd.xlane.f32.xlu0 %v3261
        %v3263 = vpop.xlane.xlu0 %3262
        %v3264 = vrcp.pop %v3218
        %v3265 = vrcp.pop %v3221
        %v3266 = vrcp.pop %v3224
        %v3267 = vrcp.pop %v3227
        %v3268 = vrcp.pop %v3230
        %v3269 = vrcp.pop %v3233
        %v3270 = vrcp.pop %v3236
        %v3271 = vrcp.pop %v3239
        %v3272 = vrcp.pop %v3242
        %v3273 = vrcp.pop %v3245
        %v3274 = vrcp.pop %v3248
        %v3275 = vrcp.pop %v3251
        %v3276 = vrcp.pop %v3254
        %v3277 = vrcp.pop %v3257
        %v3278 = vrcp.pop %v3260
        %v3279 = vrcp.pop %v3263
        %v3280 = vmul.f32 %v3185, %v3264
        %v3281 = vmul.f32 %v3187, %v3265
        %v3282 = vmul.f32 %v3189, %v3266
        %v3283 = vmul.f32 %v3191, %v3267
        %v3284 = vmul.f32 %v3193, %v3268
        %v3285 = vmul.f32 %v3195, %v3269
        %v3286 = vmul.f32 %v3197, %v3270
        %v3287 = vmul.f32 %v3199, %v3271
        %v3288 = vmul.f32 %v3201, %v3272
        %v3289 = vmul.f32 %v3203, %v3273
        %v3290 = vmul.f32 %v3205, %v3274
        %v3291 = vmul.f32 %v3207, %v3275
        %v3292 = vmul.f32 %v3209, %v3276
        %v3293 = vmul.f32 %v3211, %v3277
        %v3294 = vmul.f32 %v3213, %v3278
        %v3295 = vmul.f32 %v3215, %v3279
        %s3296 = scalar_lea.vmem %s280, 32 [#allocation2]
        %3297 = vst.msk [vmem:[%s3296] sm:$0xff] %vm885, %v3280
        %3298 = vst.msk [vmem:[%s3296 + $0x8] sm:$0xff] %vm885, %v3281
        %3299 = vst.msk [vmem:[%s3296 + $0x40] sm:$0xff] %vm885, %v3282
        %3300 = vst.msk [vmem:[%s3296 + $0x48] sm:$0xff] %vm885, %v3283
        %3301 = vst.msk [vmem:[%s3296 + $0x80] sm:$0xff] %vm885, %v3284
        %3302 = vst.msk [vmem:[%s3296 + $0x88] sm:$0xff] %vm885, %v3285
        %3303 = vst.msk [vmem:[%s3296 + $0xc0] sm:$0xff] %vm885, %v3286
        %3304 = vst.msk [vmem:[%s3296 + $0xc8] sm:$0xff] %vm885, %v3287
        %3305 = vst.msk [vmem:[%s3296 + $0x100] sm:$0xff] %vm885, %v3288
        %3306 = vst.msk [vmem:[%s3296 + $0x108] sm:$0xff] %vm885, %v3289
        %3307 = vst.msk [vmem:[%s3296 + $0x140] sm:$0xff] %vm885, %v3290
        %3308 = vst.msk [vmem:[%s3296 + $0x148] sm:$0xff] %vm885, %v3291
        %3309 = vst.msk [vmem:[%s3296 + $0x180] sm:$0xff] %vm885, %v3292
        %3310 = vst.msk [vmem:[%s3296 + $0x188] sm:$0xff] %vm885, %v3293
        %3311 = vst.msk [vmem:[%s3296 + $0x1c0] sm:$0xff] %vm885, %v3294
        %3312 = vst.msk [vmem:[%s3296 + $0x1c8] sm:$0xff] %vm885, %v3295
        %v3313 = vpack.c.bf16 %v3281, %v3280
        %v3314 = vpack.c.bf16 %v3283, %v3282
        %v3315 = vpack.c.bf16 %v3285, %v3284
        %v3316 = vpack.c.bf16 %v3287, %v3286
        %v3317 = vpack.c.bf16 %v3289, %v3288
        %v3318 = vpack.c.bf16 %v3291, %v3290
        %v3319 = vpack.c.bf16 %v3293, %v3292
        %v3320 = vpack.c.bf16 %v3295, %v3294
        %3321 = vrot.lane.b32.xlu0 %v476, 48
        %v3322 = vpop.permute.xlu0 %3321
        %v3325 = vsel %vm885, %v3313, 0
        %3327 = vmatprep.subr.bf16.mxu0 0
        %3328 = vmatpush1.bf16.msra.mxu0 %v3322
        %3329 = vmatprep.subr.bf16.mxu0 0
        %3330 = vmatpush1.bf16.msra.mxu0 0
        %3331 = vmatprep.subr.bf16.mxu0 0
        %3332 = vmatpush1.bf16.msra.mxu0 0
        %3333 = vmatprep.subr.bf16.mxu0 0
        %3334 = vmatpush1.bf16.msra.mxu0 0
        %3335 = vmatprep.subr.bf16.mxu0 0
        %3336 = vmatpush1.bf16.msra.mxu0 0
        %3337 = vmatprep.subr.bf16.mxu0 0
        %3338 = vmatpush1.bf16.msra.mxu0 0
        %3339 = vmatprep.subr.bf16.mxu0 0
        %3340 = vmatpush1.bf16.msra.mxu0 0
        %3341 = vmatprep.subr.bf16.mxu0 0
        %3342 = vmatpush1.bf16.msra.mxu0 0
        %3343 = vmatprep.subr.bf16.mxu0 0
        %3344 = vmatpush1.bf16.msra.mxu0 0
        %3345 = vmatprep.subr.bf16.mxu0 0
        %3346 = vmatpush1.bf16.msra.mxu0 0
        %3347 = vmatprep.subr.bf16.mxu0 0
        %3348 = vmatpush1.bf16.msra.mxu0 0
        %3349 = vmatprep.subr.bf16.mxu0 0
        %3350 = vmatpush1.bf16.msra.mxu0 0
        %3351 = vmatprep.subr.bf16.mxu0 0
        %3352 = vmatpush1.bf16.msra.mxu0 0
        %3353 = vmatprep.subr.bf16.mxu0 0
        %3354 = vmatpush1.bf16.msra.mxu0 0
        %3355 = vmatprep.subr.bf16.mxu0 0
        %3356 = vmatpush1.bf16.msra.mxu0 0
        %3357 = vmatprep.subr.bf16.mxu0 0
        %3358 = vmatpush1.bf16.msra.mxu0 0
        %3359 = vmatprep.mubr.bf16.mxu0 0
        %3360 = vmatmul.mubr.bf16.gmra.mrb[0].mxu0 %v3325
        %v3361 = vpop.f32.mrb[0].mxu0
        %v3362 = vadd.f32 0.0, %v3361
        %v3363 = vpop.f32.mrb[0].mxu0
        %v3364 = vpop.f32.mrb[0].mxu0
        %v3365 = vadd.f32 0.0, %v3364
        %v3366 = vpop.f32.mrb[0].mxu0
        %3367 = vdwg.mxu0
        %3368 = vrot.lane.b32.xlu0 %v477, 48
        %v3369 = vpop.permute.xlu0 %3368
        %v3372 = vsel %vm885, %v3314, 0
        %3374 = vmatprep.subr.bf16.mxu0 0
        %3375 = vmatpush1.bf16.msra.mxu0 %v3369
        %3376 = vmatprep.subr.bf16.mxu0 0
        %3377 = vmatpush1.bf16.msra.mxu0 0
        %3378 = vmatprep.subr.bf16.mxu0 0
        %3379 = vmatpush1.bf16.msra.mxu0 0
        %3380 = vmatprep.subr.bf16.mxu0 0
        %3381 = vmatpush1.bf16.msra.mxu0 0
        %3382 = vmatprep.subr.bf16.mxu0 0
        %3383 = vmatpush1.bf16.msra.mxu0 0
        %3384 = vmatprep.subr.bf16.mxu0 0
        %3385 = vmatpush1.bf16.msra.mxu0 0
        %3386 = vmatprep.subr.bf16.mxu0 0
        %3387 = vmatpush1.bf16.msra.mxu0 0
        %3388 = vmatprep.subr.bf16.mxu0 0
        %3389 = vmatpush1.bf16.msra.mxu0 0
        %3390 = vmatprep.subr.bf16.mxu0 0
        %3391 = vmatpush1.bf16.msra.mxu0 0
        %3392 = vmatprep.subr.bf16.mxu0 0
        %3393 = vmatpush1.bf16.msra.mxu0 0
        %3394 = vmatprep.subr.bf16.mxu0 0
        %3395 = vmatpush1.bf16.msra.mxu0 0
        %3396 = vmatprep.subr.bf16.mxu0 0
        %3397 = vmatpush1.bf16.msra.mxu0 0
        %3398 = vmatprep.subr.bf16.mxu0 0
        %3399 = vmatpush1.bf16.msra.mxu0 0
        %3400 = vmatprep.subr.bf16.mxu0 0
        %3401 = vmatpush1.bf16.msra.mxu0 0
        %3402 = vmatprep.subr.bf16.mxu0 0
        %3403 = vmatpush1.bf16.msra.mxu0 0
        %3404 = vmatprep.subr.bf16.mxu0 0
        %3405 = vmatpush1.bf16.msra.mxu0 0
        %3406 = vmatprep.mubr.bf16.mxu0 0
        %3407 = vmatmul.mubr.bf16.gmra.mrb[0].mxu0 %v3372
        %v3408 = vpop.f32.mrb[0].mxu0
        %v3409 = vadd.f32 0.0, %v3408
        %v3410 = vpop.f32.mrb[0].mxu0
        %v3411 = vpop.f32.mrb[0].mxu0
        %v3412 = vadd.f32 0.0, %v3411
        %v3413 = vpop.f32.mrb[0].mxu0
        %3414 = vdwg.mxu0
        %3415 = vrot.lane.b32.xlu0 %v478, 48
        %v3416 = vpop.permute.xlu0 %3415
        %v3419 = vsel %vm885, %v3315, 0
        %3421 = vmatprep.subr.bf16.mxu0 0
        %3422 = vmatpush1.bf16.msra.mxu0 %v3416
        %3423 = vmatprep.subr.bf16.mxu0 0
        %3424 = vmatpush1.bf16.msra.mxu0 0
        %3425 = vmatprep.subr.bf16.mxu0 0
        %3426 = vmatpush1.bf16.msra.mxu0 0
        %3427 = vmatprep.subr.bf16.mxu0 0
        %3428 = vmatpush1.bf16.msra.mxu0 0
        %3429 = vmatprep.subr.bf16.mxu0 0
        %3430 = vmatpush1.bf16.msra.mxu0 0
        %3431 = vmatprep.subr.bf16.mxu0 0
        %3432 = vmatpush1.bf16.msra.mxu0 0
        %3433 = vmatprep.subr.bf16.mxu0 0
        %3434 = vmatpush1.bf16.msra.mxu0 0
        %3435 = vmatprep.subr.bf16.mxu0 0
        %3436 = vmatpush1.bf16.msra.mxu0 0
        %3437 = vmatprep.subr.bf16.mxu0 0
        %3438 = vmatpush1.bf16.msra.mxu0 0
        %3439 = vmatprep.subr.bf16.mxu0 0
        %3440 = vmatpush1.bf16.msra.mxu0 0
        %3441 = vmatprep.subr.bf16.mxu0 0
        %3442 = vmatpush1.bf16.msra.mxu0 0
        %3443 = vmatprep.subr.bf16.mxu0 0
        %3444 = vmatpush1.bf16.msra.mxu0 0
        %3445 = vmatprep.subr.bf16.mxu0 0
        %3446 = vmatpush1.bf16.msra.mxu0 0
        %3447 = vmatprep.subr.bf16.mxu0 0
        %3448 = vmatpush1.bf16.msra.mxu0 0
        %3449 = vmatprep.subr.bf16.mxu0 0
        %3450 = vmatpush1.bf16.msra.mxu0 0
        %3451 = vmatprep.subr.bf16.mxu0 0
        %3452 = vmatpush1.bf16.msra.mxu0 0
        %3453 = vmatprep.mubr.bf16.mxu0 0
        %3454 = vmatmul.mubr.bf16.gmra.mrb[0].mxu0 %v3419
        %v3455 = vpop.f32.mrb[0].mxu0
        %v3456 = vadd.f32 0.0, %v3455
        %v3457 = vpop.f32.mrb[0].mxu0
        %v3458 = vpop.f32.mrb[0].mxu0
        %v3459 = vadd.f32 0.0, %v3458
        %v3460 = vpop.f32.mrb[0].mxu0
        %3461 = vdwg.mxu0
        %3462 = vrot.lane.b32.xlu0 %v479, 48
        %v3463 = vpop.permute.xlu0 %3462
        %v3466 = vsel %vm885, %v3316, 0
        %3468 = vmatprep.subr.bf16.mxu0 0
        %3469 = vmatpush1.bf16.msra.mxu0 %v3463
        %3470 = vmatprep.subr.bf16.mxu0 0
        %3471 = vmatpush1.bf16.msra.mxu0 0
        %3472 = vmatprep.subr.bf16.mxu0 0
        %3473 = vmatpush1.bf16.msra.mxu0 0
        %3474 = vmatprep.subr.bf16.mxu0 0
        %3475 = vmatpush1.bf16.msra.mxu0 0
        %3476 = vmatprep.subr.bf16.mxu0 0
        %3477 = vmatpush1.bf16.msra.mxu0 0
        %3478 = vmatprep.subr.bf16.mxu0 0
        %3479 = vmatpush1.bf16.msra.mxu0 0
        %3480 = vmatprep.subr.bf16.mxu0 0
        %3481 = vmatpush1.bf16.msra.mxu0 0
        %3482 = vmatprep.subr.bf16.mxu0 0
        %3483 = vmatpush1.bf16.msra.mxu0 0
        %3484 = vmatprep.subr.bf16.mxu0 0
        %3485 = vmatpush1.bf16.msra.mxu0 0
        %3486 = vmatprep.subr.bf16.mxu0 0
        %3487 = vmatpush1.bf16.msra.mxu0 0
        %3488 = vmatprep.subr.bf16.mxu0 0
        %3489 = vmatpush1.bf16.msra.mxu0 0
        %3490 = vmatprep.subr.bf16.mxu0 0
        %3491 = vmatpush1.bf16.msra.mxu0 0
        %3492 = vmatprep.subr.bf16.mxu0 0
        %3493 = vmatpush1.bf16.msra.mxu0 0
        %3494 = vmatprep.subr.bf16.mxu0 0
        %3495 = vmatpush1.bf16.msra.mxu0 0
        %3496 = vmatprep.subr.bf16.mxu0 0
        %3497 = vmatpush1.bf16.msra.mxu0 0
        %3498 = vmatprep.subr.bf16.mxu0 0
        %3499 = vmatpush1.bf16.msra.mxu0 0
        %3500 = vmatprep.mubr.bf16.mxu0 0
        %3501 = vmatmul.mubr.bf16.gmra.mrb[0].mxu0 %v3466
        %v3502 = vpop.f32.mrb[0].mxu0
        %v3503 = vadd.f32 0.0, %v3502
        %v3504 = vpop.f32.mrb[0].mxu0
        %v3505 = vpop.f32.mrb[0].mxu0
        %v3506 = vadd.f32 0.0, %v3505
        %v3507 = vpop.f32.mrb[0].mxu0
        %3508 = vdwg.mxu0
        %3509 = vrot.lane.b32.xlu0 %v480, 48
        %v3510 = vpop.permute.xlu0 %3509
        %v3513 = vsel %vm885, %v3317, 0
        %3515 = vmatprep.subr.bf16.mxu0 0
        %3516 = vmatpush1.bf16.msra.mxu0 %v3510
        %3517 = vmatprep.subr.bf16.mxu0 0
        %3518 = vmatpush1.bf16.msra.mxu0 0
        %3519 = vmatprep.subr.bf16.mxu0 0
        %3520 = vmatpush1.bf16.msra.mxu0 0
        %3521 = vmatprep.subr.bf16.mxu0 0
        %3522 = vmatpush1.bf16.msra.mxu0 0
        %3523 = vmatprep.subr.bf16.mxu0 0
        %3524 = vmatpush1.bf16.msra.mxu0 0
        %3525 = vmatprep.subr.bf16.mxu0 0
        %3526 = vmatpush1.bf16.msra.mxu0 0
        %3527 = vmatprep.subr.bf16.mxu0 0
        %3528 = vmatpush1.bf16.msra.mxu0 0
        %3529 = vmatprep.subr.bf16.mxu0 0
        %3530 = vmatpush1.bf16.msra.mxu0 0
        %3531 = vmatprep.subr.bf16.mxu0 0
        %3532 = vmatpush1.bf16.msra.mxu0 0
        %3533 = vmatprep.subr.bf16.mxu0 0
        %3534 = vmatpush1.bf16.msra.mxu0 0
        %3535 = vmatprep.subr.bf16.mxu0 0
        %3536 = vmatpush1.bf16.msra.mxu0 0
        %3537 = vmatprep.subr.bf16.mxu0 0
        %3538 = vmatpush1.bf16.msra.mxu0 0
        %3539 = vmatprep.subr.bf16.mxu0 0
        %3540 = vmatpush1.bf16.msra.mxu0 0
        %3541 = vmatprep.subr.bf16.mxu0 0
        %3542 = vmatpush1.bf16.msra.mxu0 0
        %3543 = vmatprep.subr.bf16.mxu0 0
        %3544 = vmatpush1.bf16.msra.mxu0 0
        %3545 = vmatprep.subr.bf16.mxu0 0
        %3546 = vmatpush1.bf16.msra.mxu0 0
        %3547 = vmatprep.mubr.bf16.mxu0 0
        %3548 = vmatmul.mubr.bf16.gmra.mrb[0].mxu0 %v3513
        %v3549 = vpop.f32.mrb[0].mxu0
        %v3550 = vadd.f32 0.0, %v3549
        %v3551 = vpop.f32.mrb[0].mxu0
        %v3552 = vpop.f32.mrb[0].mxu0
        %v3553 = vadd.f32 0.0, %v3552
        %v3554 = vpop.f32.mrb[0].mxu0
        %3555 = vdwg.mxu0
        %3556 = vrot.lane.b32.xlu0 %v481, 48
        %v3557 = vpop.permute.xlu0 %3556
        %v3560 = vsel %vm885, %v3318, 0
        %3562 = vmatprep.subr.bf16.mxu0 0
        %3563 = vmatpush1.bf16.msra.mxu0 %v3557
        %3564 = vmatprep.subr.bf16.mxu0 0
        %3565 = vmatpush1.bf16.msra.mxu0 0
        %3566 = vmatprep.subr.bf16.mxu0 0
        %3567 = vmatpush1.bf16.msra.mxu0 0
        %3568 = vmatprep.subr.bf16.mxu0 0
        %3569 = vmatpush1.bf16.msra.mxu0 0
        %3570 = vmatprep.subr.bf16.mxu0 0
        %3571 = vmatpush1.bf16.msra.mxu0 0
        %3572 = vmatprep.subr.bf16.mxu0 0
        %3573 = vmatpush1.bf16.msra.mxu0 0
        %3574 = vmatprep.subr.bf16.mxu0 0
        %3575 = vmatpush1.bf16.msra.mxu0 0
        %3576 = vmatprep.subr.bf16.mxu0 0
        %3577 = vmatpush1.bf16.msra.mxu0 0
        %3578 = vmatprep.subr.bf16.mxu0 0
        %3579 = vmatpush1.bf16.msra.mxu0 0
        %3580 = vmatprep.subr.bf16.mxu0 0
        %3581 = vmatpush1.bf16.msra.mxu0 0
        %3582 = vmatprep.subr.bf16.mxu0 0
        %3583 = vmatpush1.bf16.msra.mxu0 0
        %3584 = vmatprep.subr.bf16.mxu0 0
        %3585 = vmatpush1.bf16.msra.mxu0 0
        %3586 = vmatprep.subr.bf16.mxu0 0
        %3587 = vmatpush1.bf16.msra.mxu0 0
        %3588 = vmatprep.subr.bf16.mxu0 0
        %3589 = vmatpush1.bf16.msra.mxu0 0
        %3590 = vmatprep.subr.bf16.mxu0 0
        %3591 = vmatpush1.bf16.msra.mxu0 0
        %3592 = vmatprep.subr.bf16.mxu0 0
        %3593 = vmatpush1.bf16.msra.mxu0 0
        %3594 = vmatprep.mubr.bf16.mxu0 0
        %3595 = vmatmul.mubr.bf16.gmra.mrb[0].mxu0 %v3560
        %v3596 = vpop.f32.mrb[0].mxu0
        %v3597 = vadd.f32 0.0, %v3596
        %v3598 = vpop.f32.mrb[0].mxu0
        %v3599 = vpop.f32.mrb[0].mxu0
        %v3600 = vadd.f32 0.0, %v3599
        %v3601 = vpop.f32.mrb[0].mxu0
        %3602 = vdwg.mxu0
        %3603 = vrot.lane.b32.xlu0 %v482, 48
        %v3604 = vpop.permute.xlu0 %3603
        %v3607 = vsel %vm885, %v3319, 0
        %3609 = vmatprep.subr.bf16.mxu0 0
        %3610 = vmatpush1.bf16.msra.mxu0 %v3604
        %3611 = vmatprep.subr.bf16.mxu0 0
        %3612 = vmatpush1.bf16.msra.mxu0 0
        %3613 = vmatprep.subr.bf16.mxu0 0
        %3614 = vmatpush1.bf16.msra.mxu0 0
        %3615 = vmatprep.subr.bf16.mxu0 0
        %3616 = vmatpush1.bf16.msra.mxu0 0
        %3617 = vmatprep.subr.bf16.mxu0 0
        %3618 = vmatpush1.bf16.msra.mxu0 0
        %3619 = vmatprep.subr.bf16.mxu0 0
        %3620 = vmatpush1.bf16.msra.mxu0 0
        %3621 = vmatprep.subr.bf16.mxu0 0
        %3622 = vmatpush1.bf16.msra.mxu0 0
        %3623 = vmatprep.subr.bf16.mxu0 0
        %3624 = vmatpush1.bf16.msra.mxu0 0
        %3625 = vmatprep.subr.bf16.mxu0 0
        %3626 = vmatpush1.bf16.msra.mxu0 0
        %3627 = vmatprep.subr.bf16.mxu0 0
        %3628 = vmatpush1.bf16.msra.mxu0 0
        %3629 = vmatprep.subr.bf16.mxu0 0
        %3630 = vmatpush1.bf16.msra.mxu0 0
        %3631 = vmatprep.subr.bf16.mxu0 0
        %3632 = vmatpush1.bf16.msra.mxu0 0
        %3633 = vmatprep.subr.bf16.mxu0 0
        %3634 = vmatpush1.bf16.msra.mxu0 0
        %3635 = vmatprep.subr.bf16.mxu0 0
        %3636 = vmatpush1.bf16.msra.mxu0 0
        %3637 = vmatprep.subr.bf16.mxu0 0
        %3638 = vmatpush1.bf16.msra.mxu0 0
        %3639 = vmatprep.subr.bf16.mxu0 0
        %3640 = vmatpush1.bf16.msra.mxu0 0
        %3641 = vmatprep.mubr.bf16.mxu0 0
        %3642 = vmatmul.mubr.bf16.gmra.mrb[0].mxu0 %v3607
        %v3643 = vpop.f32.mrb[0].mxu0
        %v3644 = vadd.f32 0.0, %v3643
        %v3645 = vpop.f32.mrb[0].mxu0
        %v3646 = vpop.f32.mrb[0].mxu0
        %v3647 = vadd.f32 0.0, %v3646
        %v3648 = vpop.f32.mrb[0].mxu0
        %3649 = vdwg.mxu0
        %3650 = vrot.lane.b32.xlu0 %v483, 48
        %v3651 = vpop.permute.xlu0 %3650
        %v3654 = vsel %vm885, %v3320, 0
        %3656 = vmatprep.subr.bf16.mxu0 0
        %3657 = vmatpush1.bf16.msra.mxu0 %v3651
        %3658 = vmatprep.subr.bf16.mxu0 0
        %3659 = vmatpush1.bf16.msra.mxu0 0
        %3660 = vmatprep.subr.bf16.mxu0 0
        %3661 = vmatpush1.bf16.msra.mxu0 0
        %3662 = vmatprep.subr.bf16.mxu0 0
        %3663 = vmatpush1.bf16.msra.mxu0 0
        %3664 = vmatprep.subr.bf16.mxu0 0
        %3665 = vmatpush1.bf16.msra.mxu0 0
        %3666 = vmatprep.subr.bf16.mxu0 0
        %3667 = vmatpush1.bf16.msra.mxu0 0
        %3668 = vmatprep.subr.bf16.mxu0 0
        %3669 = vmatpush1.bf16.msra.mxu0 0
        %3670 = vmatprep.subr.bf16.mxu0 0
        %3671 = vmatpush1.bf16.msra.mxu0 0
        %3672 = vmatprep.subr.bf16.mxu0 0
        %3673 = vmatpush1.bf16.msra.mxu0 0
        %3674 = vmatprep.subr.bf16.mxu0 0
        %3675 = vmatpush1.bf16.msra.mxu0 0
        %3676 = vmatprep.subr.bf16.mxu0 0
        %3677 = vmatpush1.bf16.msra.mxu0 0
        %3678 = vmatprep.subr.bf16.mxu0 0
        %3679 = vmatpush1.bf16.msra.mxu0 0
        %3680 = vmatprep.subr.bf16.mxu0 0
        %3681 = vmatpush1.bf16.msra.mxu0 0
        %3682 = vmatprep.subr.bf16.mxu0 0
        %3683 = vmatpush1.bf16.msra.mxu0 0
        %3684 = vmatprep.subr.bf16.mxu0 0
        %3685 = vmatpush1.bf16.msra.mxu0 0
        %3686 = vmatprep.subr.bf16.mxu0 0
        %3687 = vmatpush1.bf16.msra.mxu0 0
        %3688 = vmatprep.mubr.bf16.mxu0 0
        %3689 = vmatmul.mubr.bf16.gmra.mrb[0].mxu0 %v3654
        %v3690 = vpop.f32.mrb[0].mxu0
        %v3691 = vadd.f32 0.0, %v3690
        %v3692 = vpop.f32.mrb[0].mxu0
        %v3693 = vpop.f32.mrb[0].mxu0
        %v3694 = vadd.f32 0.0, %v3693
        %v3695 = vpop.f32.mrb[0].mxu0
        %3696 = vdwg.mxu0
        %v3697 = vpack.c.bf16 %v3365, %v3362
        %v3698 = vpack.c.bf16 %v3412, %v3409
        %v3699 = vpack.c.bf16 %v3459, %v3456
        %v3700 = vpack.c.bf16 %v3506, %v3503
        %v3701 = vpack.c.bf16 %v3553, %v3550
        %v3702 = vpack.c.bf16 %v3600, %v3597
        %v3703 = vpack.c.bf16 %v3647, %v3644
        %v3704 = vpack.c.bf16 %v3694, %v3691
        %v3706 = vsel %vm487, %v3697, 0
        %v3709 = vsel %vm487, %v3698, 0
        %v3712 = vsel %vm487, %v3699, 0
        %v3715 = vsel %vm487, %v3700, 0
        %v3718 = vsel %vm487, %v3701, 0
        %v3721 = vsel %vm487, %v3702, 0
        %v3724 = vsel %vm487, %v3703, 0
        %v3727 = vsel %vm487, %v3704, 0
        %v3730 = vsel %vm2487, %v466, 0
        %3732 = vmatprep.subr.bf16.mxu0 0
        %3733 = vmatpush1.bf16.msra.mxu0 %v3730
        %3734 = vmatprep.subr.bf16.mxu0 0
        %3735 = vmatpush1.bf16.msra.mxu0 0
        %3736 = vmatprep.subr.bf16.mxu0 0
        %3737 = vmatpush1.bf16.msra.mxu0 0
        %3738 = vmatprep.subr.bf16.mxu0 0
        %3739 = vmatpush1.bf16.msra.mxu0 0
        %3740 = vmatprep.subr.bf16.mxu0 0
        %3741 = vmatpush1.bf16.msra.mxu0 0
        %3742 = vmatprep.subr.bf16.mxu0 0
        %3743 = vmatpush1.bf16.msra.mxu0 0
        %3744 = vmatprep.subr.bf16.mxu0 0
        %3745 = vmatpush1.bf16.msra.mxu0 0
        %3746 = vmatprep.subr.bf16.mxu0 0
        %3747 = vmatpush1.bf16.msra.mxu0 0
        %3748 = vmatprep.subr.bf16.mxu0 0
        %3749 = vmatpush1.bf16.msra.mxu0 0
        %3750 = vmatprep.subr.bf16.mxu0 0
        %3751 = vmatpush1.bf16.msra.mxu0 0
        %3752 = vmatprep.subr.bf16.mxu0 0
        %3753 = vmatpush1.bf16.msra.mxu0 0
        %3754 = vmatprep.subr.bf16.mxu0 0
        %3755 = vmatpush1.bf16.msra.mxu0 0
        %3756 = vmatprep.subr.bf16.mxu0 0
        %3757 = vmatpush1.bf16.msra.mxu0 0
        %3758 = vmatprep.subr.bf16.mxu0 0
        %3759 = vmatpush1.bf16.msra.mxu0 0
        %3760 = vmatprep.subr.bf16.mxu0 0
        %3761 = vmatpush1.bf16.msra.mxu0 0
        %3762 = vmatprep.subr.bf16.mxu0 0
        %3763 = vmatpush1.bf16.msra.mxu0 0
        %3764 = vmatprep.mubr.bf16.mxu0 0
        %3765 = vmatmul.mubr.bf16.gmra.mrb[0].mxu0 %v3706
        %v3766 = vpop.f32.mrb[0].mxu0
        %v3767 = vadd.f32 0.0, %v3766
        %v3768 = vpop.f32.mrb[0].mxu0
        %v3769 = vpop.f32.mrb[0].mxu0
        %v3770 = vadd.f32 0.0, %v3769
        %v3771 = vpop.f32.mrb[0].mxu0
        %3772 = vmatprep.mubr.bf16.mxu0 0
        %3773 = vmatmul.mubr.bf16.gmra.mrb[0].mxu0 %v3709
        %v3774 = vpop.f32.mrb[0].mxu0
        %v3775 = vadd.f32 0.0, %v3774
        %v3776 = vpop.f32.mrb[0].mxu0
        %v3777 = vpop.f32.mrb[0].mxu0
        %v3778 = vadd.f32 0.0, %v3777
        %v3779 = vpop.f32.mrb[0].mxu0
        %3780 = vmatprep.mubr.bf16.mxu0 0
        %3781 = vmatmul.mubr.bf16.gmra.mrb[0].mxu0 %v3712
        %v3782 = vpop.f32.mrb[0].mxu0
        %v3783 = vadd.f32 0.0, %v3782
        %v3784 = vpop.f32.mrb[0].mxu0
        %v3785 = vpop.f32.mrb[0].mxu0
        %v3786 = vadd.f32 0.0, %v3785
        %v3787 = vpop.f32.mrb[0].mxu0
        %3788 = vmatprep.mubr.bf16.mxu0 0
        %3789 = vmatmul.mubr.bf16.gmra.mrb[0].mxu0 %v3715
        %v3790 = vpop.f32.mrb[0].mxu0
        %v3791 = vadd.f32 0.0, %v3790
        %v3792 = vpop.f32.mrb[0].mxu0
        %v3793 = vpop.f32.mrb[0].mxu0
        %v3794 = vadd.f32 0.0, %v3793
        %v3795 = vpop.f32.mrb[0].mxu0
        %3796 = vmatprep.mubr.bf16.mxu0 0
        %3797 = vmatmul.mubr.bf16.gmra.mrb[0].mxu0 %v3718
        %v3798 = vpop.f32.mrb[0].mxu0
        %v3799 = vadd.f32 0.0, %v3798
        %v3800 = vpop.f32.mrb[0].mxu0
        %v3801 = vpop.f32.mrb[0].mxu0
        %v3802 = vadd.f32 0.0, %v3801
        %v3803 = vpop.f32.mrb[0].mxu0
        %3804 = vmatprep.mubr.bf16.mxu0 0
        %3805 = vmatmul.mubr.bf16.gmra.mrb[0].mxu0 %v3721
        %v3806 = vpop.f32.mrb[0].mxu0
        %v3807 = vadd.f32 0.0, %v3806
        %v3808 = vpop.f32.mrb[0].mxu0
        %v3809 = vpop.f32.mrb[0].mxu0
        %v3810 = vadd.f32 0.0, %v3809
        %v3811 = vpop.f32.mrb[0].mxu0
        %3812 = vmatprep.mubr.bf16.mxu0 0
        %3813 = vmatmul.mubr.bf16.gmra.mrb[0].mxu0 %v3724
        %v3814 = vpop.f32.mrb[0].mxu0
        %v3815 = vadd.f32 0.0, %v3814
        %v3816 = vpop.f32.mrb[0].mxu0
        %v3817 = vpop.f32.mrb[0].mxu0
        %v3818 = vadd.f32 0.0, %v3817
        %v3819 = vpop.f32.mrb[0].mxu0
        %3820 = vmatprep.mubr.bf16.mxu0 0
        %3821 = vmatmul.mubr.bf16.gmra.mrb[0].mxu0 %v3727
        %v3822 = vpop.f32.mrb[0].mxu0
        %v3823 = vadd.f32 0.0, %v3822
        %v3824 = vpop.f32.mrb[0].mxu0
        %v3825 = vpop.f32.mrb[0].mxu0
        %v3826 = vadd.f32 0.0, %v3825
        %v3827 = vpop.f32.mrb[0].mxu0
        %3828 = vdwg.mxu0
        %v3829 = vadd.f32 %v2650, %v3767
        %v3830 = vadd.f32 %v2653, %v3770
        %v3831 = vadd.f32 %v2658, %v3775
        %v3832 = vadd.f32 %v2661, %v3778
        %v3833 = vadd.f32 %v2666, %v3783
        %v3834 = vadd.f32 %v2669, %v3786
        %v3835 = vadd.f32 %v2674, %v3791
        %v3836 = vadd.f32 %v2677, %v3794
        %v3837 = vadd.f32 %v2682, %v3799
        %v3838 = vadd.f32 %v2685, %v3802
        %v3839 = vadd.f32 %v2690, %v3807
        %v3840 = vadd.f32 %v2693, %v3810
        %v3841 = vadd.f32 %v2698, %v3815
        %v3842 = vadd.f32 %v2701, %v3818
        %v3843 = vadd.f32 %v2706, %v3823
        %v3844 = vadd.f32 %v2709, %v3826
        %3845 = vrot.lane.b32.xlu0 %v476, 104
        %v3846 = vpop.permute.xlu0 %3845
        %3847 = vrot.lane.b32.xlu0 %v476, 72
        %v3848 = vpop.permute.xlu0 %3847
        %v3850 = vsel %vm487, %v3846, 0
        %v3853 = vsel %vm487, %v3848, 0
        %3855 = vmatprep.subr.bf16.mxu0 0
        %3856 = vmatpush1.bf16.xpose.msra.mxu0 %v3853
        %3857 = vmatprep.subr.bf16.mxu0 0
        %3858 = vmatpush1.bf16.xpose.msra.mxu0 0
        %3859 = vmatprep.subr.bf16.mxu0 0
        %3860 = vmatpush1.bf16.xpose.msra.mxu0 0
        %3861 = vmatprep.subr.bf16.mxu0 0
        %3862 = vmatpush1.bf16.xpose.msra.mxu0 0
        %3863 = vmatprep.subr.bf16.mxu0 0
        %3864 = vmatpush1.bf16.xpose.msra.mxu0 0
        %3865 = vmatprep.subr.bf16.mxu0 0
        %3866 = vmatpush1.bf16.xpose.msra.mxu0 0
        %3867 = vmatprep.subr.bf16.mxu0 0
        %3868 = vmatpush1.bf16.xpose.msra.mxu0 0
        %3869 = vmatprep.subr.bf16.mxu0 0
        %3870 = vmatpush1.bf16.xpose.msra.mxu0 0
        %3871 = vmatprep.subr.bf16.mxu0 0
        %3872 = vmatpush1.bf16.xpose.msra.mxu0 0
        %3873 = vmatprep.subr.bf16.mxu0 0
        %3874 = vmatpush1.bf16.xpose.msra.mxu0 0
        %3875 = vmatprep.subr.bf16.mxu0 0
        %3876 = vmatpush1.bf16.xpose.msra.mxu0 0
        %3877 = vmatprep.subr.bf16.mxu0 0
        %3878 = vmatpush1.bf16.xpose.msra.mxu0 0
        %3879 = vmatprep.subr.bf16.mxu0 0
        %3880 = vmatpush1.bf16.xpose.msra.mxu0 0
        %3881 = vmatprep.subr.bf16.mxu0 0
        %3882 = vmatpush1.bf16.xpose.msra.mxu0 0
        %3883 = vmatprep.subr.bf16.mxu0 0
        %3884 = vmatpush1.bf16.xpose.msra.mxu0 0
        %3885 = vmatprep.subr.bf16.mxu0 0
        %3886 = vmatpush1.bf16.xpose.msra.mxu0 0
        %3887 = vmatprep.mubr.bf16.mxu0 0
        %3888 = vmatmul.mubr.bf16.gmra.mrb[0].mxu0 %v3850
        %v3889 = vpop.f32.mrb[0].mxu0
        %v3890 = vadd.f32 %v474, %v3889
        %v3891 = vpop.f32.mrb[0].mxu0
        %v3892 = vpop.f32.mrb[0].mxu0
        %v3893 = vadd.f32 %v475, %v3892
        %v3894 = vpop.f32.mrb[0].mxu0
        %3895 = vdwg.mxu0
        %3896 = vrot.lane.b32.xlu0 %v477, 104
        %v3897 = vpop.permute.xlu0 %3896
        %3898 = vrot.lane.b32.xlu0 %v477, 72
        %v3899 = vpop.permute.xlu0 %3898
        %v3901 = vsel %vm487, %v3897, 0
        %v3904 = vsel %vm487, %v3899, 0
        %3906 = vmatprep.subr.bf16.mxu0 0
        %3907 = vmatpush1.bf16.xpose.msra.mxu0 %v3904
        %3908 = vmatprep.subr.bf16.mxu0 0
        %3909 = vmatpush1.bf16.xpose.msra.mxu0 0
        %3910 = vmatprep.subr.bf16.mxu0 0
        %3911 = vmatpush1.bf16.xpose.msra.mxu0 0
        %3912 = vmatprep.subr.bf16.mxu0 0
        %3913 = vmatpush1.bf16.xpose.msra.mxu0 0
        %3914 = vmatprep.subr.bf16.mxu0 0
        %3915 = vmatpush1.bf16.xpose.msra.mxu0 0
        %3916 = vmatprep.subr.bf16.mxu0 0
        %3917 = vmatpush1.bf16.xpose.msra.mxu0 0
        %3918 = vmatprep.subr.bf16.mxu0 0
        %3919 = vmatpush1.bf16.xpose.msra.mxu0 0
        %3920 = vmatprep.subr.bf16.mxu0 0
        %3921 = vmatpush1.bf16.xpose.msra.mxu0 0
        %3922 = vmatprep.subr.bf16.mxu0 0
        %3923 = vmatpush1.bf16.xpose.msra.mxu0 0
        %3924 = vmatprep.subr.bf16.mxu0 0
        %3925 = vmatpush1.bf16.xpose.msra.mxu0 0
        %3926 = vmatprep.subr.bf16.mxu0 0
        %3927 = vmatpush1.bf16.xpose.msra.mxu0 0
        %3928 = vmatprep.subr.bf16.mxu0 0
        %3929 = vmatpush1.bf16.xpose.msra.mxu0 0
        %3930 = vmatprep.subr.bf16.mxu0 0
        %3931 = vmatpush1.bf16.xpose.msra.mxu0 0
        %3932 = vmatprep.subr.bf16.mxu0 0
        %3933 = vmatpush1.bf16.xpose.msra.mxu0 0
        %3934 = vmatprep.subr.bf16.mxu0 0
        %3935 = vmatpush1.bf16.xpose.msra.mxu0 0
        %3936 = vmatprep.subr.bf16.mxu0 0
        %3937 = vmatpush1.bf16.xpose.msra.mxu0 0
        %3938 = vmatprep.mubr.bf16.mxu0 0
        %3939 = vmatmul.mubr.bf16.gmra.mrb[0].mxu0 %v3901
        %v3940 = vpop.f32.mrb[0].mxu0
        %v3941 = vadd.f32 %v474, %v3940
        %v3942 = vpop.f32.mrb[0].mxu0
        %v3943 = vpop.f32.mrb[0].mxu0
        %v3944 = vadd.f32 %v475, %v3943
        %v3945 = vpop.f32.mrb[0].mxu0
        %3946 = vdwg.mxu0
        %3947 = vrot.lane.b32.xlu0 %v478, 104
        %v3948 = vpop.permute.xlu0 %3947
        %3949 = vrot.lane.b32.xlu0 %v478, 72
        %v3950 = vpop.permute.xlu0 %3949
        %v3952 = vsel %vm487, %v3948, 0
        %v3955 = vsel %vm487, %v3950, 0
        %3957 = vmatprep.subr.bf16.mxu0 0
        %3958 = vmatpush1.bf16.xpose.msra.mxu0 %v3955
        %3959 = vmatprep.subr.bf16.mxu0 0
        %3960 = vmatpush1.bf16.xpose.msra.mxu0 0
        %3961 = vmatprep.subr.bf16.mxu0 0
        %3962 = vmatpush1.bf16.xpose.msra.mxu0 0
        %3963 = vmatprep.subr.bf16.mxu0 0
        %3964 = vmatpush1.bf16.xpose.msra.mxu0 0
        %3965 = vmatprep.subr.bf16.mxu0 0
        %3966 = vmatpush1.bf16.xpose.msra.mxu0 0
        %3967 = vmatprep.subr.bf16.mxu0 0
        %3968 = vmatpush1.bf16.xpose.msra.mxu0 0
        %3969 = vmatprep.subr.bf16.mxu0 0
        %3970 = vmatpush1.bf16.xpose.msra.mxu0 0
        %3971 = vmatprep.subr.bf16.mxu0 0
        %3972 = vmatpush1.bf16.xpose.msra.mxu0 0
        %3973 = vmatprep.subr.bf16.mxu0 0
        %3974 = vmatpush1.bf16.xpose.msra.mxu0 0
        %3975 = vmatprep.subr.bf16.mxu0 0
        %3976 = vmatpush1.bf16.xpose.msra.mxu0 0
        %3977 = vmatprep.subr.bf16.mxu0 0
        %3978 = vmatpush1.bf16.xpose.msra.mxu0 0
        %3979 = vmatprep.subr.bf16.mxu0 0
        %3980 = vmatpush1.bf16.xpose.msra.mxu0 0
        %3981 = vmatprep.subr.bf16.mxu0 0
        %3982 = vmatpush1.bf16.xpose.msra.mxu0 0
        %3983 = vmatprep.subr.bf16.mxu0 0
        %3984 = vmatpush1.bf16.xpose.msra.mxu0 0
        %3985 = vmatprep.subr.bf16.mxu0 0
        %3986 = vmatpush1.bf16.xpose.msra.mxu0 0
        %3987 = vmatprep.subr.bf16.mxu0 0
        %3988 = vmatpush1.bf16.xpose.msra.mxu0 0
        %3989 = vmatprep.mubr.bf16.mxu0 0
        %3990 = vmatmul.mubr.bf16.gmra.mrb[0].mxu0 %v3952
        %v3991 = vpop.f32.mrb[0].mxu0
        %v3992 = vadd.f32 %v474, %v3991
        %v3993 = vpop.f32.mrb[0].mxu0
        %v3994 = vpop.f32.mrb[0].mxu0
        %v3995 = vadd.f32 %v475, %v3994
        %v3996 = vpop.f32.mrb[0].mxu0
        %3997 = vdwg.mxu0
        %3998 = vrot.lane.b32.xlu0 %v479, 104
        %v3999 = vpop.permute.xlu0 %3998
        %4000 = vrot.lane.b32.xlu0 %v479, 72
        %v4001 = vpop.permute.xlu0 %4000
        %v4003 = vsel %vm487, %v3999, 0
        %v4006 = vsel %vm487, %v4001, 0
        %4008 = vmatprep.subr.bf16.mxu0 0
        %4009 = vmatpush1.bf16.xpose.msra.mxu0 %v4006
        %4010 = vmatprep.subr.bf16.mxu0 0
        %4011 = vmatpush1.bf16.xpose.msra.mxu0 0
        %4012 = vmatprep.subr.bf16.mxu0 0
        %4013 = vmatpush1.bf16.xpose.msra.mxu0 0
        %4014 = vmatprep.subr.bf16.mxu0 0
        %4015 = vmatpush1.bf16.xpose.msra.mxu0 0
        %4016 = vmatprep.subr.bf16.mxu0 0
        %4017 = vmatpush1.bf16.xpose.msra.mxu0 0
        %4018 = vmatprep.subr.bf16.mxu0 0
        %4019 = vmatpush1.bf16.xpose.msra.mxu0 0
        %4020 = vmatprep.subr.bf16.mxu0 0
        %4021 = vmatpush1.bf16.xpose.msra.mxu0 0
        %4022 = vmatprep.subr.bf16.mxu0 0
        %4023 = vmatpush1.bf16.xpose.msra.mxu0 0
        %4024 = vmatprep.subr.bf16.mxu0 0
        %4025 = vmatpush1.bf16.xpose.msra.mxu0 0
        %4026 = vmatprep.subr.bf16.mxu0 0
        %4027 = vmatpush1.bf16.xpose.msra.mxu0 0
        %4028 = vmatprep.subr.bf16.mxu0 0
        %4029 = vmatpush1.bf16.xpose.msra.mxu0 0
        %4030 = vmatprep.subr.bf16.mxu0 0
        %4031 = vmatpush1.bf16.xpose.msra.mxu0 0
        %4032 = vmatprep.subr.bf16.mxu0 0
        %4033 = vmatpush1.bf16.xpose.msra.mxu0 0
        %4034 = vmatprep.subr.bf16.mxu0 0
        %4035 = vmatpush1.bf16.xpose.msra.mxu0 0
        %4036 = vmatprep.subr.bf16.mxu0 0
        %4037 = vmatpush1.bf16.xpose.msra.mxu0 0
        %4038 = vmatprep.subr.bf16.mxu0 0
        %4039 = vmatpush1.bf16.xpose.msra.mxu0 0
        %4040 = vmatprep.mubr.bf16.mxu0 0
        %4041 = vmatmul.mubr.bf16.gmra.mrb[0].mxu0 %v4003
        %v4042 = vpop.f32.mrb[0].mxu0
        %v4043 = vadd.f32 %v474, %v4042
        %v4044 = vpop.f32.mrb[0].mxu0
        %v4045 = vpop.f32.mrb[0].mxu0
        %v4046 = vadd.f32 %v475, %v4045
        %v4047 = vpop.f32.mrb[0].mxu0
        %4048 = vdwg.mxu0
        %4049 = vrot.lane.b32.xlu0 %v480, 104
        %v4050 = vpop.permute.xlu0 %4049
        %4051 = vrot.lane.b32.xlu0 %v480, 72
        %v4052 = vpop.permute.xlu0 %4051
        %v4054 = vsel %vm487, %v4050, 0
        %v4057 = vsel %vm487, %v4052, 0
        %4059 = vmatprep.subr.bf16.mxu0 0
        %4060 = vmatpush1.bf16.xpose.msra.mxu0 %v4057
        %4061 = vmatprep.subr.bf16.mxu0 0
        %4062 = vmatpush1.bf16.xpose.msra.mxu0 0
        %4063 = vmatprep.subr.bf16.mxu0 0
        %4064 = vmatpush1.bf16.xpose.msra.mxu0 0
        %4065 = vmatprep.subr.bf16.mxu0 0
        %4066 = vmatpush1.bf16.xpose.msra.mxu0 0
        %4067 = vmatprep.subr.bf16.mxu0 0
        %4068 = vmatpush1.bf16.xpose.msra.mxu0 0
        %4069 = vmatprep.subr.bf16.mxu0 0
        %4070 = vmatpush1.bf16.xpose.msra.mxu0 0
        %4071 = vmatprep.subr.bf16.mxu0 0
        %4072 = vmatpush1.bf16.xpose.msra.mxu0 0
        %4073 = vmatprep.subr.bf16.mxu0 0
        %4074 = vmatpush1.bf16.xpose.msra.mxu0 0
        %4075 = vmatprep.subr.bf16.mxu0 0
        %4076 = vmatpush1.bf16.xpose.msra.mxu0 0
        %4077 = vmatprep.subr.bf16.mxu0 0
        %4078 = vmatpush1.bf16.xpose.msra.mxu0 0
        %4079 = vmatprep.subr.bf16.mxu0 0
        %4080 = vmatpush1.bf16.xpose.msra.mxu0 0
        %4081 = vmatprep.subr.bf16.mxu0 0
        %4082 = vmatpush1.bf16.xpose.msra.mxu0 0
        %4083 = vmatprep.subr.bf16.mxu0 0
        %4084 = vmatpush1.bf16.xpose.msra.mxu0 0
        %4085 = vmatprep.subr.bf16.mxu0 0
        %4086 = vmatpush1.bf16.xpose.msra.mxu0 0
        %4087 = vmatprep.subr.bf16.mxu0 0
        %4088 = vmatpush1.bf16.xpose.msra.mxu0 0
        %4089 = vmatprep.subr.bf16.mxu0 0
        %4090 = vmatpush1.bf16.xpose.msra.mxu0 0
        %4091 = vmatprep.mubr.bf16.mxu0 0
        %4092 = vmatmul.mubr.bf16.gmra.mrb[0].mxu0 %v4054
        %v4093 = vpop.f32.mrb[0].mxu0
        %v4094 = vadd.f32 %v474, %v4093
        %v4095 = vpop.f32.mrb[0].mxu0
        %v4096 = vpop.f32.mrb[0].mxu0
        %v4097 = vadd.f32 %v475, %v4096
        %v4098 = vpop.f32.mrb[0].mxu0
        %4099 = vdwg.mxu0
        %4100 = vrot.lane.b32.xlu0 %v481, 104
        %v4101 = vpop.permute.xlu0 %4100
        %4102 = vrot.lane.b32.xlu0 %v481, 72
        %v4103 = vpop.permute.xlu0 %4102
        %v4105 = vsel %vm487, %v4101, 0
        %v4108 = vsel %vm487, %v4103, 0
        %4110 = vmatprep.subr.bf16.mxu0 0
        %4111 = vmatpush1.bf16.xpose.msra.mxu0 %v4108
        %4112 = vmatprep.subr.bf16.mxu0 0
        %4113 = vmatpush1.bf16.xpose.msra.mxu0 0
        %4114 = vmatprep.subr.bf16.mxu0 0
        %4115 = vmatpush1.bf16.xpose.msra.mxu0 0
        %4116 = vmatprep.subr.bf16.mxu0 0
        %4117 = vmatpush1.bf16.xpose.msra.mxu0 0
        %4118 = vmatprep.subr.bf16.mxu0 0
        %4119 = vmatpush1.bf16.xpose.msra.mxu0 0
        %4120 = vmatprep.subr.bf16.mxu0 0
        %4121 = vmatpush1.bf16.xpose.msra.mxu0 0
        %4122 = vmatprep.subr.bf16.mxu0 0
        %4123 = vmatpush1.bf16.xpose.msra.mxu0 0
        %4124 = vmatprep.subr.bf16.mxu0 0
        %4125 = vmatpush1.bf16.xpose.msra.mxu0 0
        %4126 = vmatprep.subr.bf16.mxu0 0
        %4127 = vmatpush1.bf16.xpose.msra.mxu0 0
        %4128 = vmatprep.subr.bf16.mxu0 0
        %4129 = vmatpush1.bf16.xpose.msra.mxu0 0
        %4130 = vmatprep.subr.bf16.mxu0 0
        %4131 = vmatpush1.bf16.xpose.msra.mxu0 0
        %4132 = vmatprep.subr.bf16.mxu0 0
        %4133 = vmatpush1.bf16.xpose.msra.mxu0 0
        %4134 = vmatprep.subr.bf16.mxu0 0
        %4135 = vmatpush1.bf16.xpose.msra.mxu0 0
        %4136 = vmatprep.subr.bf16.mxu0 0
        %4137 = vmatpush1.bf16.xpose.msra.mxu0 0
        %4138 = vmatprep.subr.bf16.mxu0 0
        %4139 = vmatpush1.bf16.xpose.msra.mxu0 0
        %4140 = vmatprep.subr.bf16.mxu0 0
        %4141 = vmatpush1.bf16.xpose.msra.mxu0 0
        %4142 = vmatprep.mubr.bf16.mxu0 0
        %4143 = vmatmul.mubr.bf16.gmra.mrb[0].mxu0 %v4105
        %v4144 = vpop.f32.mrb[0].mxu0
        %v4145 = vadd.f32 %v474, %v4144
        %v4146 = vpop.f32.mrb[0].mxu0
        %v4147 = vpop.f32.mrb[0].mxu0
        %v4148 = vadd.f32 %v475, %v4147
        %v4149 = vpop.f32.mrb[0].mxu0
        %4150 = vdwg.mxu0
        %4151 = vrot.lane.b32.xlu0 %v482, 104
        %v4152 = vpop.permute.xlu0 %4151
        %4153 = vrot.lane.b32.xlu0 %v482, 72
        %v4154 = vpop.permute.xlu0 %4153
        %v4156 = vsel %vm487, %v4152, 0
        %v4159 = vsel %vm487, %v4154, 0
        %4161 = vmatprep.subr.bf16.mxu0 0
        %4162 = vmatpush1.bf16.xpose.msra.mxu0 %v4159
        %4163 = vmatprep.subr.bf16.mxu0 0
        %4164 = vmatpush1.bf16.xpose.msra.mxu0 0
        %4165 = vmatprep.subr.bf16.mxu0 0
        %4166 = vmatpush1.bf16.xpose.msra.mxu0 0
        %4167 = vmatprep.subr.bf16.mxu0 0
        %4168 = vmatpush1.bf16.xpose.msra.mxu0 0
        %4169 = vmatprep.subr.bf16.mxu0 0
        %4170 = vmatpush1.bf16.xpose.msra.mxu0 0
        %4171 = vmatprep.subr.bf16.mxu0 0
        %4172 = vmatpush1.bf16.xpose.msra.mxu0 0
        %4173 = vmatprep.subr.bf16.mxu0 0
        %4174 = vmatpush1.bf16.xpose.msra.mxu0 0
        %4175 = vmatprep.subr.bf16.mxu0 0
        %4176 = vmatpush1.bf16.xpose.msra.mxu0 0
        %4177 = vmatprep.subr.bf16.mxu0 0
        %4178 = vmatpush1.bf16.xpose.msra.mxu0 0
        %4179 = vmatprep.subr.bf16.mxu0 0
        %4180 = vmatpush1.bf16.xpose.msra.mxu0 0
        %4181 = vmatprep.subr.bf16.mxu0 0
        %4182 = vmatpush1.bf16.xpose.msra.mxu0 0
        %4183 = vmatprep.subr.bf16.mxu0 0
        %4184 = vmatpush1.bf16.xpose.msra.mxu0 0
        %4185 = vmatprep.subr.bf16.mxu0 0
        %4186 = vmatpush1.bf16.xpose.msra.mxu0 0
        %4187 = vmatprep.subr.bf16.mxu0 0
        %4188 = vmatpush1.bf16.xpose.msra.mxu0 0
        %4189 = vmatprep.subr.bf16.mxu0 0
        %4190 = vmatpush1.bf16.xpose.msra.mxu0 0
        %4191 = vmatprep.subr.bf16.mxu0 0
        %4192 = vmatpush1.bf16.xpose.msra.mxu0 0
        %4193 = vmatprep.mubr.bf16.mxu0 0
        %4194 = vmatmul.mubr.bf16.gmra.mrb[0].mxu0 %v4156
        %v4195 = vpop.f32.mrb[0].mxu0
        %v4196 = vadd.f32 %v474, %v4195
        %v4197 = vpop.f32.mrb[0].mxu0
        %v4198 = vpop.f32.mrb[0].mxu0
        %v4199 = vadd.f32 %v475, %v4198
        %v4200 = vpop.f32.mrb[0].mxu0
        %4201 = vdwg.mxu0
        %4202 = vrot.lane.b32.xlu0 %v483, 104
        %v4203 = vpop.permute.xlu0 %4202
        %4204 = vrot.lane.b32.xlu0 %v483, 72
        %v4205 = vpop.permute.xlu0 %4204
        %v4207 = vsel %vm487, %v4203, 0
        %v4210 = vsel %vm487, %v4205, 0
        %4212 = vmatprep.subr.bf16.mxu0 0
        %4213 = vmatpush1.bf16.xpose.msra.mxu0 %v4210
        %4214 = vmatprep.subr.bf16.mxu0 0
        %4215 = vmatpush1.bf16.xpose.msra.mxu0 0
        %4216 = vmatprep.subr.bf16.mxu0 0
        %4217 = vmatpush1.bf16.xpose.msra.mxu0 0
        %4218 = vmatprep.subr.bf16.mxu0 0
        %4219 = vmatpush1.bf16.xpose.msra.mxu0 0
        %4220 = vmatprep.subr.bf16.mxu0 0
        %4221 = vmatpush1.bf16.xpose.msra.mxu0 0
        %4222 = vmatprep.subr.bf16.mxu0 0
        %4223 = vmatpush1.bf16.xpose.msra.mxu0 0
        %4224 = vmatprep.subr.bf16.mxu0 0
        %4225 = vmatpush1.bf16.xpose.msra.mxu0 0
        %4226 = vmatprep.subr.bf16.mxu0 0
        %4227 = vmatpush1.bf16.xpose.msra.mxu0 0
        %4228 = vmatprep.subr.bf16.mxu0 0
        %4229 = vmatpush1.bf16.xpose.msra.mxu0 0
        %4230 = vmatprep.subr.bf16.mxu0 0
        %4231 = vmatpush1.bf16.xpose.msra.mxu0 0
        %4232 = vmatprep.subr.bf16.mxu0 0
        %4233 = vmatpush1.bf16.xpose.msra.mxu0 0
        %4234 = vmatprep.subr.bf16.mxu0 0
        %4235 = vmatpush1.bf16.xpose.msra.mxu0 0
        %4236 = vmatprep.subr.bf16.mxu0 0
        %4237 = vmatpush1.bf16.xpose.msra.mxu0 0
        %4238 = vmatprep.subr.bf16.mxu0 0
        %4239 = vmatpush1.bf16.xpose.msra.mxu0 0
        %4240 = vmatprep.subr.bf16.mxu0 0
        %4241 = vmatpush1.bf16.xpose.msra.mxu0 0
        %4242 = vmatprep.subr.bf16.mxu0 0
        %4243 = vmatpush1.bf16.xpose.msra.mxu0 0
        %4244 = vmatprep.mubr.bf16.mxu0 0
        %4245 = vmatmul.mubr.bf16.gmra.mrb[0].mxu0 %v4207
        %v4246 = vpop.f32.mrb[0].mxu0
        %v4247 = vadd.f32 %v474, %v4246
        %v4248 = vpop.f32.mrb[0].mxu0
        %v4249 = vpop.f32.mrb[0].mxu0
        %v4250 = vadd.f32 %v475, %v4249
        %v4251 = vpop.f32.mrb[0].mxu0
        %4252 = vdwg.mxu0
        %v4253 = vsel %vm885, %v3890, -inf
        %4254 = vmax.xlane.f32.xlu0 %v4253
        %v4255 = vpop.xlane.xlu0 %4254
        %v4256 = vsel %vm885, %v3893, -inf
        %4257 = vmax.xlane.f32.xlu0 %v4256
        %v4258 = vpop.xlane.xlu0 %4257
        %v4259 = vsel %vm885, %v3941, -inf
        %4260 = vmax.xlane.f32.xlu0 %v4259
        %v4261 = vpop.xlane.xlu0 %4260
        %v4262 = vsel %vm885, %v3944, -inf
        %4263 = vmax.xlane.f32.xlu0 %v4262
        %v4264 = vpop.xlane.xlu0 %4263
        %v4265 = vsel %vm885, %v3992, -inf
        %4266 = vmax.xlane.f32.xlu0 %v4265
        %v4267 = vpop.xlane.xlu0 %4266
        %v4268 = vsel %vm885, %v3995, -inf
        %4269 = vmax.xlane.f32.xlu0 %v4268
        %v4270 = vpop.xlane.xlu0 %4269
        %v4271 = vsel %vm885, %v4043, -inf
        %4272 = vmax.xlane.f32.xlu0 %v4271
        %v4273 = vpop.xlane.xlu0 %4272
        %v4274 = vsel %vm885, %v4046, -inf
        %4275 = vmax.xlane.f32.xlu0 %v4274
        %v4276 = vpop.xlane.xlu0 %4275
        %v4277 = vsel %vm885, %v4094, -inf
        %4278 = vmax.xlane.f32.xlu0 %v4277
        %v4279 = vpop.xlane.xlu0 %4278
        %v4280 = vsel %vm885, %v4097, -inf
        %4281 = vmax.xlane.f32.xlu0 %v4280
        %v4282 = vpop.xlane.xlu0 %4281
        %v4283 = vsel %vm885, %v4145, -inf
        %4284 = vmax.xlane.f32.xlu0 %v4283
        %v4285 = vpop.xlane.xlu0 %4284
        %v4286 = vsel %vm885, %v4148, -inf
        %4287 = vmax.xlane.f32.xlu0 %v4286
        %v4288 = vpop.xlane.xlu0 %4287
        %v4289 = vsel %vm885, %v4196, -inf
        %4290 = vmax.xlane.f32.xlu0 %v4289
        %v4291 = vpop.xlane.xlu0 %4290
        %v4292 = vsel %vm885, %v4199, -inf
        %4293 = vmax.xlane.f32.xlu0 %v4292
        %v4294 = vpop.xlane.xlu0 %4293
        %v4295 = vsel %vm885, %v4247, -inf
        %4296 = vmax.xlane.f32.xlu0 %v4295
        %v4297 = vpop.xlane.xlu0 %4296
        %v4298 = vsel %vm885, %v4250, -inf
        %4299 = vmax.xlane.f32.xlu0 %v4298
        %v4300 = vpop.xlane.xlu0 %4299
        %v4301 = vsub.f32 %v3890, %v4255
        %v4302 = vsub.f32 %v3893, %v4258
        %v4303 = vsub.f32 %v3941, %v4261
        %v4304 = vsub.f32 %v3944, %v4264
        %v4305 = vsub.f32 %v3992, %v4267
        %v4306 = vsub.f32 %v3995, %v4270
        %v4307 = vsub.f32 %v4043, %v4273
        %v4308 = vsub.f32 %v4046, %v4276
        %v4309 = vsub.f32 %v4094, %v4279
        %v4310 = vsub.f32 %v4097, %v4282
        %v4311 = vsub.f32 %v4145, %v4285
        %v4312 = vsub.f32 %v4148, %v4288
        %v4313 = vsub.f32 %v4196, %v4291
        %v4314 = vsub.f32 %v4199, %v4294
        %v4315 = vsub.f32 %v4247, %v4297
        %v4316 = vsub.f32 %v4250, %v4300
        %v4317 = vmul.f32 %v4301, 1.442695
        %v4318 = vpow.pop %v4317
        %v4319 = vmul.f32 %v4302, 1.442695
        %v4320 = vpow.pop %v4319
        %v4321 = vmul.f32 %v4303, 1.442695
        %v4322 = vpow.pop %v4321
        %v4323 = vmul.f32 %v4304, 1.442695
        %v4324 = vpow.pop %v4323
        %v4325 = vmul.f32 %v4305, 1.442695
        %v4326 = vpow.pop %v4325
        %v4327 = vmul.f32 %v4306, 1.442695
        %v4328 = vpow.pop %v4327
        %v4329 = vmul.f32 %v4307, 1.442695
        %v4330 = vpow.pop %v4329
        %v4331 = vmul.f32 %v4308, 1.442695
        %v4332 = vpow.pop %v4331
        %v4333 = vmul.f32 %v4309, 1.442695
        %v4334 = vpow.pop %v4333
        %v4335 = vmul.f32 %v4310, 1.442695
        %v4336 = vpow.pop %v4335
        %v4337 = vmul.f32 %v4311, 1.442695
        %v4338 = vpow.pop %v4337
        %v4339 = vmul.f32 %v4312, 1.442695
        %v4340 = vpow.pop %v4339
        %v4341 = vmul.f32 %v4313, 1.442695
        %v4342 = vpow.pop %v4341
        %v4343 = vmul.f32 %v4314, 1.442695
        %v4344 = vpow.pop %v4343
        %v4345 = vmul.f32 %v4315, 1.442695
        %v4346 = vpow.pop %v4345
        %v4347 = vmul.f32 %v4316, 1.442695
        %v4348 = vpow.pop %v4347
        %v4349 = vsel %vm885, %v4318, 0.0
        %4350 = vadd.xlane.f32.xlu0 %v4349
        %v4351 = vpop.xlane.xlu0 %4350
        %v4352 = vsel %vm885, %v4320, 0.0
        %4353 = vadd.xlane.f32.xlu0 %v4352
        %v4354 = vpop.xlane.xlu0 %4353
        %v4355 = vsel %vm885, %v4322, 0.0
        %4356 = vadd.xlane.f32.xlu0 %v4355
        %v4357 = vpop.xlane.xlu0 %4356
        %v4358 = vsel %vm885, %v4324, 0.0
        %4359 = vadd.xlane.f32.xlu0 %v4358
        %v4360 = vpop.xlane.xlu0 %4359
        %v4361 = vsel %vm885, %v4326, 0.0
        %4362 = vadd.xlane.f32.xlu0 %v4361
        %v4363 = vpop.xlane.xlu0 %4362
        %v4364 = vsel %vm885, %v4328, 0.0
        %4365 = vadd.xlane.f32.xlu0 %v4364
        %v4366 = vpop.xlane.xlu0 %4365
        %v4367 = vsel %vm885, %v4330, 0.0
        %4368 = vadd.xlane.f32.xlu0 %v4367
        %v4369 = vpop.xlane.xlu0 %4368
        %v4370 = vsel %vm885, %v4332, 0.0
        %4371 = vadd.xlane.f32.xlu0 %v4370
        %v4372 = vpop.xlane.xlu0 %4371
        %v4373 = vsel %vm885, %v4334, 0.0
        %4374 = vadd.xlane.f32.xlu0 %v4373
        %v4375 = vpop.xlane.xlu0 %4374
        %v4376 = vsel %vm885, %v4336, 0.0
        %4377 = vadd.xlane.f32.xlu0 %v4376
        %v4378 = vpop.xlane.xlu0 %4377
        %v4379 = vsel %vm885, %v4338, 0.0
        %4380 = vadd.xlane.f32.xlu0 %v4379
        %v4381 = vpop.xlane.xlu0 %4380
        %v4382 = vsel %vm885, %v4340, 0.0
        %4383 = vadd.xlane.f32.xlu0 %v4382
        %v4384 = vpop.xlane.xlu0 %4383
        %v4385 = vsel %vm885, %v4342, 0.0
        %4386 = vadd.xlane.f32.xlu0 %v4385
        %v4387 = vpop.xlane.xlu0 %4386
        %v4388 = vsel %vm885, %v4344, 0.0
        %4389 = vadd.xlane.f32.xlu0 %v4388
        %v4390 = vpop.xlane.xlu0 %4389
        %v4391 = vsel %vm885, %v4346, 0.0
        %4392 = vadd.xlane.f32.xlu0 %v4391
        %v4393 = vpop.xlane.xlu0 %4392
        %v4394 = vsel %vm885, %v4348, 0.0
        %4395 = vadd.xlane.f32.xlu0 %v4394
        %v4396 = vpop.xlane.xlu0 %4395
        %v4397 = vrcp.pop %v4351
        %v4398 = vrcp.pop %v4354
        %v4399 = vrcp.pop %v4357
        %v4400 = vrcp.pop %v4360
        %v4401 = vrcp.pop %v4363
        %v4402 = vrcp.pop %v4366
        %v4403 = vrcp.pop %v4369
        %v4404 = vrcp.pop %v4372
        %v4405 = vrcp.pop %v4375
        %v4406 = vrcp.pop %v4378
        %v4407 = vrcp.pop %v4381
        %v4408 = vrcp.pop %v4384
        %v4409 = vrcp.pop %v4387
        %v4410 = vrcp.pop %v4390
        %v4411 = vrcp.pop %v4393
        %v4412 = vrcp.pop %v4396
        %v4413 = vmul.f32 %v4318, %v4397
        %v4414 = vmul.f32 %v4320, %v4398
        %v4415 = vmul.f32 %v4322, %v4399
        %v4416 = vmul.f32 %v4324, %v4400
        %v4417 = vmul.f32 %v4326, %v4401
        %v4418 = vmul.f32 %v4328, %v4402
        %v4419 = vmul.f32 %v4330, %v4403
        %v4420 = vmul.f32 %v4332, %v4404
        %v4421 = vmul.f32 %v4334, %v4405
        %v4422 = vmul.f32 %v4336, %v4406
        %v4423 = vmul.f32 %v4338, %v4407
        %v4424 = vmul.f32 %v4340, %v4408
        %v4425 = vmul.f32 %v4342, %v4409
        %v4426 = vmul.f32 %v4344, %v4410
        %v4427 = vmul.f32 %v4346, %v4411
        %v4428 = vmul.f32 %v4348, %v4412
        %s4429 = scalar_lea.vmem %s280, 48 [#allocation2]
        %4430 = vst.msk [vmem:[%s4429] sm:$0xff] %vm885, %v4413
        %4431 = vst.msk [vmem:[%s4429 + $0x8] sm:$0xff] %vm885, %v4414
        %4432 = vst.msk [vmem:[%s4429 + $0x40] sm:$0xff] %vm885, %v4415
        %4433 = vst.msk [vmem:[%s4429 + $0x48] sm:$0xff] %vm885, %v4416
        %4434 = vst.msk [vmem:[%s4429 + $0x80] sm:$0xff] %vm885, %v4417
        %4435 = vst.msk [vmem:[%s4429 + $0x88] sm:$0xff] %vm885, %v4418
        %4436 = vst.msk [vmem:[%s4429 + $0xc0] sm:$0xff] %vm885, %v4419
        %4437 = vst.msk [vmem:[%s4429 + $0xc8] sm:$0xff] %vm885, %v4420
        %4438 = vst.msk [vmem:[%s4429 + $0x100] sm:$0xff] %vm885, %v4421
        %4439 = vst.msk [vmem:[%s4429 + $0x108] sm:$0xff] %vm885, %v4422
        %4440 = vst.msk [vmem:[%s4429 + $0x140] sm:$0xff] %vm885, %v4423
        %4441 = vst.msk [vmem:[%s4429 + $0x148] sm:$0xff] %vm885, %v4424
        %4442 = vst.msk [vmem:[%s4429 + $0x180] sm:$0xff] %vm885, %v4425
        %4443 = vst.msk [vmem:[%s4429 + $0x188] sm:$0xff] %vm885, %v4426
        %4444 = vst.msk [vmem:[%s4429 + $0x1c0] sm:$0xff] %vm885, %v4427
        %4445 = vst.msk [vmem:[%s4429 + $0x1c8] sm:$0xff] %vm885, %v4428
        %v4446 = vpack.c.bf16 %v4414, %v4413
        %v4447 = vpack.c.bf16 %v4416, %v4415
        %v4448 = vpack.c.bf16 %v4418, %v4417
        %v4449 = vpack.c.bf16 %v4420, %v4419
        %v4450 = vpack.c.bf16 %v4422, %v4421
        %v4451 = vpack.c.bf16 %v4424, %v4423
        %v4452 = vpack.c.bf16 %v4426, %v4425
        %v4453 = vpack.c.bf16 %v4428, %v4427
        %4454 = vrot.lane.b32.xlu0 %v476, 40
        %v4455 = vpop.permute.xlu0 %4454
        %v4458 = vsel %vm885, %v4446, 0
        %4460 = vmatprep.subr.bf16.mxu0 0
        %4461 = vmatpush1.bf16.msra.mxu0 %v4455
        %4462 = vmatprep.subr.bf16.mxu0 0
        %4463 = vmatpush1.bf16.msra.mxu0 0
        %4464 = vmatprep.subr.bf16.mxu0 0
        %4465 = vmatpush1.bf16.msra.mxu0 0
        %4466 = vmatprep.subr.bf16.mxu0 0
        %4467 = vmatpush1.bf16.msra.mxu0 0
        %4468 = vmatprep.subr.bf16.mxu0 0
        %4469 = vmatpush1.bf16.msra.mxu0 0
        %4470 = vmatprep.subr.bf16.mxu0 0
        %4471 = vmatpush1.bf16.msra.mxu0 0
        %4472 = vmatprep.subr.bf16.mxu0 0
        %4473 = vmatpush1.bf16.msra.mxu0 0
        %4474 = vmatprep.subr.bf16.mxu0 0
        %4475 = vmatpush1.bf16.msra.mxu0 0
        %4476 = vmatprep.subr.bf16.mxu0 0
        %4477 = vmatpush1.bf16.msra.mxu0 0
        %4478 = vmatprep.subr.bf16.mxu0 0
        %4479 = vmatpush1.bf16.msra.mxu0 0
        %4480 = vmatprep.subr.bf16.mxu0 0
        %4481 = vmatpush1.bf16.msra.mxu0 0
        %4482 = vmatprep.subr.bf16.mxu0 0
        %4483 = vmatpush1.bf16.msra.mxu0 0
        %4484 = vmatprep.subr.bf16.mxu0 0
        %4485 = vmatpush1.bf16.msra.mxu0 0
        %4486 = vmatprep.subr.bf16.mxu0 0
        %4487 = vmatpush1.bf16.msra.mxu0 0
        %4488 = vmatprep.subr.bf16.mxu0 0
        %4489 = vmatpush1.bf16.msra.mxu0 0
        %4490 = vmatprep.subr.bf16.mxu0 0
        %4491 = vmatpush1.bf16.msra.mxu0 0
        %4492 = vmatprep.mubr.bf16.mxu0 0
        %4493 = vmatmul.mubr.bf16.gmra.mrb[0].mxu0 %v4458
        %v4494 = vpop.f32.mrb[0].mxu0
        %v4495 = vadd.f32 0.0, %v4494
        %v4496 = vpop.f32.mrb[0].mxu0
        %v4497 = vpop.f32.mrb[0].mxu0
        %v4498 = vadd.f32 0.0, %v4497
        %v4499 = vpop.f32.mrb[0].mxu0
        %4500 = vdwg.mxu0
        %4501 = vrot.lane.b32.xlu0 %v477, 40
        %v4502 = vpop.permute.xlu0 %4501
        %v4505 = vsel %vm885, %v4447, 0
        %4507 = vmatprep.subr.bf16.mxu0 0
        %4508 = vmatpush1.bf16.msra.mxu0 %v4502
        %4509 = vmatprep.subr.bf16.mxu0 0
        %4510 = vmatpush1.bf16.msra.mxu0 0
        %4511 = vmatprep.subr.bf16.mxu0 0
        %4512 = vmatpush1.bf16.msra.mxu0 0
        %4513 = vmatprep.subr.bf16.mxu0 0
        %4514 = vmatpush1.bf16.msra.mxu0 0
        %4515 = vmatprep.subr.bf16.mxu0 0
        %4516 = vmatpush1.bf16.msra.mxu0 0
        %4517 = vmatprep.subr.bf16.mxu0 0
        %4518 = vmatpush1.bf16.msra.mxu0 0
        %4519 = vmatprep.subr.bf16.mxu0 0
        %4520 = vmatpush1.bf16.msra.mxu0 0
        %4521 = vmatprep.subr.bf16.mxu0 0
        %4522 = vmatpush1.bf16.msra.mxu0 0
        %4523 = vmatprep.subr.bf16.mxu0 0
        %4524 = vmatpush1.bf16.msra.mxu0 0
        %4525 = vmatprep.subr.bf16.mxu0 0
        %4526 = vmatpush1.bf16.msra.mxu0 0
        %4527 = vmatprep.subr.bf16.mxu0 0
        %4528 = vmatpush1.bf16.msra.mxu0 0
        %4529 = vmatprep.subr.bf16.mxu0 0
        %4530 = vmatpush1.bf16.msra.mxu0 0
        %4531 = vmatprep.subr.bf16.mxu0 0
        %4532 = vmatpush1.bf16.msra.mxu0 0
        %4533 = vmatprep.subr.bf16.mxu0 0
        %4534 = vmatpush1.bf16.msra.mxu0 0
        %4535 = vmatprep.subr.bf16.mxu0 0
        %4536 = vmatpush1.bf16.msra.mxu0 0
        %4537 = vmatprep.subr.bf16.mxu0 0
        %4538 = vmatpush1.bf16.msra.mxu0 0
        %4539 = vmatprep.mubr.bf16.mxu0 0
        %4540 = vmatmul.mubr.bf16.gmra.mrb[0].mxu0 %v4505
        %v4541 = vpop.f32.mrb[0].mxu0
        %v4542 = vadd.f32 0.0, %v4541
        %v4543 = vpop.f32.mrb[0].mxu0
        %v4544 = vpop.f32.mrb[0].mxu0
        %v4545 = vadd.f32 0.0, %v4544
        %v4546 = vpop.f32.mrb[0].mxu0
        %4547 = vdwg.mxu0
        %4548 = vrot.lane.b32.xlu0 %v478, 40
        %v4549 = vpop.permute.xlu0 %4548
        %v4552 = vsel %vm885, %v4448, 0
        %4554 = vmatprep.subr.bf16.mxu0 0
        %4555 = vmatpush1.bf16.msra.mxu0 %v4549
        %4556 = vmatprep.subr.bf16.mxu0 0
        %4557 = vmatpush1.bf16.msra.mxu0 0
        %4558 = vmatprep.subr.bf16.mxu0 0
        %4559 = vmatpush1.bf16.msra.mxu0 0
        %4560 = vmatprep.subr.bf16.mxu0 0
        %4561 = vmatpush1.bf16.msra.mxu0 0
        %4562 = vmatprep.subr.bf16.mxu0 0
        %4563 = vmatpush1.bf16.msra.mxu0 0
        %4564 = vmatprep.subr.bf16.mxu0 0
        %4565 = vmatpush1.bf16.msra.mxu0 0
        %4566 = vmatprep.subr.bf16.mxu0 0
        %4567 = vmatpush1.bf16.msra.mxu0 0
        %4568 = vmatprep.subr.bf16.mxu0 0
        %4569 = vmatpush1.bf16.msra.mxu0 0
        %4570 = vmatprep.subr.bf16.mxu0 0
        %4571 = vmatpush1.bf16.msra.mxu0 0
        %4572 = vmatprep.subr.bf16.mxu0 0
        %4573 = vmatpush1.bf16.msra.mxu0 0
        %4574 = vmatprep.subr.bf16.mxu0 0
        %4575 = vmatpush1.bf16.msra.mxu0 0
        %4576 = vmatprep.subr.bf16.mxu0 0
        %4577 = vmatpush1.bf16.msra.mxu0 0
        %4578 = vmatprep.subr.bf16.mxu0 0
        %4579 = vmatpush1.bf16.msra.mxu0 0
        %4580 = vmatprep.subr.bf16.mxu0 0
        %4581 = vmatpush1.bf16.msra.mxu0 0
        %4582 = vmatprep.subr.bf16.mxu0 0
        %4583 = vmatpush1.bf16.msra.mxu0 0
        %4584 = vmatprep.subr.bf16.mxu0 0
        %4585 = vmatpush1.bf16.msra.mxu0 0
        %4586 = vmatprep.mubr.bf16.mxu0 0
        %4587 = vmatmul.mubr.bf16.gmra.mrb[0].mxu0 %v4552
        %v4588 = vpop.f32.mrb[0].mxu0
        %v4589 = vadd.f32 0.0, %v4588
        %v4590 = vpop.f32.mrb[0].mxu0
        %v4591 = vpop.f32.mrb[0].mxu0
        %v4592 = vadd.f32 0.0, %v4591
        %v4593 = vpop.f32.mrb[0].mxu0
        %4594 = vdwg.mxu0
        %4595 = vrot.lane.b32.xlu0 %v479, 40
        %v4596 = vpop.permute.xlu0 %4595
        %v4599 = vsel %vm885, %v4449, 0
        %4601 = vmatprep.subr.bf16.mxu0 0
        %4602 = vmatpush1.bf16.msra.mxu0 %v4596
        %4603 = vmatprep.subr.bf16.mxu0 0
        %4604 = vmatpush1.bf16.msra.mxu0 0
        %4605 = vmatprep.subr.bf16.mxu0 0
        %4606 = vmatpush1.bf16.msra.mxu0 0
        %4607 = vmatprep.subr.bf16.mxu0 0
        %4608 = vmatpush1.bf16.msra.mxu0 0
        %4609 = vmatprep.subr.bf16.mxu0 0
        %4610 = vmatpush1.bf16.msra.mxu0 0
        %4611 = vmatprep.subr.bf16.mxu0 0
        %4612 = vmatpush1.bf16.msra.mxu0 0
        %4613 = vmatprep.subr.bf16.mxu0 0
        %4614 = vmatpush1.bf16.msra.mxu0 0
        %4615 = vmatprep.subr.bf16.mxu0 0
        %4616 = vmatpush1.bf16.msra.mxu0 0
        %4617 = vmatprep.subr.bf16.mxu0 0
        %4618 = vmatpush1.bf16.msra.mxu0 0
        %4619 = vmatprep.subr.bf16.mxu0 0
        %4620 = vmatpush1.bf16.msra.mxu0 0
        %4621 = vmatprep.subr.bf16.mxu0 0
        %4622 = vmatpush1.bf16.msra.mxu0 0
        %4623 = vmatprep.subr.bf16.mxu0 0
        %4624 = vmatpush1.bf16.msra.mxu0 0
        %4625 = vmatprep.subr.bf16.mxu0 0
        %4626 = vmatpush1.bf16.msra.mxu0 0
        %4627 = vmatprep.subr.bf16.mxu0 0
        %4628 = vmatpush1.bf16.msra.mxu0 0
        %4629 = vmatprep.subr.bf16.mxu0 0
        %4630 = vmatpush1.bf16.msra.mxu0 0
        %4631 = vmatprep.subr.bf16.mxu0 0
        %4632 = vmatpush1.bf16.msra.mxu0 0
        %4633 = vmatprep.mubr.bf16.mxu0 0
        %4634 = vmatmul.mubr.bf16.gmra.mrb[0].mxu0 %v4599
        %v4635 = vpop.f32.mrb[0].mxu0
        %v4636 = vadd.f32 0.0, %v4635
        %v4637 = vpop.f32.mrb[0].mxu0
        %v4638 = vpop.f32.mrb[0].mxu0
        %v4639 = vadd.f32 0.0, %v4638
        %v4640 = vpop.f32.mrb[0].mxu0
        %4641 = vdwg.mxu0
        %4642 = vrot.lane.b32.xlu0 %v480, 40
        %v4643 = vpop.permute.xlu0 %4642
        %v4646 = vsel %vm885, %v4450, 0
        %4648 = vmatprep.subr.bf16.mxu0 0
        %4649 = vmatpush1.bf16.msra.mxu0 %v4643
        %4650 = vmatprep.subr.bf16.mxu0 0
        %4651 = vmatpush1.bf16.msra.mxu0 0
        %4652 = vmatprep.subr.bf16.mxu0 0
        %4653 = vmatpush1.bf16.msra.mxu0 0
        %4654 = vmatprep.subr.bf16.mxu0 0
        %4655 = vmatpush1.bf16.msra.mxu0 0
        %4656 = vmatprep.subr.bf16.mxu0 0
        %4657 = vmatpush1.bf16.msra.mxu0 0
        %4658 = vmatprep.subr.bf16.mxu0 0
        %4659 = vmatpush1.bf16.msra.mxu0 0
        %4660 = vmatprep.subr.bf16.mxu0 0
        %4661 = vmatpush1.bf16.msra.mxu0 0
        %4662 = vmatprep.subr.bf16.mxu0 0
        %4663 = vmatpush1.bf16.msra.mxu0 0
        %4664 = vmatprep.subr.bf16.mxu0 0
        %4665 = vmatpush1.bf16.msra.mxu0 0
        %4666 = vmatprep.subr.bf16.mxu0 0
        %4667 = vmatpush1.bf16.msra.mxu0 0
        %4668 = vmatprep.subr.bf16.mxu0 0
        %4669 = vmatpush1.bf16.msra.mxu0 0
        %4670 = vmatprep.subr.bf16.mxu0 0
        %4671 = vmatpush1.bf16.msra.mxu0 0
        %4672 = vmatprep.subr.bf16.mxu0 0
        %4673 = vmatpush1.bf16.msra.mxu0 0
        %4674 = vmatprep.subr.bf16.mxu0 0
        %4675 = vmatpush1.bf16.msra.mxu0 0
        %4676 = vmatprep.subr.bf16.mxu0 0
        %4677 = vmatpush1.bf16.msra.mxu0 0
        %4678 = vmatprep.subr.bf16.mxu0 0
        %4679 = vmatpush1.bf16.msra.mxu0 0
        %4680 = vmatprep.mubr.bf16.mxu0 0
        %4681 = vmatmul.mubr.bf16.gmra.mrb[0].mxu0 %v4646
        %v4682 = vpop.f32.mrb[0].mxu0
        %v4683 = vadd.f32 0.0, %v4682
        %v4684 = vpop.f32.mrb[0].mxu0
        %v4685 = vpop.f32.mrb[0].mxu0
        %v4686 = vadd.f32 0.0, %v4685
        %v4687 = vpop.f32.mrb[0].mxu0
        %4688 = vdwg.mxu0
        %4689 = vrot.lane.b32.xlu0 %v481, 40
        %v4690 = vpop.permute.xlu0 %4689
        %v4693 = vsel %vm885, %v4451, 0
        %4695 = vmatprep.subr.bf16.mxu0 0
        %4696 = vmatpush1.bf16.msra.mxu0 %v4690
        %4697 = vmatprep.subr.bf16.mxu0 0
        %4698 = vmatpush1.bf16.msra.mxu0 0
        %4699 = vmatprep.subr.bf16.mxu0 0
        %4700 = vmatpush1.bf16.msra.mxu0 0
        %4701 = vmatprep.subr.bf16.mxu0 0
        %4702 = vmatpush1.bf16.msra.mxu0 0
        %4703 = vmatprep.subr.bf16.mxu0 0
        %4704 = vmatpush1.bf16.msra.mxu0 0
        %4705 = vmatprep.subr.bf16.mxu0 0
        %4706 = vmatpush1.bf16.msra.mxu0 0
        %4707 = vmatprep.subr.bf16.mxu0 0
        %4708 = vmatpush1.bf16.msra.mxu0 0
        %4709 = vmatprep.subr.bf16.mxu0 0
        %4710 = vmatpush1.bf16.msra.mxu0 0
        %4711 = vmatprep.subr.bf16.mxu0 0
        %4712 = vmatpush1.bf16.msra.mxu0 0
        %4713 = vmatprep.subr.bf16.mxu0 0
        %4714 = vmatpush1.bf16.msra.mxu0 0
        %4715 = vmatprep.subr.bf16.mxu0 0
        %4716 = vmatpush1.bf16.msra.mxu0 0
        %4717 = vmatprep.subr.bf16.mxu0 0
        %4718 = vmatpush1.bf16.msra.mxu0 0
        %4719 = vmatprep.subr.bf16.mxu0 0
        %4720 = vmatpush1.bf16.msra.mxu0 0
        %4721 = vmatprep.subr.bf16.mxu0 0
        %4722 = vmatpush1.bf16.msra.mxu0 0
        %4723 = vmatprep.subr.bf16.mxu0 0
        %4724 = vmatpush1.bf16.msra.mxu0 0
        %4725 = vmatprep.subr.bf16.mxu0 0
        %4726 = vmatpush1.bf16.msra.mxu0 0
        %4727 = vmatprep.mubr.bf16.mxu0 0
        %4728 = vmatmul.mubr.bf16.gmra.mrb[0].mxu0 %v4693
        %v4729 = vpop.f32.mrb[0].mxu0
        %v4730 = vadd.f32 0.0, %v4729
        %v4731 = vpop.f32.mrb[0].mxu0
        %v4732 = vpop.f32.mrb[0].mxu0
        %v4733 = vadd.f32 0.0, %v4732
        %v4734 = vpop.f32.mrb[0].mxu0
        %4735 = vdwg.mxu0
        %4736 = vrot.lane.b32.xlu0 %v482, 40
        %v4737 = vpop.permute.xlu0 %4736
        %v4740 = vsel %vm885, %v4452, 0
        %4742 = vmatprep.subr.bf16.mxu0 0
        %4743 = vmatpush1.bf16.msra.mxu0 %v4737
        %4744 = vmatprep.subr.bf16.mxu0 0
        %4745 = vmatpush1.bf16.msra.mxu0 0
        %4746 = vmatprep.subr.bf16.mxu0 0
        %4747 = vmatpush1.bf16.msra.mxu0 0
        %4748 = vmatprep.subr.bf16.mxu0 0
        %4749 = vmatpush1.bf16.msra.mxu0 0
        %4750 = vmatprep.subr.bf16.mxu0 0
        %4751 = vmatpush1.bf16.msra.mxu0 0
        %4752 = vmatprep.subr.bf16.mxu0 0
        %4753 = vmatpush1.bf16.msra.mxu0 0
        %4754 = vmatprep.subr.bf16.mxu0 0
        %4755 = vmatpush1.bf16.msra.mxu0 0
        %4756 = vmatprep.subr.bf16.mxu0 0
        %4757 = vmatpush1.bf16.msra.mxu0 0
        %4758 = vmatprep.subr.bf16.mxu0 0
        %4759 = vmatpush1.bf16.msra.mxu0 0
        %4760 = vmatprep.subr.bf16.mxu0 0
        %4761 = vmatpush1.bf16.msra.mxu0 0
        %4762 = vmatprep.subr.bf16.mxu0 0
        %4763 = vmatpush1.bf16.msra.mxu0 0
        %4764 = vmatprep.subr.bf16.mxu0 0
        %4765 = vmatpush1.bf16.msra.mxu0 0
        %4766 = vmatprep.subr.bf16.mxu0 0
        %4767 = vmatpush1.bf16.msra.mxu0 0
        %4768 = vmatprep.subr.bf16.mxu0 0
        %4769 = vmatpush1.bf16.msra.mxu0 0
        %4770 = vmatprep.subr.bf16.mxu0 0
        %4771 = vmatpush1.bf16.msra.mxu0 0
        %4772 = vmatprep.subr.bf16.mxu0 0
        %4773 = vmatpush1.bf16.msra.mxu0 0
        %4774 = vmatprep.mubr.bf16.mxu0 0
        %4775 = vmatmul.mubr.bf16.gmra.mrb[0].mxu0 %v4740
        %v4776 = vpop.f32.mrb[0].mxu0
        %v4777 = vadd.f32 0.0, %v4776
        %v4778 = vpop.f32.mrb[0].mxu0
        %v4779 = vpop.f32.mrb[0].mxu0
        %v4780 = vadd.f32 0.0, %v4779
        %v4781 = vpop.f32.mrb[0].mxu0
        %4782 = vdwg.mxu0
        %4783 = vrot.lane.b32.xlu0 %v483, 40
        %v4784 = vpop.permute.xlu0 %4783
        %v4787 = vsel %vm885, %v4453, 0
        %4789 = vmatprep.subr.bf16.mxu0 0
        %4790 = vmatpush1.bf16.msra.mxu0 %v4784
        %4791 = vmatprep.subr.bf16.mxu0 0
        %4792 = vmatpush1.bf16.msra.mxu0 0
        %4793 = vmatprep.subr.bf16.mxu0 0
        %4794 = vmatpush1.bf16.msra.mxu0 0
        %4795 = vmatprep.subr.bf16.mxu0 0
        %4796 = vmatpush1.bf16.msra.mxu0 0
        %4797 = vmatprep.subr.bf16.mxu0 0
        %4798 = vmatpush1.bf16.msra.mxu0 0
        %4799 = vmatprep.subr.bf16.mxu0 0
        %4800 = vmatpush1.bf16.msra.mxu0 0
        %4801 = vmatprep.subr.bf16.mxu0 0
        %4802 = vmatpush1.bf16.msra.mxu0 0
        %4803 = vmatprep.subr.bf16.mxu0 0
        %4804 = vmatpush1.bf16.msra.mxu0 0
        %4805 = vmatprep.subr.bf16.mxu0 0
        %4806 = vmatpush1.bf16.msra.mxu0 0
        %4807 = vmatprep.subr.bf16.mxu0 0
        %4808 = vmatpush1.bf16.msra.mxu0 0
        %4809 = vmatprep.subr.bf16.mxu0 0
        %4810 = vmatpush1.bf16.msra.mxu0 0
        %4811 = vmatprep.subr.bf16.mxu0 0
        %4812 = vmatpush1.bf16.msra.mxu0 0
        %4813 = vmatprep.subr.bf16.mxu0 0
        %4814 = vmatpush1.bf16.msra.mxu0 0
        %4815 = vmatprep.subr.bf16.mxu0 0
        %4816 = vmatpush1.bf16.msra.mxu0 0
        %4817 = vmatprep.subr.bf16.mxu0 0
        %4818 = vmatpush1.bf16.msra.mxu0 0
        %4819 = vmatprep.subr.bf16.mxu0 0
        %4820 = vmatpush1.bf16.msra.mxu0 0
        %4821 = vmatprep.mubr.bf16.mxu0 0
        %4822 = vmatmul.mubr.bf16.gmra.mrb[0].mxu0 %v4787
        %v4823 = vpop.f32.mrb[0].mxu0
        %v4824 = vadd.f32 0.0, %v4823
        %v4825 = vpop.f32.mrb[0].mxu0
        %v4826 = vpop.f32.mrb[0].mxu0
        %v4827 = vadd.f32 0.0, %v4826
        %v4828 = vpop.f32.mrb[0].mxu0
        %4829 = vdwg.mxu0
        %v4830 = vpack.c.bf16 %v4498, %v4495
        %v4831 = vpack.c.bf16 %v4545, %v4542
        %v4832 = vpack.c.bf16 %v4592, %v4589
        %v4833 = vpack.c.bf16 %v4639, %v4636
        %v4834 = vpack.c.bf16 %v4686, %v4683
        %v4835 = vpack.c.bf16 %v4733, %v4730
        %v4836 = vpack.c.bf16 %v4780, %v4777
        %v4837 = vpack.c.bf16 %v4827, %v4824
        %v4839 = vsel %vm487, %v4830, 0
        %v4842 = vsel %vm487, %v4831, 0
        %v4845 = vsel %vm487, %v4832, 0
        %v4848 = vsel %vm487, %v4833, 0
        %v4851 = vsel %vm487, %v4834, 0
        %v4854 = vsel %vm487, %v4835, 0
        %v4857 = vsel %vm487, %v4836, 0
        %v4860 = vsel %vm487, %v4837, 0
        %v4863 = vsel %vm2487, %v467, 0
        %4865 = vmatprep.subr.bf16.mxu0 0
        %4866 = vmatpush1.bf16.msra.mxu0 %v4863
        %4867 = vmatprep.subr.bf16.mxu0 0
        %4868 = vmatpush1.bf16.msra.mxu0 0
        %4869 = vmatprep.subr.bf16.mxu0 0
        %4870 = vmatpush1.bf16.msra.mxu0 0
        %4871 = vmatprep.subr.bf16.mxu0 0
        %4872 = vmatpush1.bf16.msra.mxu0 0
        %4873 = vmatprep.subr.bf16.mxu0 0
        %4874 = vmatpush1.bf16.msra.mxu0 0
        %4875 = vmatprep.subr.bf16.mxu0 0
        %4876 = vmatpush1.bf16.msra.mxu0 0
        %4877 = vmatprep.subr.bf16.mxu0 0
        %4878 = vmatpush1.bf16.msra.mxu0 0
        %4879 = vmatprep.subr.bf16.mxu0 0
        %4880 = vmatpush1.bf16.msra.mxu0 0
        %4881 = vmatprep.subr.bf16.mxu0 0
        %4882 = vmatpush1.bf16.msra.mxu0 0
        %4883 = vmatprep.subr.bf16.mxu0 0
        %4884 = vmatpush1.bf16.msra.mxu0 0
        %4885 = vmatprep.subr.bf16.mxu0 0
        %4886 = vmatpush1.bf16.msra.mxu0 0
        %4887 = vmatprep.subr.bf16.mxu0 0
        %4888 = vmatpush1.bf16.msra.mxu0 0
        %4889 = vmatprep.subr.bf16.mxu0 0
        %4890 = vmatpush1.bf16.msra.mxu0 0
        %4891 = vmatprep.subr.bf16.mxu0 0
        %4892 = vmatpush1.bf16.msra.mxu0 0
        %4893 = vmatprep.subr.bf16.mxu0 0
        %4894 = vmatpush1.bf16.msra.mxu0 0
        %4895 = vmatprep.subr.bf16.mxu0 0
        %4896 = vmatpush1.bf16.msra.mxu0 0
        %4897 = vmatprep.mubr.bf16.mxu0 0
        %4898 = vmatmul.mubr.bf16.gmra.mrb[0].mxu0 %v4839
        %v4899 = vpop.f32.mrb[0].mxu0
        %v4900 = vadd.f32 0.0, %v4899
        %v4901 = vpop.f32.mrb[0].mxu0
        %v4902 = vpop.f32.mrb[0].mxu0
        %v4903 = vadd.f32 0.0, %v4902
        %v4904 = vpop.f32.mrb[0].mxu0
        %4905 = vmatprep.mubr.bf16.mxu0 0
        %4906 = vmatmul.mubr.bf16.gmra.mrb[0].mxu0 %v4842
        %v4907 = vpop.f32.mrb[0].mxu0
        %v4908 = vadd.f32 0.0, %v4907
        %v4909 = vpop.f32.mrb[0].mxu0
        %v4910 = vpop.f32.mrb[0].mxu0
        %v4911 = vadd.f32 0.0, %v4910
        %v4912 = vpop.f32.mrb[0].mxu0
        %4913 = vmatprep.mubr.bf16.mxu0 0
        %4914 = vmatmul.mubr.bf16.gmra.mrb[0].mxu0 %v4845
        %v4915 = vpop.f32.mrb[0].mxu0
        %v4916 = vadd.f32 0.0, %v4915
        %v4917 = vpop.f32.mrb[0].mxu0
        %v4918 = vpop.f32.mrb[0].mxu0
        %v4919 = vadd.f32 0.0, %v4918
        %v4920 = vpop.f32.mrb[0].mxu0
        %4921 = vmatprep.mubr.bf16.mxu0 0
        %4922 = vmatmul.mubr.bf16.gmra.mrb[0].mxu0 %v4848
        %v4923 = vpop.f32.mrb[0].mxu0
        %v4924 = vadd.f32 0.0, %v4923
        %v4925 = vpop.f32.mrb[0].mxu0
        %v4926 = vpop.f32.mrb[0].mxu0
        %v4927 = vadd.f32 0.0, %v4926
        %v4928 = vpop.f32.mrb[0].mxu0
        %4929 = vmatprep.mubr.bf16.mxu0 0
        %4930 = vmatmul.mubr.bf16.gmra.mrb[0].mxu0 %v4851
        %v4931 = vpop.f32.mrb[0].mxu0
        %v4932 = vadd.f32 0.0, %v4931
        %v4933 = vpop.f32.mrb[0].mxu0
        %v4934 = vpop.f32.mrb[0].mxu0
        %v4935 = vadd.f32 0.0, %v4934
        %v4936 = vpop.f32.mrb[0].mxu0
        %4937 = vmatprep.mubr.bf16.mxu0 0
        %4938 = vmatmul.mubr.bf16.gmra.mrb[0].mxu0 %v4854
        %v4939 = vpop.f32.mrb[0].mxu0
        %v4940 = vadd.f32 0.0, %v4939
        %v4941 = vpop.f32.mrb[0].mxu0
        %v4942 = vpop.f32.mrb[0].mxu0
        %v4943 = vadd.f32 0.0, %v4942
        %v4944 = vpop.f32.mrb[0].mxu0
        %4945 = vmatprep.mubr.bf16.mxu0 0
        %4946 = vmatmul.mubr.bf16.gmra.mrb[0].mxu0 %v4857
        %v4947 = vpop.f32.mrb[0].mxu0
        %v4948 = vadd.f32 0.0, %v4947
        %v4949 = vpop.f32.mrb[0].mxu0
        %v4950 = vpop.f32.mrb[0].mxu0
        %v4951 = vadd.f32 0.0, %v4950
        %v4952 = vpop.f32.mrb[0].mxu0
        %4953 = vmatprep.mubr.bf16.mxu0 0
        %4954 = vmatmul.mubr.bf16.gmra.mrb[0].mxu0 %v4860
        %v4955 = vpop.f32.mrb[0].mxu0
        %v4956 = vadd.f32 0.0, %v4955
        %v4957 = vpop.f32.mrb[0].mxu0
        %v4958 = vpop.f32.mrb[0].mxu0
        %v4959 = vadd.f32 0.0, %v4958
        %v4960 = vpop.f32.mrb[0].mxu0
        %4961 = vdwg.mxu0
        %v4962 = vadd.f32 %v3829, %v4900
        %v4963 = vadd.f32 %v3830, %v4903
        %v4964 = vadd.f32 %v3831, %v4908
        %v4965 = vadd.f32 %v3832, %v4911
        %v4966 = vadd.f32 %v3833, %v4916
        %v4967 = vadd.f32 %v3834, %v4919
        %v4968 = vadd.f32 %v3835, %v4924
        %v4969 = vadd.f32 %v3836, %v4927
        %v4970 = vadd.f32 %v3837, %v4932
        %v4971 = vadd.f32 %v3838, %v4935
        %v4972 = vadd.f32 %v3839, %v4940
        %v4973 = vadd.f32 %v3840, %v4943
        %v4974 = vadd.f32 %v3841, %v4948
        %v4975 = vadd.f32 %v3842, %v4951
        %v4976 = vadd.f32 %v3843, %v4956
        %v4977 = vadd.f32 %v3844, %v4959
        %v4978 = vld [vmem:[%s4] sm:$0x1]
        %v4980 = vlaneseq
        %v4981 = vshrl.u32 %v4980, 7
        %v4982 = vsub.s32 0, %v4981
        %v4983 = vrot.slane %v4978, %v4982
        %v4985 = vadd.f32 %v4962, %v4983
        %v4986 = vadd.f32 %v4963, %v4983
        %v4987 = vadd.f32 %v4964, %v4983
        %v4988 = vadd.f32 %v4965, %v4983
        %v4989 = vadd.f32 %v4966, %v4983
        %v4990 = vadd.f32 %v4967, %v4983
        %v4991 = vadd.f32 %v4968, %v4983
        %v4992 = vadd.f32 %v4969, %v4983
        %v4993 = vadd.f32 %v4970, %v4983
        %v4994 = vadd.f32 %v4971, %v4983
        %v4995 = vadd.f32 %v4972, %v4983
        %v4996 = vadd.f32 %v4973, %v4983
        %v4997 = vadd.f32 %v4974, %v4983
        %v4998 = vadd.f32 %v4975, %v4983
        %v4999 = vadd.f32 %v4976, %v4983
        %v5000 = vadd.f32 %v4977, %v4983
        %5001 = vst.msk [vmem:[%s291] sm:$0xff] %vm342, %v4985
        %5002 = vst.msk [vmem:[%s291 + $0x8] sm:$0xff] %vm342, %v4986
        %5003 = vst.msk [vmem:[%s291 + $0x10] sm:$0xff] %vm342, %v4987
        %5004 = vst.msk [vmem:[%s291 + $0x18] sm:$0xff] %vm342, %v4988
        %5005 = vst.msk [vmem:[%s291 + $0x20] sm:$0xff] %vm342, %v4989
        %5006 = vst.msk [vmem:[%s291 + $0x28] sm:$0xff] %vm342, %v4990
        %5007 = vst.msk [vmem:[%s291 + $0x30] sm:$0xff] %vm342, %v4991
        %5008 = vst.msk [vmem:[%s291 + $0x38] sm:$0xff] %vm342, %v4992
        %5009 = vst.msk [vmem:[%s291 + $0x40] sm:$0xff] %vm342, %v4993
        %5010 = vst.msk [vmem:[%s291 + $0x48] sm:$0xff] %vm342, %v4994
        %5011 = vst.msk [vmem:[%s291 + $0x50] sm:$0xff] %vm342, %v4995
        %5012 = vst.msk [vmem:[%s291 + $0x58] sm:$0xff] %vm342, %v4996
        %5013 = vst.msk [vmem:[%s291 + $0x60] sm:$0xff] %vm342, %v4997
        %5014 = vst.msk [vmem:[%s291 + $0x68] sm:$0xff] %vm342, %v4998
        %5015 = vst.msk [vmem:[%s291 + $0x70] sm:$0xff] %vm342, %v4999
        %5016 = vst.msk [vmem:[%s291 + $0x78] sm:$0xff] %vm342, %v5000
        %s5017 = smul.u32 16, %s22
        %p5018 = scmp.lt.s32.totalorder %s5017, 31
        %s5019 = scalar_select %p5018, %s5017, 31
        %s5020 = smul.addr %s5019, 8
        %s5021 = scalar_lea.vmem %s6, %s5020
        %s5022 = sand.u32 %s187, 1
        %s5023 = scalar_lea.sflag [#allocation3], %s5022
        %s5024 = sand.u32 %s187, 1
        %s5025 = smul.addr %s5024, 512
        %s5026 = scalar_lea.vmem [#allocation2], %s5025
        // Predicated region
        $region45: #{tpu_custom_call.1} parent=43 // pred_check
          %p5027 = pneg %p171
        $region46: #{tpu_custom_call.1} parent=43 // pred_check_branch
          %5029 = sbr.rel (%p5027) target = $region48
        $region47: #{tpu_custom_call.1} parent=43 // pred_region
          %s5030 = smul.u32 16, %s22
        $region48: #{tpu_custom_call.1} parent=43 // pred_fallthru
          _
        // Predicated region
        $region49: #{tpu_custom_call.1} parent=43 // pred_check
          %p5031 = pneg %p197
        $region50: #{tpu_custom_call.1} parent=43 // pred_check_branch
          %5033 = sbr.rel (%p5031) target = $region52
        $region51: #{tpu_custom_call.1} parent=43 // pred_region
          %s5034 = smul.u32 8, %s22
          %s5036 = ssub.s32 8192, 8192
          %5037 = vsyncadd %s5023, %s5036
          %s5038 = smul.addr %s5034, 8
          %s5039 = smul.addr %s5038, 128
          %s5040 = scalar_lea.hbm %s7, %s5039
          %s5041 = sshll.u32 %s5026, 4
          %s5042 = int_to_ptr.vmem [resolvable:$true] %s5041
          %5047 = dma.vmem_to_hbm [thread:$0]  %s5042, 8192, %s5040, %s5023, 128, 128, 8
        $region52: #{tpu_custom_call.1} parent=43 // pred_fallthru
          _
      $region44: #{tpu_custom_call.1} parent=5 // pred_fallthru
        _
      %p5048 = scmp.le.s32.totalorder 2, %s17
      // Predicated region
      $region53: #{tpu_custom_call.1} parent=5 // pred_check
        %p5049 = pneg %p5048
      $region54: #{tpu_custom_call.1} parent=5 // pred_check_branch
        %5051 = sbr.rel (%p5049) target = $region56
      $region55: #{tpu_custom_call.1} parent=5 // pred_region
        %s5052 = ssub.s32 %s17, 2
        // Predicated region
        $region57: #{tpu_custom_call.1} parent=55 // pred_check
          %p5053 = pneg %p177
        $region58: #{tpu_custom_call.1} parent=55 // pred_check_branch
          %5055 = sbr.rel (%p5053) target = $region60
        $region59: #{tpu_custom_call.1} parent=55 // pred_region
          %s5056 = smul.u32 16, %s23
          %p5057 = scmp.lt.s32.totalorder %s5056, 31
          %s5058 = scalar_select %p5057, %s5056, 31
          %s5059 = smul.addr %s5058, 8
          %s5060 = scalar_lea.vmem %s6, %s5059
        $region60: #{tpu_custom_call.1} parent=55 // pred_fallthru
          _
        // Predicated region
        $region61: #{tpu_custom_call.1} parent=55 // pred_check
          %p5061 = pneg %p203
        $region62: #{tpu_custom_call.1} parent=55 // pred_check_branch
          %5063 = sbr.rel (%p5061) target = $region64
        $region63: #{tpu_custom_call.1} parent=55 // pred_region
          %s5064 = sand.u32 %s188, 1
          %s5065 = scalar_lea.sflag [#allocation3], %s5064
          %s5066 = sand.u32 %s188, 1
          %s5067 = smul.addr %s5066, 512
          %s5068 = scalar_lea.vmem [#allocation2], %s5067
          %5069 = dma.done %s5065, 8192
        $region64: #{tpu_custom_call.1} parent=55 // pred_fallthru
          _
      $region56: #{tpu_custom_call.1} parent=5 // pred_fallthru
        _
    $region6: #{tpu_custom_call.1} parent=1 // loop_footer
      %s21 = sadd.s32 1, %s17
    $region7: #{tpu_custom_call.1} parent=1 // loop_footer_branch
      %16 = sbr.rel target = $region3
    $region8: #{tpu_custom_call.1} parent=1 // loop_exit
      _
    %5070 = vsyncpa [#allocation3], 1
    %s5071 = scalar_lea.sflag [#allocation3], 1
    %5072 = vsyncpa %s5071, 1

</llo_original>
